<compile_context>
chip_gen: v7x
topology: tpu7x:2x2x1
jax: 0.10.0
libtpu: 0.0.40
codegen_flags: <defaults>
</compile_context>

<pallas_src>
import functools

import jax
import jax.numpy as jnp
from jax import lax
from jax.experimental import pallas as pl
from jax.experimental.pallas import tpu as pltpu


# ------------------------------ fused Pallas kernel ------------------------------ #

def down_fused_kernel(x_ref, w1_ref, s1_ref, b1_ref, w2_ref, s2_ref, b2_ref,
                      o_ref, p_ref, h1_ref, *, cin, wp, t_rows):
    """One (batch, row-tile) step of Down.

    x_ref : (1, Hp, Wp, 4*cin)   space-to-depth input (the 4 pool taps on the lane dim)
    w1_ref: (9, cin, CP)         conv1 taps, k = ky*3+kx ; CP = Cout padded to 128-mult
    w2_ref: (9, CP, CP)          conv2 taps
    s*/b* : (1, CP)              folded BatchNorm scale / bias
    o_ref : (1, t_rows, Wp-4, CP)
    p_ref : ((t_rows+4)*wp + 8, cin)  VMEM scratch: pooled tile, row-major flattened
    h1_ref: ((t_rows+2)*wp + 8, CP)   VMEM scratch: conv1 activation, flattened
    """
    r = pl.program_id(1)
    cp = o_ref.shape[-1]
    w2_valid = o_ref.shape[2]            # = wp - 4
    rp = t_rows + 4                      # pooled rows needed by this tile
    lp = rp * wp
    m1 = (t_rows + 2) * wp               # conv1 rows (full width incl. wrap cols)
    m2 = t_rows * wp                     # conv2 rows (full width incl. wrap cols)

    # ---- fused 2x2 max-pool: max of 4 static lane-slices of the s2d input ----
    xs = x_ref[0, pl.ds(r * t_rows, rp), :, :]                 # (rp, wp, 4*cin)
    pooled = jnp.maximum(
        jnp.maximum(xs[..., 0 * cin:1 * cin], xs[..., 1 * cin:2 * cin]),
        jnp.maximum(xs[..., 2 * cin:3 * cin], xs[..., 3 * cin:4 * cin]))
    p_ref[pl.ds(0, lp), :] = pooled.reshape(lp, cin)
    p_ref[pl.ds(lp, 8), :] = jnp.zeros((8, cin), p_ref.dtype)  # halo pad rows

    # ---- conv1: 9 shifted matmuls, f32 accumulate, fused BN + ReLU -----------
    acc1 = jnp.zeros((m1, cp), jnp.float32)
    for ky in range(3):
        for kx in range(3):
            off = ky * wp + kx                                  # static offset
            acc1 += jnp.dot(p_ref[pl.ds(off, m1), :], w1_ref[ky * 3 + kx],
                            preferred_element_type=jnp.float32)
    h1 = jnp.maximum(acc1 * s1_ref[...] + b1_ref[...], 0.0)
    h1_ref[pl.ds(0, m1), :] = h1
    h1_ref[pl.ds(m1, 8), :] = jnp.zeros((8, cp), h1_ref.dtype)

    # ---- conv2: 9 shifted matmuls, f32 accumulate, fused BN + ReLU -----------
    acc2 = jnp.zeros((m2, cp), jnp.float32)
    for ky in range(3):
        for kx in range(3):
            off = ky * wp + kx
            acc2 += jnp.dot(h1_ref[pl.ds(off, m2), :], w2_ref[ky * 3 + kx],
                            preferred_element_type=jnp.float32)
    y = jnp.maximum(acc2 * s2_ref[...] + b2_ref[...], 0.0)
    y = y.reshape(t_rows, wp, cp)[:, :w2_valid, :]             # drop wraparound cols
    o_ref[...] = y[None].astype(o_ref.dtype)


# --------------------------------- JAX wrapper ----------------------------------- #

def _round_up(x, m):
    return ((x + m - 1) // m) * m


def _pick_row_tile(h2, max_rows=16):
    t = min(h2, max_rows)
    while h2 % t:
        t -= 1
    return t


def down_forward(x_nchw, params, *, max_row_tile=16):
    """Down.forward: NCHW in, NCHW out (VALID convs, running-stats BatchNorm)."""
    N, Cin, H, W = x_nchw.shape
    assert H % 2 == 0 and W % 2 == 0, "MaxPool2d(2,2) expects even spatial dims"
    Hp, Wp = H // 2, W // 2
    H2, W2 = Hp - 4, Wp - 4
    assert H2 > 0 and W2 > 0
    Cout = params["w1"].shape[0]
    CP = _round_up(Cout, 128)                     # lane-dense padded channel count
    T = _pick_row_tile(H2, max_row_tile)

    # space-to-depth (N,H,W,Cin) -> (N,Hp,Wp,4*Cin): makes the 2x2 pool a lane-slice max
    x = jnp.transpose(x_nchw, (0, 2, 3, 1))                          # NHWC
    x = x.reshape(N, Hp, 2, Wp, 2, Cin)
    x = jnp.transpose(x, (0, 1, 3, 2, 4, 5)).reshape(N, Hp, Wp, 4 * Cin)

    # fold BN (inference) into per-channel scale/bias; pad channels to CP
    def fold_bn(conv_b, g, be, m, v, eps=1e-5):
        scale = g / jnp.sqrt(v + eps)
        bias = be + (conv_b - m) * scale
        return (jnp.pad(scale, (0, CP - Cout)).reshape(1, CP),
                jnp.pad(bias, (0, CP - Cout)).reshape(1, CP))

    def prep_w(w, kin_pad):                       # (O,I,3,3) -> (9, kin_pad, CP)
        co, ci = w.shape[0], w.shape[1]
        wk = jnp.transpose(w, (2, 3, 1, 0)).reshape(9, ci, co)       # (ky*3+kx, ci, co)
        return jnp.pad(wk, ((0, 0), (0, kin_pad - ci), (0, CP - co)))

    w1k = prep_w(params["w1"], Cin)
    w2k = prep_w(params["w2"], CP)
    s1, b1 = fold_bn(params["b1"], params["g1"], params["be1"], params["m1"], params["v1"])
    s2, b2 = fold_bn(params["b2"], params["g2"], params["be2"], params["m2"], params["v2"])

    kern = functools.partial(down_fused_kernel, cin=Cin, wp=Wp, t_rows=T)

    out = pl.pallas_call(
        kern,
        grid=(N, H2 // T),
        in_specs=[
            pl.BlockSpec((1, Hp, Wp, 4 * Cin), lambda n, r: (n, 0, 0, 0)),
            pl.BlockSpec((9, Cin, CP), lambda n, r: (0, 0, 0)),
            pl.BlockSpec((1, CP), lambda n, r: (0, 0)),
            pl.BlockSpec((1, CP), lambda n, r: (0, 0)),
            pl.BlockSpec((9, CP, CP), lambda n, r: (0, 0, 0)),
            pl.BlockSpec((1, CP), lambda n, r: (0, 0)),
            pl.BlockSpec((1, CP), lambda n, r: (0, 0)),
        ],
        out_specs=pl.BlockSpec((1, T, W2, CP), lambda n, r: (n, r, 0, 0)),
        out_shape=jax.ShapeDtypeStruct((N, H2, W2, CP), x_nchw.dtype),
        scratch_shapes=[
            pltpu.VMEM(((T + 4) * Wp + 8, Cin), jnp.float32),
            pltpu.VMEM(((T + 2) * Wp + 8, CP), jnp.float32),
        ],
        compiler_params=pltpu.CompilerParams(
            dimension_semantics=("parallel", "parallel"),
            vmem_limit_bytes=32 * 1024 * 1024,
        ),
    )(x, w1k, s1, b1, w2k, s2, b2)

    out = out[..., :Cout]                          # drop channel padding
    return jnp.transpose(out, (0, 3, 1, 2))        # NHWC -> NCHW


# ------------------------------ pure-JAX reference -------------------------------- #

def ref_forward(x, p, eps=1e-5):
    dn = ("NCHW", "OIHW", "NCHW")
    x = lax.reduce_window(x, -jnp.inf, lax.max, (1, 1, 2, 2), (1, 1, 2, 2), "VALID")

    z = lax.conv_general_dilated(x, p["w1"], (1, 1), "VALID", dimension_numbers=dn)
    z = z + p["b1"][None, :, None, None]
    z = (z - p["m1"][None, :, None, None]) / jnp.sqrt(p["v1"][None, :, None, None] + eps)
    z = z * p["g1"][None, :, None, None] + p["be1"][None, :, None, None]
    z = jnp.maximum(z, 0.0)

    z = lax.conv_general_dilated(z, p["w2"], (1, 1), "VALID", dimension_numbers=dn)
    z = z + p["b2"][None, :, None, None]
    z = (z - p["m2"][None, :, None, None]) / jnp.sqrt(p["v2"][None, :, None, None] + eps)
    z = z * p["g2"][None, :, None, None] + p["be2"][None, :, None, None]
    return jnp.maximum(z, 0.0)


# ---------------------------------------- main ------------------------------------ #

if __name__ == "__main__":
    key = jax.random.PRNGKey(0)
    in_ch, out_ch = 4, 8
    N, H, W = 2, 16, 16

    keys = jax.random.split(key, 12)
    params = {
        "w1": 0.1 * jax.random.normal(keys[0], (out_ch, in_ch, 3, 3), jnp.float32),
        "b1": 0.1 * jax.random.normal(keys[1], (out_ch,), jnp.float32),
        "g1": 1.0 + 0.1 * jax.random.normal(keys[2], (out_ch,), jnp.float32),
        "be1": 0.1 * jax.random.normal(keys[3], (out_ch,), jnp.float32),
        "m1": 0.1 * jax.random.normal(keys[4], (out_ch,), jnp.float32),
        "v1": 0.5 + jnp.abs(jax.random.normal(keys[5], (out_ch,), jnp.float32)),
        "w2": 0.1 * jax.random.normal(keys[6], (out_ch, out_ch, 3, 3), jnp.float32),
        "b2": 0.1 * jax.random.normal(keys[7], (out_ch,), jnp.float32),
        "g2": 1.0 + 0.1 * jax.random.normal(keys[8], (out_ch,), jnp.float32),
        "be2": 0.1 * jax.random.normal(keys[9], (out_ch,), jnp.float32),
        "m2": 0.1 * jax.random.normal(keys[10], (out_ch,), jnp.float32),
        "v2": 0.5 + jnp.abs(jax.random.normal(keys[11], (out_ch,), jnp.float32)),
    }

    x = jax.random.normal(jax.random.PRNGKey(42), (N, in_ch, H, W), jnp.float32)

    out = jax.block_until_ready(down_forward(x, params))
    ref = jax.block_until_ready(ref_forward(x, params))

    assert out.shape == (N, out_ch, (H // 2) - 4, (W // 2) - 4), out.shape
    assert jnp.allclose(out, ref, rtol=1e-4, atol=1e-4), float(jnp.max(jnp.abs(out - ref)))

    print("KERNEL_OK")
</pallas_src>

<mosaic_0001>
module attributes {stable_mosaic.version = 11 : i64} {
  func.func @down_fused_kernel(%arg0: i32, %arg1: i32, %arg2: memref<1x8x8x16xf32, #tpu.memory_space<vmem>>, %arg3: memref<9x4x128xf32, #tpu.memory_space<vmem>>, %arg4: memref<1x128xf32, #tpu.memory_space<vmem>>, %arg5: memref<1x128xf32, #tpu.memory_space<vmem>>, %arg6: memref<9x128x128xf32, #tpu.memory_space<vmem>>, %arg7: memref<1x128xf32, #tpu.memory_space<vmem>>, %arg8: memref<1x128xf32, #tpu.memory_space<vmem>>, %arg9: memref<1x4x4x128xf32, #tpu.memory_space<vmem>>, %arg10: memref<72x4xf32, #tpu.memory_space<vmem>>, %arg11: memref<56x128xf32, #tpu.memory_space<vmem>>) attributes {dimension_semantics = [#tpu.dimension_semantics<parallel>, #tpu.dimension_semantics<parallel>], iteration_bounds = array<i64: 2, 1>, scalar_prefetch = 0 : i64, scratch_operands = 2 : i64, tpu.core_type = #tpu.core_type<tc>, window_params = [{transform_indices = @transform_0, window_bounds = array<i64: 1, 8, 8, 16>}, {pipeline_mode = #tpu.pipeline_mode<synchronous>, transform_indices = @transform_1, window_bounds = array<i64: 9, 4, 128>}, {pipeline_mode = #tpu.pipeline_mode<synchronous>, transform_indices = @transform_2, window_bounds = array<i64: 1, 128>}, {pipeline_mode = #tpu.pipeline_mode<synchronous>, transform_indices = @transform_3, window_bounds = array<i64: 1, 128>}, {pipeline_mode = #tpu.pipeline_mode<synchronous>, transform_indices = @transform_4, window_bounds = array<i64: 9, 128, 128>}, {pipeline_mode = #tpu.pipeline_mode<synchronous>, transform_indices = @transform_5, window_bounds = array<i64: 1, 128>}, {pipeline_mode = #tpu.pipeline_mode<synchronous>, transform_indices = @transform_6, window_bounds = array<i64: 1, 128>}, {transform_indices = @transform_7, window_bounds = array<i64: 1, 4, 4, 128>}]} {
    %c4_i32 = arith.constant 4 : i32
    %0 = arith.muli %arg1, %c4_i32 : i32
    %c0 = arith.constant 0 : index
    %1 = arith.index_cast %0 : i32 to index
    %c0_0 = arith.constant 0 : index
    %c0_1 = arith.constant 0 : index
    %2 = vector.load %arg2[%c0, %1, %c0_0, %c0_1] : memref<1x8x8x16xf32, #tpu.memory_space<vmem>>, vector<1x8x8x16xf32>
    %3 = vector.shape_cast %2 : vector<1x8x8x16xf32> to vector<8x8x16xf32>
    %4 = vector.extract_strided_slice %3 {offsets = [0, 0, 0], sizes = [8, 8, 4], strides = [1, 1, 1]} : vector<8x8x16xf32> to vector<8x8x4xf32>
    %5 = vector.extract_strided_slice %3 {offsets = [0, 0, 4], sizes = [8, 8, 4], strides = [1, 1, 1]} : vector<8x8x16xf32> to vector<8x8x4xf32>
    %6 = arith.maximumf %4, %5 : vector<8x8x4xf32>
    %7 = vector.extract_strided_slice %3 {offsets = [0, 0, 8], sizes = [8, 8, 4], strides = [1, 1, 1]} : vector<8x8x16xf32> to vector<8x8x4xf32>
    %8 = vector.extract_strided_slice %3 {offsets = [0, 0, 12], sizes = [8, 8, 4], strides = [1, 1, 1]} : vector<8x8x16xf32> to vector<8x8x4xf32>
    %9 = arith.maximumf %7, %8 : vector<8x8x4xf32>
    %10 = arith.maximumf %6, %9 : vector<8x8x4xf32>
    %11 = vector.shape_cast %10 : vector<8x8x4xf32> to vector<64x4xf32>
    %c0_2 = arith.constant 0 : index
    %c0_3 = arith.constant 0 : index
    %12 = vector.load %arg10[%c0_2, %c0_3] : memref<72x4xf32, #tpu.memory_space<vmem>>, vector<64x4xf32>
    tpu.vector_store %arg10[%c0_2, %c0_3], %11 {strides = array<i32>} : memref<72x4xf32, #tpu.memory_space<vmem>>, vector<64x4xf32>,
    %cst = arith.constant 0.000000e+00 : f32
    %13 = vector.broadcast %cst : f32 to vector<8x4xf32>
    %c64 = arith.constant 64 : index
    %c0_4 = arith.constant 0 : index
    %14 = vector.load %arg10[%c64, %c0_4] : memref<72x4xf32, #tpu.memory_space<vmem>>, vector<8x4xf32>
    tpu.vector_store %arg10[%c64, %c0_4], %13 {strides = array<i32>} : memref<72x4xf32, #tpu.memory_space<vmem>>, vector<8x4xf32>,
    %cst_5 = arith.constant 0.000000e+00 : f32
    %15 = vector.broadcast %cst_5 : f32 to vector<48x128xf32>
    %c0_6 = arith.constant 0 : index
    %c0_7 = arith.constant 0 : index
    %16 = vector.load %arg10[%c0_6, %c0_7] : memref<72x4xf32, #tpu.memory_space<vmem>>, vector<48x4xf32>
    %c0_8 = arith.constant 0 : index
    %c0_9 = arith.constant 0 : index
    %c0_10 = arith.constant 0 : index
    %17 = vector.load %arg3[%c0_8, %c0_9, %c0_10] : memref<9x4x128xf32, #tpu.memory_space<vmem>>, vector<1x4x128xf32>
    %18 = vector.shape_cast %17 : vector<1x4x128xf32> to vector<4x128xf32>
    %cst_11 = arith.constant dense<0.000000e+00> : vector<48x128xf32>
    %19 = tpu.matmul %16, %18, %cst_11 {dimension_numbers = #tpu.dot_dimension_numbers<[1], [0], [0], [1], [0, 0, 1, 1], [], []>} : vector<48x4xf32>, vector<4x128xf32>, vector<48x128xf32> -> vector<48x128xf32>
    %20 = arith.addf %15, %19 : vector<48x128xf32>
    %c1 = arith.constant 1 : index
    %c0_12 = arith.constant 0 : index
    %21 = vector.load %arg10[%c1, %c0_12] : memref<72x4xf32, #tpu.memory_space<vmem>>, vector<48x4xf32>
    %c1_13 = arith.constant 1 : index
    %c0_14 = arith.constant 0 : index
    %c0_15 = arith.constant 0 : index
    %22 = vector.load %arg3[%c1_13, %c0_14, %c0_15] : memref<9x4x128xf32, #tpu.memory_space<vmem>>, vector<1x4x128xf32>
    %23 = vector.shape_cast %22 : vector<1x4x128xf32> to vector<4x128xf32>
    %cst_16 = arith.constant dense<0.000000e+00> : vector<48x128xf32>
    %24 = tpu.matmul %21, %23, %cst_16 {dimension_numbers = #tpu.dot_dimension_numbers<[1], [0], [0], [1], [0, 0, 1, 1], [], []>} : vector<48x4xf32>, vector<4x128xf32>, vector<48x128xf32> -> vector<48x128xf32>
    %25 = arith.addf %20, %24 : vector<48x128xf32>
    %c2 = arith.constant 2 : index
    %c0_17 = arith.constant 0 : index
    %26 = vector.load %arg10[%c2, %c0_17] : memref<72x4xf32, #tpu.memory_space<vmem>>, vector<48x4xf32>
    %c2_18 = arith.constant 2 : index
    %c0_19 = arith.constant 0 : index
    %c0_20 = arith.constant 0 : index
    %27 = vector.load %arg3[%c2_18, %c0_19, %c0_20] : memref<9x4x128xf32, #tpu.memory_space<vmem>>, vector<1x4x128xf32>
    %28 = vector.shape_cast %27 : vector<1x4x128xf32> to vector<4x128xf32>
    %cst_21 = arith.constant dense<0.000000e+00> : vector<48x128xf32>
    %29 = tpu.matmul %26, %28, %cst_21 {dimension_numbers = #tpu.dot_dimension_numbers<[1], [0], [0], [1], [0, 0, 1, 1], [], []>} : vector<48x4xf32>, vector<4x128xf32>, vector<48x128xf32> -> vector<48x128xf32>
    %30 = arith.addf %25, %29 : vector<48x128xf32>
    %c8 = arith.constant 8 : index
    %c0_22 = arith.constant 0 : index
    %31 = vector.load %arg10[%c8, %c0_22] : memref<72x4xf32, #tpu.memory_space<vmem>>, vector<48x4xf32>
    %c3 = arith.constant 3 : index
    %c0_23 = arith.constant 0 : index
    %c0_24 = arith.constant 0 : index
    %32 = vector.load %arg3[%c3, %c0_23, %c0_24] : memref<9x4x128xf32, #tpu.memory_space<vmem>>, vector<1x4x128xf32>
    %33 = vector.shape_cast %32 : vector<1x4x128xf32> to vector<4x128xf32>
    %cst_25 = arith.constant dense<0.000000e+00> : vector<48x128xf32>
    %34 = tpu.matmul %31, %33, %cst_25 {dimension_numbers = #tpu.dot_dimension_numbers<[1], [0], [0], [1], [0, 0, 1, 1], [], []>} : vector<48x4xf32>, vector<4x128xf32>, vector<48x128xf32> -> vector<48x128xf32>
    %35 = arith.addf %30, %34 : vector<48x128xf32>
    %c9 = arith.constant 9 : index
    %c0_26 = arith.constant 0 : index
    %36 = vector.load %arg10[%c9, %c0_26] : memref<72x4xf32, #tpu.memory_space<vmem>>, vector<48x4xf32>
    %c4 = arith.constant 4 : index
    %c0_27 = arith.constant 0 : index
    %c0_28 = arith.constant 0 : index
    %37 = vector.load %arg3[%c4, %c0_27, %c0_28] : memref<9x4x128xf32, #tpu.memory_space<vmem>>, vector<1x4x128xf32>
    %38 = vector.shape_cast %37 : vector<1x4x128xf32> to vector<4x128xf32>
    %cst_29 = arith.constant dense<0.000000e+00> : vector<48x128xf32>
    %39 = tpu.matmul %36, %38, %cst_29 {dimension_numbers = #tpu.dot_dimension_numbers<[1], [0], [0], [1], [0, 0, 1, 1], [], []>} : vector<48x4xf32>, vector<4x128xf32>, vector<48x128xf32> -> vector<48x128xf32>
    %40 = arith.addf %35, %39 : vector<48x128xf32>
    %c10 = arith.constant 10 : index
    %c0_30 = arith.constant 0 : index
    %41 = vector.load %arg10[%c10, %c0_30] : memref<72x4xf32, #tpu.memory_space<vmem>>, vector<48x4xf32>
    %c5 = arith.constant 5 : index
    %c0_31 = arith.constant 0 : index
    %c0_32 = arith.constant 0 : index
    %42 = vector.load %arg3[%c5, %c0_31, %c0_32] : memref<9x4x128xf32, #tpu.memory_space<vmem>>, vector<1x4x128xf32>
    %43 = vector.shape_cast %42 : vector<1x4x128xf32> to vector<4x128xf32>
    %cst_33 = arith.constant dense<0.000000e+00> : vector<48x128xf32>
    %44 = tpu.matmul %41, %43, %cst_33 {dimension_numbers = #tpu.dot_dimension_numbers<[1], [0], [0], [1], [0, 0, 1, 1], [], []>} : vector<48x4xf32>, vector<4x128xf32>, vector<48x128xf32> -> vector<48x128xf32>
    %45 = arith.addf %40, %44 : vector<48x128xf32>
    %c16 = arith.constant 16 : index
    %c0_34 = arith.constant 0 : index
    %46 = vector.load %arg10[%c16, %c0_34] : memref<72x4xf32, #tpu.memory_space<vmem>>, vector<48x4xf32>
    %c6 = arith.constant 6 : index
    %c0_35 = arith.constant 0 : index
    %c0_36 = arith.constant 0 : index
    %47 = vector.load %arg3[%c6, %c0_35, %c0_36] : memref<9x4x128xf32, #tpu.memory_space<vmem>>, vector<1x4x128xf32>
    %48 = vector.shape_cast %47 : vector<1x4x128xf32> to vector<4x128xf32>
    %cst_37 = arith.constant dense<0.000000e+00> : vector<48x128xf32>
    %49 = tpu.matmul %46, %48, %cst_37 {dimension_numbers = #tpu.dot_dimension_numbers<[1], [0], [0], [1], [0, 0, 1, 1], [], []>} : vector<48x4xf32>, vector<4x128xf32>, vector<48x128xf32> -> vector<48x128xf32>
    %50 = arith.addf %45, %49 : vector<48x128xf32>
    %c17 = arith.constant 17 : index
    %c0_38 = arith.constant 0 : index
    %51 = vector.load %arg10[%c17, %c0_38] : memref<72x4xf32, #tpu.memory_space<vmem>>, vector<48x4xf32>
    %c7 = arith.constant 7 : index
    %c0_39 = arith.constant 0 : index
    %c0_40 = arith.constant 0 : index
    %52 = vector.load %arg3[%c7, %c0_39, %c0_40] : memref<9x4x128xf32, #tpu.memory_space<vmem>>, vector<1x4x128xf32>
    %53 = vector.shape_cast %52 : vector<1x4x128xf32> to vector<4x128xf32>
    %cst_41 = arith.constant dense<0.000000e+00> : vector<48x128xf32>
    %54 = tpu.matmul %51, %53, %cst_41 {dimension_numbers = #tpu.dot_dimension_numbers<[1], [0], [0], [1], [0, 0, 1, 1], [], []>} : vector<48x4xf32>, vector<4x128xf32>, vector<48x128xf32> -> vector<48x128xf32>
    %55 = arith.addf %50, %54 : vector<48x128xf32>
    %c18 = arith.constant 18 : index
    %c0_42 = arith.constant 0 : index
    %56 = vector.load %arg10[%c18, %c0_42] : memref<72x4xf32, #tpu.memory_space<vmem>>, vector<48x4xf32>
    %c8_43 = arith.constant 8 : index
    %c0_44 = arith.constant 0 : index
    %c0_45 = arith.constant 0 : index
    %57 = vector.load %arg3[%c8_43, %c0_44, %c0_45] : memref<9x4x128xf32, #tpu.memory_space<vmem>>, vector<1x4x128xf32>
    %58 = vector.shape_cast %57 : vector<1x4x128xf32> to vector<4x128xf32>
    %cst_46 = arith.constant dense<0.000000e+00> : vector<48x128xf32>
    %59 = tpu.matmul %56, %58, %cst_46 {dimension_numbers = #tpu.dot_dimension_numbers<[1], [0], [0], [1], [0, 0, 1, 1], [], []>} : vector<48x4xf32>, vector<4x128xf32>, vector<48x128xf32> -> vector<48x128xf32>
    %60 = arith.addf %55, %59 : vector<48x128xf32>
    %c0_47 = arith.constant 0 : index
    %c0_48 = arith.constant 0 : index
    %61 = vector.load %arg4[%c0_47, %c0_48] : memref<1x128xf32, #tpu.memory_space<vmem>>, vector<1x128xf32>
    %62 = vector.broadcast %61 : vector<1x128xf32> to vector<48x128xf32>
    %63 = arith.mulf %60, %62 : vector<48x128xf32>
    %c0_49 = arith.constant 0 : index
    %c0_50 = arith.constant 0 : index
    %64 = vector.load %arg5[%c0_49, %c0_50] : memref<1x128xf32, #tpu.memory_space<vmem>>, vector<1x128xf32>
    %65 = vector.broadcast %64 : vector<1x128xf32> to vector<48x128xf32>
    %66 = arith.addf %63, %65 : vector<48x128xf32>
    %cst_51 = arith.constant 0.000000e+00 : f32
    %67 = vector.broadcast %cst_51 : f32 to vector<48x128xf32>
    %68 = arith.maximumf %66, %67 : vector<48x128xf32>
    %c0_52 = arith.constant 0 : index
    %c0_53 = arith.constant 0 : index
    %69 = vector.load %arg11[%c0_52, %c0_53] : memref<56x128xf32, #tpu.memory_space<vmem>>, vector<48x128xf32>
    tpu.vector_store %arg11[%c0_52, %c0_53], %68 {strides = array<i32>} : memref<56x128xf32, #tpu.memory_space<vmem>>, vector<48x128xf32>,
    %cst_54 = arith.constant 0.000000e+00 : f32
    %70 = vector.broadcast %cst_54 : f32 to vector<8x128xf32>
    %c48 = arith.constant 48 : index
    %c0_55 = arith.constant 0 : index
    %71 = vector.load %arg11[%c48, %c0_55] : memref<56x128xf32, #tpu.memory_space<vmem>>, vector<8x128xf32>
    tpu.vector_store %arg11[%c48, %c0_55], %70 {strides = array<i32>} : memref<56x128xf32, #tpu.memory_space<vmem>>, vector<8x128xf32>,
    %cst_56 = arith.constant 0.000000e+00 : f32
    %72 = vector.broadcast %cst_56 : f32 to vector<32x128xf32>
    %c0_57 = arith.constant 0 : index
    %c0_58 = arith.constant 0 : index
    %73 = vector.load %arg11[%c0_57, %c0_58] : memref<56x128xf32, #tpu.memory_space<vmem>>, vector<32x128xf32>
    %c0_59 = arith.constant 0 : index
    %c0_60 = arith.constant 0 : index
    %c0_61 = arith.constant 0 : index
    %74 = vector.load %arg6[%c0_59, %c0_60, %c0_61] : memref<9x128x128xf32, #tpu.memory_space<vmem>>, vector<1x128x128xf32>
    %75 = vector.shape_cast %74 : vector<1x128x128xf32> to vector<128x128xf32>
    %cst_62 = arith.constant dense<0.000000e+00> : vector<32x128xf32>
    %76 = tpu.matmul %73, %75, %cst_62 {dimension_numbers = #tpu.dot_dimension_numbers<[1], [0], [0], [1], [0, 0, 1, 1], [], []>} : vector<32x128xf32>, vector<128x128xf32>, vector<32x128xf32> -> vector<32x128xf32>
    %77 = arith.addf %72, %76 : vector<32x128xf32>
    %c1_63 = arith.constant 1 : index
    %c0_64 = arith.constant 0 : index
    %78 = vector.load %arg11[%c1_63, %c0_64] : memref<56x128xf32, #tpu.memory_space<vmem>>, vector<32x128xf32>
    %c1_65 = arith.constant 1 : index
    %c0_66 = arith.constant 0 : index
    %c0_67 = arith.constant 0 : index
    %79 = vector.load %arg6[%c1_65, %c0_66, %c0_67] : memref<9x128x128xf32, #tpu.memory_space<vmem>>, vector<1x128x128xf32>
    %80 = vector.shape_cast %79 : vector<1x128x128xf32> to vector<128x128xf32>
    %cst_68 = arith.constant dense<0.000000e+00> : vector<32x128xf32>
    %81 = tpu.matmul %78, %80, %cst_68 {dimension_numbers = #tpu.dot_dimension_numbers<[1], [0], [0], [1], [0, 0, 1, 1], [], []>} : vector<32x128xf32>, vector<128x128xf32>, vector<32x128xf32> -> vector<32x128xf32>
    %82 = arith.addf %77, %81 : vector<32x128xf32>
    %c2_69 = arith.constant 2 : index
    %c0_70 = arith.constant 0 : index
    %83 = vector.load %arg11[%c2_69, %c0_70] : memref<56x128xf32, #tpu.memory_space<vmem>>, vector<32x128xf32>
    %c2_71 = arith.constant 2 : index
    %c0_72 = arith.constant 0 : index
    %c0_73 = arith.constant 0 : index
    %84 = vector.load %arg6[%c2_71, %c0_72, %c0_73] : memref<9x128x128xf32, #tpu.memory_space<vmem>>, vector<1x128x128xf32>
    %85 = vector.shape_cast %84 : vector<1x128x128xf32> to vector<128x128xf32>
    %cst_74 = arith.constant dense<0.000000e+00> : vector<32x128xf32>
    %86 = tpu.matmul %83, %85, %cst_74 {dimension_numbers = #tpu.dot_dimension_numbers<[1], [0], [0], [1], [0, 0, 1, 1], [], []>} : vector<32x128xf32>, vector<128x128xf32>, vector<32x128xf32> -> vector<32x128xf32>
    %87 = arith.addf %82, %86 : vector<32x128xf32>
    %c8_75 = arith.constant 8 : index
    %c0_76 = arith.constant 0 : index
    %88 = vector.load %arg11[%c8_75, %c0_76] : memref<56x128xf32, #tpu.memory_space<vmem>>, vector<32x128xf32>
    %c3_77 = arith.constant 3 : index
    %c0_78 = arith.constant 0 : index
    %c0_79 = arith.constant 0 : index
    %89 = vector.load %arg6[%c3_77, %c0_78, %c0_79] : memref<9x128x128xf32, #tpu.memory_space<vmem>>, vector<1x128x128xf32>
    %90 = vector.shape_cast %89 : vector<1x128x128xf32> to vector<128x128xf32>
    %cst_80 = arith.constant dense<0.000000e+00> : vector<32x128xf32>
    %91 = tpu.matmul %88, %90, %cst_80 {dimension_numbers = #tpu.dot_dimension_numbers<[1], [0], [0], [1], [0, 0, 1, 1], [], []>} : vector<32x128xf32>, vector<128x128xf32>, vector<32x128xf32> -> vector<32x128xf32>
    %92 = arith.addf %87, %91 : vector<32x128xf32>
    %c9_81 = arith.constant 9 : index
    %c0_82 = arith.constant 0 : index
    %93 = vector.load %arg11[%c9_81, %c0_82] : memref<56x128xf32, #tpu.memory_space<vmem>>, vector<32x128xf32>
    %c4_83 = arith.constant 4 : index
    %c0_84 = arith.constant 0 : index
    %c0_85 = arith.constant 0 : index
    %94 = vector.load %arg6[%c4_83, %c0_84, %c0_85] : memref<9x128x128xf32, #tpu.memory_space<vmem>>, vector<1x128x128xf32>
    %95 = vector.shape_cast %94 : vector<1x128x128xf32> to vector<128x128xf32>
    %cst_86 = arith.constant dense<0.000000e+00> : vector<32x128xf32>
    %96 = tpu.matmul %93, %95, %cst_86 {dimension_numbers = #tpu.dot_dimension_numbers<[1], [0], [0], [1], [0, 0, 1, 1], [], []>} : vector<32x128xf32>, vector<128x128xf32>, vector<32x128xf32> -> vector<32x128xf32>
    %97 = arith.addf %92, %96 : vector<32x128xf32>
    %c10_87 = arith.constant 10 : index
    %c0_88 = arith.constant 0 : index
    %98 = vector.load %arg11[%c10_87, %c0_88] : memref<56x128xf32, #tpu.memory_space<vmem>>, vector<32x128xf32>
    %c5_89 = arith.constant 5 : index
    %c0_90 = arith.constant 0 : index
    %c0_91 = arith.constant 0 : index
    %99 = vector.load %arg6[%c5_89, %c0_90, %c0_91] : memref<9x128x128xf32, #tpu.memory_space<vmem>>, vector<1x128x128xf32>
    %100 = vector.shape_cast %99 : vector<1x128x128xf32> to vector<128x128xf32>
    %cst_92 = arith.constant dense<0.000000e+00> : vector<32x128xf32>
    %101 = tpu.matmul %98, %100, %cst_92 {dimension_numbers = #tpu.dot_dimension_numbers<[1], [0], [0], [1], [0, 0, 1, 1], [], []>} : vector<32x128xf32>, vector<128x128xf32>, vector<32x128xf32> -> vector<32x128xf32>
    %102 = arith.addf %97, %101 : vector<32x128xf32>
    %c16_93 = arith.constant 16 : index
    %c0_94 = arith.constant 0 : index
    %103 = vector.load %arg11[%c16_93, %c0_94] : memref<56x128xf32, #tpu.memory_space<vmem>>, vector<32x128xf32>
    %c6_95 = arith.constant 6 : index
    %c0_96 = arith.constant 0 : index
    %c0_97 = arith.constant 0 : index
    %104 = vector.load %arg6[%c6_95, %c0_96, %c0_97] : memref<9x128x128xf32, #tpu.memory_space<vmem>>, vector<1x128x128xf32>
    %105 = vector.shape_cast %104 : vector<1x128x128xf32> to vector<128x128xf32>
    %cst_98 = arith.constant dense<0.000000e+00> : vector<32x128xf32>
    %106 = tpu.matmul %103, %105, %cst_98 {dimension_numbers = #tpu.dot_dimension_numbers<[1], [0], [0], [1], [0, 0, 1, 1], [], []>} : vector<32x128xf32>, vector<128x128xf32>, vector<32x128xf32> -> vector<32x128xf32>
    %107 = arith.addf %102, %106 : vector<32x128xf32>
    %c17_99 = arith.constant 17 : index
    %c0_100 = arith.constant 0 : index
    %108 = vector.load %arg11[%c17_99, %c0_100] : memref<56x128xf32, #tpu.memory_space<vmem>>, vector<32x128xf32>
    %c7_101 = arith.constant 7 : index
    %c0_102 = arith.constant 0 : index
    %c0_103 = arith.constant 0 : index
    %109 = vector.load %arg6[%c7_101, %c0_102, %c0_103] : memref<9x128x128xf32, #tpu.memory_space<vmem>>, vector<1x128x128xf32>
    %110 = vector.shape_cast %109 : vector<1x128x128xf32> to vector<128x128xf32>
    %cst_104 = arith.constant dense<0.000000e+00> : vector<32x128xf32>
    %111 = tpu.matmul %108, %110, %cst_104 {dimension_numbers = #tpu.dot_dimension_numbers<[1], [0], [0], [1], [0, 0, 1, 1], [], []>} : vector<32x128xf32>, vector<128x128xf32>, vector<32x128xf32> -> vector<32x128xf32>
    %112 = arith.addf %107, %111 : vector<32x128xf32>
    %c18_105 = arith.constant 18 : index
    %c0_106 = arith.constant 0 : index
    %113 = vector.load %arg11[%c18_105, %c0_106] : memref<56x128xf32, #tpu.memory_space<vmem>>, vector<32x128xf32>
    %c8_107 = arith.constant 8 : index
    %c0_108 = arith.constant 0 : index
    %c0_109 = arith.constant 0 : index
    %114 = vector.load %arg6[%c8_107, %c0_108, %c0_109] : memref<9x128x128xf32, #tpu.memory_space<vmem>>, vector<1x128x128xf32>
    %115 = vector.shape_cast %114 : vector<1x128x128xf32> to vector<128x128xf32>
    %cst_110 = arith.constant dense<0.000000e+00> : vector<32x128xf32>
    %116 = tpu.matmul %113, %115, %cst_110 {dimension_numbers = #tpu.dot_dimension_numbers<[1], [0], [0], [1], [0, 0, 1, 1], [], []>} : vector<32x128xf32>, vector<128x128xf32>, vector<32x128xf32> -> vector<32x128xf32>
    %117 = arith.addf %112, %116 : vector<32x128xf32>
    %c0_111 = arith.constant 0 : index
    %c0_112 = arith.constant 0 : index
    %118 = vector.load %arg7[%c0_111, %c0_112] : memref<1x128xf32, #tpu.memory_space<vmem>>, vector<1x128xf32>
    %119 = vector.broadcast %118 : vector<1x128xf32> to vector<32x128xf32>
    %120 = arith.mulf %117, %119 : vector<32x128xf32>
    %c0_113 = arith.constant 0 : index
    %c0_114 = arith.constant 0 : index
    %121 = vector.load %arg8[%c0_113, %c0_114] : memref<1x128xf32, #tpu.memory_space<vmem>>, vector<1x128xf32>
    %122 = vector.broadcast %121 : vector<1x128xf32> to vector<32x128xf32>
    %123 = arith.addf %120, %122 : vector<32x128xf32>
    %cst_115 = arith.constant 0.000000e+00 : f32
    %124 = vector.broadcast %cst_115 : f32 to vector<32x128xf32>
    %125 = arith.maximumf %123, %124 : vector<32x128xf32>
    %126 = vector.shape_cast %125 : vector<32x128xf32> to vector<4x8x128xf32>
    %127 = vector.extract_strided_slice %126 {offsets = [0, 0, 0], sizes = [4, 4, 128], strides = [1, 1, 1]} : vector<4x8x128xf32> to vector<4x4x128xf32>
    %128 = vector.shape_cast %127 : vector<4x4x128xf32> to vector<1x4x4x128xf32>
    %c0_116 = arith.constant 0 : index
    %c0_117 = arith.constant 0 : index
    %c0_118 = arith.constant 0 : index
    %c0_119 = arith.constant 0 : index
    %129 = vector.load %arg9[%c0_116, %c0_117, %c0_118, %c0_119] : memref<1x4x4x128xf32, #tpu.memory_space<vmem>>, vector<1x4x4x128xf32>
    tpu.vector_store %arg9[%c0_116, %c0_117, %c0_118, %c0_119], %128 {strides = array<i32>} : memref<1x4x4x128xf32, #tpu.memory_space<vmem>>, vector<1x4x4x128xf32>,
    return
  }
  func.func @transform_0(%arg0: i32, %arg1: i32) -> (i32, i32, i32, i32) {
    %c0_i32 = arith.constant 0 : i32
    %c0_i32_0 = arith.constant 0 : i32
    %c0_i32_1 = arith.constant 0 : i32
    %c0_i32_2 = arith.constant 0 : i32
    return %arg0, %c0_i32, %c0_i32_0, %c0_i32_1 : i32, i32, i32, i32
  }
  func.func @transform_1(%arg0: i32, %arg1: i32) -> (i32, i32, i32) {
    %c0_i32 = arith.constant 0 : i32
    %c0_i32_0 = arith.constant 0 : i32
    %c0_i32_1 = arith.constant 0 : i32
    %c0_i32_2 = arith.constant 0 : i32
    return %c0_i32, %c0_i32_0, %c0_i32_1 : i32, i32, i32
  }
  func.func @transform_2(%arg0: i32, %arg1: i32) -> (i32, i32) {
    %c0_i32 = arith.constant 0 : i32
    %c0_i32_0 = arith.constant 0 : i32
    %c0_i32_1 = arith.constant 0 : i32
    return %c0_i32, %c0_i32_0 : i32, i32
  }
  func.func @transform_3(%arg0: i32, %arg1: i32) -> (i32, i32) {
    %c0_i32 = arith.constant 0 : i32
    %c0_i32_0 = arith.constant 0 : i32
    %c0_i32_1 = arith.constant 0 : i32
    return %c0_i32, %c0_i32_0 : i32, i32
  }
  func.func @transform_4(%arg0: i32, %arg1: i32) -> (i32, i32, i32) {
    %c0_i32 = arith.constant 0 : i32
    %c0_i32_0 = arith.constant 0 : i32
    %c0_i32_1 = arith.constant 0 : i32
    %c0_i32_2 = arith.constant 0 : i32
    return %c0_i32, %c0_i32_0, %c0_i32_1 : i32, i32, i32
  }
  func.func @transform_5(%arg0: i32, %arg1: i32) -> (i32, i32) {
    %c0_i32 = arith.constant 0 : i32
    %c0_i32_0 = arith.constant 0 : i32
    %c0_i32_1 = arith.constant 0 : i32
    return %c0_i32, %c0_i32_0 : i32, i32
  }
  func.func @transform_6(%arg0: i32, %arg1: i32) -> (i32, i32) {
    %c0_i32 = arith.constant 0 : i32
    %c0_i32_0 = arith.constant 0 : i32
    %c0_i32_1 = arith.constant 0 : i32
    return %c0_i32, %c0_i32_0 : i32, i32
  }
  func.func @transform_7(%arg0: i32, %arg1: i32) -> (i32, i32, i32, i32) {
    %c0_i32 = arith.constant 0 : i32
    %c0_i32_0 = arith.constant 0 : i32
    %c0_i32_1 = arith.constant 0 : i32
    return %arg0, %arg1, %c0_i32, %c0_i32_0 : i32, i32, i32, i32
  }
}

</mosaic_0001>

<llo_original>
// kernel: tpu_custom_call.1
$region0: #{tpu_custom_call.1}
  #allocation0 [shape = 'u32[]', space=smem, size = 0x4, offset = 0x4, fixed_abs, tag = 'smem constant byte address 0x4 - core index']
  #allocation1 [shape = 'u32[144,128]{1,0:T(1,128)}', space=vmem, size = 0x12000, scoped, tag = 'internal scratch']
  #allocation2 [shape = 'f32[72,4]{1,0:T(8,128)}', space=vmem, size = 0x9000, scoped, tag = 'scratch operand']
  #allocation3 [shape = 'f32[56,128]{1,0:T(8,128)}', space=vmem, size = 0x7000, scoped, tag = 'scratch operand']
  %s0 = inlined_call_operand.hbm [shape: f32[2,8,8,16], index: 0, kind: input, shape index: {}]
  %s1 = inlined_call_operand.hbm [shape: f32[9,4,128], index: 1, kind: input, shape index: {}]
  %s2 = inlined_call_operand.vmem [shape: f32[1,128], index: 2, kind: input, shape index: {}]
  %s3 = inlined_call_operand.vmem [shape: f32[1,128], index: 3, kind: input, shape index: {}]
  %s4 = inlined_call_operand.hbm [shape: f32[9,128,128], index: 4, kind: input, shape index: {}]
  %s5 = inlined_call_operand.vmem [shape: f32[1,128], index: 5, kind: input, shape index: {}]
  %s6 = inlined_call_operand.vmem [shape: f32[1,128], index: 6, kind: input, shape index: {}]
  %s7 = inlined_call_operand.hbm [shape: f32[2,4,4,128], index: 7, kind: output, shape index: {}]
  %s8 = sld [smem:[#allocation0]]
  $region73: #{tpu_custom_call.1} parent=0
    _
  %s10 = ssub.s32 1, %s8
  %s11 = scalar_select 0, %s10, %s8
  $region1: #{tpu_custom_call.1} parent=0
    #allocation4 [shape = 'u8[65536]{0}', space=vmem, size = 0x10000, scoped, tag = 'input window, operand 0']
    #allocation5 [shape = 's32[2]{0}', space=sflag, size = 0x8, scoped, tag = 'scoped memory for tpu_custom_call.1']
    #allocation6 [shape = 's32[2]{0}', space=sflag, size = 0x8, scoped, tag = 'scoped memory for tpu_custom_call.1']
    #allocation7 [shape = 'u8[18432]{0}', space=vmem, size = 0x4800, scoped, tag = 'input window, operand 1, single buffered']
    #allocation8 [shape = 's32[1]{0}', space=sflag, size = 0x4, scoped, tag = 'scoped memory for tpu_custom_call.1']
    #allocation9 [shape = 'u8[589824]{0}', space=vmem, size = 0x90000, scoped, tag = 'input window, operand 4, single buffered']
    #allocation10 [shape = 'u8[16384]{0}', space=vmem, size = 0x4000, scoped, tag = 'output window, operand 0']
    %12 = vsyncpa [#allocation5], 0
    %s13 = scalar_lea.sflag [#allocation5], 1
    %14 = vsyncpa %s13, 0
    %15 = vsyncpa [#allocation8], 0
    %16 = vsyncpa [#allocation6], 0
    %s17 = scalar_lea.sflag [#allocation6], 1
    %18 = vsyncpa %s17, 0
    loop: start=0, step=1, limit=4
    $region2: #{tpu_custom_call.1} parent=1 // loop_pre_header
      _
    $region3: #{tpu_custom_call.1} parent=1 // loop_header
      %s20 = sphi 0, %s24
      %p21 = scmp.ge.s32.totalorder %s20, 4
      %s27 = sphi 0, %s39
      %s28 = sphi 0, %s35
      %s29 = sphi 0, %s27
      %s30 = sphi 0, %s28
      %s31 = sphi 0, %s29
      %s32 = sphi 0, %s30
      %s42 = sphi 0, %s44
      %s45 = sphi 0, %s42
      %s46 = sphi 0, %s45
      %s62 = sphi 0, %s46
      %s66 = sphi 0, %s66
      %s68 = sphi 0, %s66
      %s69 = sphi 0, %s68
      %s83 = sphi 0, %s69
      %s87 = sphi 0, %s87
      %s89 = sphi 0, %s87
      %s90 = sphi 0, %s89
      %s104 = sphi 0, %s90
      %s108 = sphi 0, %s108
      %s110 = sphi 0, %s108
      %s111 = sphi 0, %s110
      %s125 = sphi 0, %s111
      %s129 = sphi 0, %s129
      %s131 = sphi 0, %s129
      %s132 = sphi 0, %s131
      %s146 = sphi 0, %s132
      %s150 = sphi 0, %s150
      %s152 = sphi 0, %s150
      %s153 = sphi 0, %s152
      %s167 = sphi 0, %s153
      %s171 = sphi 0, %s171
      %s173 = sphi 0, %s171
      %s174 = sphi 0, %s173
      %s188 = sphi 0, %s174
      %s196 = sphi 0, %s198
      %s199 = sphi 0, %s196
      %s200 = sphi 0, %s199
      %s216 = sphi 0, %s200
    $region4: #{tpu_custom_call.1} parent=1 // loop_header_branch
      %23 = sbr.rel (%p21) target = $region8
    $region5: #{tpu_custom_call.1} parent=1 // loop_body
      %s25 = ssub.s32 %s20, 1
      %s26 = ssub.s32 %s20, 2
      %s33 = sadd.s32 1, %s28
      %p34 = scmp.ge.s32.totalorder %s33, 1
      %s35 = scalar_select %p34, 0, %s33
      %s36 = sadd.s32 1, %s27
      %s37 = scalar_select %p34, %s36, %s27
      %p38 = scmp.ge.s32.totalorder %s37, 2
      %s39 = scalar_select %p38, 0, %s37
      %s40 = ssub.s32 %s27, %s39
      %p41 = scmp.eq.s32.totalorder %s40, 0
      %s43 = sadd.s32 %s42, 1
      %s44 = scalar_select %p41, %s42, %s43
      %p47 = pneg %p41
      %p48 = scmp.eq.s32.totalorder %s20, 1
      %p49 = por %p47, %p48
      %p50 = scmp.ne.s32.totalorder %s42, %s45
      %p51 = scmp.eq.s32.totalorder %s20, 0
      %p52 = por %p50, %p51
      %p53 = scmp.ne.s32.totalorder %s42, %s45
      %p54 = scmp.eq.s32.totalorder %s25, 1
      %p55 = por %p53, %p54
      %p56 = scmp.ne.s32.totalorder %s45, %s46
      %p57 = scmp.eq.s32.totalorder %s25, 0
      %p58 = por %p56, %p57
      %p59 = scmp.ne.s32.totalorder %s45, %s46
      %p60 = scmp.eq.s32.totalorder %s26, 1
      %p61 = por %p59, %p60
      %p63 = scmp.ne.s32.totalorder %s46, %s62
      %p64 = scmp.eq.s32.totalorder %s26, 0
      %p65 = por %p63, %p64
      %s67 = sadd.s32 %s66, 1
      %p70 = scmp.eq.s32.totalorder %s20, 1
      %p71 = scmp.ne.s32.totalorder %s66, %s68
      %p72 = scmp.eq.s32.totalorder %s20, 0
      %p73 = por %p71, %p72
      %p74 = scmp.ne.s32.totalorder %s66, %s68
      %p75 = scmp.eq.s32.totalorder %s25, 1
      %p76 = por %p74, %p75
      %p77 = scmp.ne.s32.totalorder %s68, %s69
      %p78 = scmp.eq.s32.totalorder %s25, 0
      %p79 = por %p77, %p78
      %p80 = scmp.ne.s32.totalorder %s68, %s69
      %p81 = scmp.eq.s32.totalorder %s26, 1
      %p82 = por %p80, %p81
      %p84 = scmp.ne.s32.totalorder %s69, %s83
      %p85 = scmp.eq.s32.totalorder %s26, 0
      %p86 = por %p84, %p85
      %s88 = sadd.s32 %s87, 1
      %p91 = scmp.eq.s32.totalorder %s20, 1
      %p92 = scmp.ne.s32.totalorder %s87, %s89
      %p93 = scmp.eq.s32.totalorder %s20, 0
      %p94 = por %p92, %p93
      %p95 = scmp.ne.s32.totalorder %s87, %s89
      %p96 = scmp.eq.s32.totalorder %s25, 1
      %p97 = por %p95, %p96
      %p98 = scmp.ne.s32.totalorder %s89, %s90
      %p99 = scmp.eq.s32.totalorder %s25, 0
      %p100 = por %p98, %p99
      %p101 = scmp.ne.s32.totalorder %s89, %s90
      %p102 = scmp.eq.s32.totalorder %s26, 1
      %p103 = por %p101, %p102
      %p105 = scmp.ne.s32.totalorder %s90, %s104
      %p106 = scmp.eq.s32.totalorder %s26, 0
      %p107 = por %p105, %p106
      %s109 = sadd.s32 %s108, 1
      %p112 = scmp.eq.s32.totalorder %s20, 1
      %p113 = scmp.ne.s32.totalorder %s108, %s110
      %p114 = scmp.eq.s32.totalorder %s20, 0
      %p115 = por %p113, %p114
      %p116 = scmp.ne.s32.totalorder %s108, %s110
      %p117 = scmp.eq.s32.totalorder %s25, 1
      %p118 = por %p116, %p117
      %p119 = scmp.ne.s32.totalorder %s110, %s111
      %p120 = scmp.eq.s32.totalorder %s25, 0
      %p121 = por %p119, %p120
      %p122 = scmp.ne.s32.totalorder %s110, %s111
      %p123 = scmp.eq.s32.totalorder %s26, 1
      %p124 = por %p122, %p123
      %p126 = scmp.ne.s32.totalorder %s111, %s125
      %p127 = scmp.eq.s32.totalorder %s26, 0
      %p128 = por %p126, %p127
      %s130 = sadd.s32 %s129, 1
      %p133 = scmp.eq.s32.totalorder %s20, 1
      %p134 = scmp.ne.s32.totalorder %s129, %s131
      %p135 = scmp.eq.s32.totalorder %s20, 0
      %p136 = por %p134, %p135
      %p137 = scmp.ne.s32.totalorder %s129, %s131
      %p138 = scmp.eq.s32.totalorder %s25, 1
      %p139 = por %p137, %p138
      %p140 = scmp.ne.s32.totalorder %s131, %s132
      %p141 = scmp.eq.s32.totalorder %s25, 0
      %p142 = por %p140, %p141
      %p143 = scmp.ne.s32.totalorder %s131, %s132
      %p144 = scmp.eq.s32.totalorder %s26, 1
      %p145 = por %p143, %p144
      %p147 = scmp.ne.s32.totalorder %s132, %s146
      %p148 = scmp.eq.s32.totalorder %s26, 0
      %p149 = por %p147, %p148
      %s151 = sadd.s32 %s150, 1
      %p154 = scmp.eq.s32.totalorder %s20, 1
      %p155 = scmp.ne.s32.totalorder %s150, %s152
      %p156 = scmp.eq.s32.totalorder %s20, 0
      %p157 = por %p155, %p156
      %p158 = scmp.ne.s32.totalorder %s150, %s152
      %p159 = scmp.eq.s32.totalorder %s25, 1
      %p160 = por %p158, %p159
      %p161 = scmp.ne.s32.totalorder %s152, %s153
      %p162 = scmp.eq.s32.totalorder %s25, 0
      %p163 = por %p161, %p162
      %p164 = scmp.ne.s32.totalorder %s152, %s153
      %p165 = scmp.eq.s32.totalorder %s26, 1
      %p166 = por %p164, %p165
      %p168 = scmp.ne.s32.totalorder %s153, %s167
      %p169 = scmp.eq.s32.totalorder %s26, 0
      %p170 = por %p168, %p169
      %s172 = sadd.s32 %s171, 1
      %p175 = scmp.eq.s32.totalorder %s20, 1
      %p176 = scmp.ne.s32.totalorder %s171, %s173
      %p177 = scmp.eq.s32.totalorder %s20, 0
      %p178 = por %p176, %p177
      %p179 = scmp.ne.s32.totalorder %s171, %s173
      %p180 = scmp.eq.s32.totalorder %s25, 1
      %p181 = por %p179, %p180
      %p182 = scmp.ne.s32.totalorder %s173, %s174
      %p183 = scmp.eq.s32.totalorder %s25, 0
      %p184 = por %p182, %p183
      %p185 = scmp.ne.s32.totalorder %s173, %s174
      %p186 = scmp.eq.s32.totalorder %s26, 1
      %p187 = por %p185, %p186
      %p189 = scmp.ne.s32.totalorder %s174, %s188
      %p190 = scmp.eq.s32.totalorder %s26, 0
      %p191 = por %p189, %p190
      %s192 = ssub.s32 %s27, %s39
      %s193 = ssub.s32 %s28, %s35
      %s194 = sor.u32 %s192, %s193
      %p195 = scmp.eq.s32.totalorder %s194, 0
      %s197 = sadd.s32 %s196, 1
      %s198 = scalar_select %p195, %s196, %s197
      %p201 = pneg %p195
      %p202 = scmp.eq.s32.totalorder %s20, 1
      %p203 = por %p201, %p202
      %p204 = scmp.ne.s32.totalorder %s196, %s199
      %p205 = scmp.eq.s32.totalorder %s20, 0
      %p206 = por %p204, %p205
      %p207 = scmp.ne.s32.totalorder %s196, %s199
      %p208 = scmp.eq.s32.totalorder %s25, 1
      %p209 = por %p207, %p208
      %p210 = scmp.ne.s32.totalorder %s199, %s200
      %p211 = scmp.eq.s32.totalorder %s25, 0
      %p212 = por %p210, %p211
      %p213 = scmp.ne.s32.totalorder %s199, %s200
      %p214 = scmp.eq.s32.totalorder %s26, 1
      %p215 = por %p213, %p214
      %p217 = scmp.ne.s32.totalorder %s200, %s216
      %p218 = scmp.eq.s32.totalorder %s26, 0
      %p219 = por %p217, %p218
      %p220 = scmp.le.s32.totalorder 1, %s20
      %p221 = scmp.lt.s32.totalorder %s20, 3
      %p222 = pnand %p220, %p221
      %p223 = pneg %p222
      // Predicated region
      $region9: #{tpu_custom_call.1} parent=5 // pred_check
        _
      $region10: #{tpu_custom_call.1} parent=5 // pred_check_branch
        %225 = sbr.rel (%p222) target = $region12
      $region11: #{tpu_custom_call.1} parent=5 // pred_region
        %s226 = ssub.s32 %s20, 1
        // Predicated region
        $region13: #{tpu_custom_call.1} parent=11 // pred_check
          %p227 = pneg %p79
        $region14: #{tpu_custom_call.1} parent=11 // pred_check_branch
          %229 = sbr.rel (%p227) target = $region16
        $region15: #{tpu_custom_call.1} parent=11 // pred_region
          %s231 = ssub.s32 576, 576
          %232 = vsyncadd [#allocation8], %s231
          %s233 = sshll.u32 [#allocation7], 4
          %s234 = int_to_ptr.vmem [resolvable:$true] %s233
          %239 = dma.hbm_to_vmem [thread:$0]  %s1, 576, %s234, [#allocation8], 64, 64, 4
        $region16: #{tpu_custom_call.1} parent=11 // pred_fallthru
          _
        // Predicated region
        $region17: #{tpu_custom_call.1} parent=11 // pred_check
          %p240 = pneg %p100
        $region18: #{tpu_custom_call.1} parent=11 // pred_check_branch
          %242 = sbr.rel (%p240) target = $region20
        $region19: #{tpu_custom_call.1} parent=11 // pred_region
          _
        $region20: #{tpu_custom_call.1} parent=11 // pred_fallthru
          _
        // Predicated region
        $region21: #{tpu_custom_call.1} parent=11 // pred_check
          %p243 = pneg %p121
        $region22: #{tpu_custom_call.1} parent=11 // pred_check_branch
          %245 = sbr.rel (%p243) target = $region24
        $region23: #{tpu_custom_call.1} parent=11 // pred_region
          _
        $region24: #{tpu_custom_call.1} parent=11 // pred_fallthru
          _
        // Predicated region
        $region25: #{tpu_custom_call.1} parent=11 // pred_check
          %p246 = pneg %p142
        $region26: #{tpu_custom_call.1} parent=11 // pred_check_branch
          %248 = sbr.rel (%p246) target = $region28
        $region27: #{tpu_custom_call.1} parent=11 // pred_region
          %s250 = ssub.s32 18432, 18432
          %251 = vsyncadd [#allocation8], %s250
          %s252 = sshll.u32 [#allocation9], 4
          %s253 = int_to_ptr.vmem [resolvable:$true] %s252
          %258 = dma.hbm_to_vmem [thread:$0]  %s4, 18432, %s253, [#allocation8], 128, 128, 8
        $region28: #{tpu_custom_call.1} parent=11 // pred_fallthru
          _
        // Predicated region
        $region29: #{tpu_custom_call.1} parent=11 // pred_check
          %p259 = pneg %p163
        $region30: #{tpu_custom_call.1} parent=11 // pred_check_branch
          %261 = sbr.rel (%p259) target = $region32
        $region31: #{tpu_custom_call.1} parent=11 // pred_region
          _
        $region32: #{tpu_custom_call.1} parent=11 // pred_fallthru
          _
        // Predicated region
        $region33: #{tpu_custom_call.1} parent=11 // pred_check
          %p262 = pneg %p184
        $region34: #{tpu_custom_call.1} parent=11 // pred_check_branch
          %264 = sbr.rel (%p262) target = $region36
        $region35: #{tpu_custom_call.1} parent=11 // pred_region
          _
        $region36: #{tpu_custom_call.1} parent=11 // pred_fallthru
          _
      $region12: #{tpu_custom_call.1} parent=5 // pred_fallthru
        _
      %p265 = scmp.lt.s32.totalorder %s20, 2
      // Predicated region
      $region37: #{tpu_custom_call.1} parent=5 // pred_check
        %p266 = pneg %p265
      $region38: #{tpu_custom_call.1} parent=5 // pred_check_branch
        %268 = sbr.rel (%p266) target = $region40
      $region39: #{tpu_custom_call.1} parent=5 // pred_region
        // Predicated region
        $region41: #{tpu_custom_call.1} parent=39 // pred_check
          %p269 = pneg %p52
        $region42: #{tpu_custom_call.1} parent=39 // pred_check_branch
          %271 = sbr.rel (%p269) target = $region44
        $region43: #{tpu_custom_call.1} parent=39 // pred_region
          %s272 = sand.u32 %s42, 1
          %s273 = scalar_lea.sflag [#allocation5], %s272
          %s274 = sand.u32 %s42, 1
          %s275 = smul.addr %s274, 64
          %s276 = scalar_lea.vmem [#allocation4], %s275
          %s278 = ssub.s32 1024, 1024
          %279 = vsyncadd %s273, %s278
          %s280 = smul.addr %s27, 8
          %s281 = smul.addr %s280, 128
          %s282 = scalar_lea.hbm %s0, %s281
          %s283 = sshll.u32 %s276, 4
          %s284 = int_to_ptr.vmem [resolvable:$true] %s283
          %289 = dma.hbm_to_vmem [thread:$0]  %s282, 1024, %s284, %s273, 128, 128, 8
        $region44: #{tpu_custom_call.1} parent=39 // pred_fallthru
          _
      $region40: #{tpu_custom_call.1} parent=5 // pred_fallthru
        _
      %p290 = scmp.le.s32.totalorder 1, %s20
      %p291 = scmp.lt.s32.totalorder %s20, 3
      %p292 = pnand %p290, %p291
      %p293 = pneg %p292
      // Predicated region
      $region45: #{tpu_custom_call.1} parent=5 // pred_check
        _
      $region46: #{tpu_custom_call.1} parent=5 // pred_check_branch
        %295 = sbr.rel (%p292) target = $region48
      $region47: #{tpu_custom_call.1} parent=5 // pred_region
        %s296 = ssub.s32 %s20, 1
        %s297 = sand.u32 %s45, 1
        %s298 = scalar_lea.sflag [#allocation5], %s297
        %s299 = sand.u32 %s45, 1
        %s300 = smul.addr %s299, 64
        %s301 = scalar_lea.vmem [#allocation4], %s300
        // Predicated region
        $region49: #{tpu_custom_call.1} parent=47 // pred_check
          %p302 = pneg %p58
        $region50: #{tpu_custom_call.1} parent=47 // pred_check_branch
          %304 = sbr.rel (%p302) target = $region52
        $region51: #{tpu_custom_call.1} parent=47 // pred_region
          %305 = dma.done %s298, 1024
        $region52: #{tpu_custom_call.1} parent=47 // pred_fallthru
          _
        // Predicated region
        $region53: #{tpu_custom_call.1} parent=47 // pred_check
          %p306 = pneg %p79
        $region54: #{tpu_custom_call.1} parent=47 // pred_check_branch
          %308 = sbr.rel (%p306) target = $region56
        $region55: #{tpu_custom_call.1} parent=47 // pred_region
          %309 = dma.done [#allocation8], 576
        $region56: #{tpu_custom_call.1} parent=47 // pred_fallthru
          _
        // Predicated region
        $region57: #{tpu_custom_call.1} parent=47 // pred_check
          %p310 = pneg %p142
        $region58: #{tpu_custom_call.1} parent=47 // pred_check_branch
          %312 = sbr.rel (%p310) target = $region60
        $region59: #{tpu_custom_call.1} parent=47 // pred_region
          %313 = dma.done [#allocation8], 18432
        $region60: #{tpu_custom_call.1} parent=47 // pred_fallthru
          _
        %s314 = sand.u32 %s45, 1
        %s315 = scalar_lea.sflag [#allocation5], %s314
        %s316 = sand.u32 %s45, 1
        %s317 = smul.addr %s316, 64
        %s318 = scalar_lea.vmem [#allocation4], %s317
        %p319 = pneg %p58
        %p320 = pneg %p55
        %p321 = pneg %p79
        %p322 = pneg %p76
        %p323 = pneg %p100
        %p324 = pneg %p97
        %p325 = pneg %p121
        %p326 = pneg %p118
        %p327 = pneg %p142
        %p328 = pneg %p139
        %p329 = pneg %p163
        %p330 = pneg %p160
        %p331 = pneg %p184
        %p332 = pneg %p181
        %p333 = pneg %p212
        %p334 = pneg %p209
        %s335 = sand.u32 %s199, 1
        %s336 = scalar_lea.sflag [#allocation6], %s335
        %s337 = sand.u32 %s199, 1
        %s338 = smul.addr %s337, 16
        %s339 = scalar_lea.vmem [#allocation10], %s338
        %s340 = smul.u32 4, %s30
        %s341 = smul.u32 %s30, 4
        %s342 = smul.u32 %s341, 8
        %s343 = scalar_lea.vmem %s301, %s342 [#allocation4]
        %v344 = vld [vmem:[%s343] sm:$0xff]
        %v345 = vld [vmem:[%s343 + $0x8] sm:$0xff]
        %v346 = vld [vmem:[%s343 + $0x10] sm:$0xff]
        %v347 = vld [vmem:[%s343 + $0x18] sm:$0xff]
        %v348 = vld [vmem:[%s343 + $0x20] sm:$0xff]
        %v349 = vld [vmem:[%s343 + $0x28] sm:$0xff]
        %v350 = vld [vmem:[%s343 + $0x30] sm:$0xff]
        %v351 = vld [vmem:[%s343 + $0x38] sm:$0xff]
        %360 = vrot.lane.b32.xlu0 %v344, 124
        %v361 = vpop.permute.xlu0 %360
        %362 = vrot.lane.b32.xlu0 %v345, 124
        %v363 = vpop.permute.xlu0 %362
        %364 = vrot.lane.b32.xlu0 %v346, 124
        %v365 = vpop.permute.xlu0 %364
        %366 = vrot.lane.b32.xlu0 %v347, 124
        %v367 = vpop.permute.xlu0 %366
        %368 = vrot.lane.b32.xlu0 %v348, 124
        %v369 = vpop.permute.xlu0 %368
        %370 = vrot.lane.b32.xlu0 %v349, 124
        %v371 = vpop.permute.xlu0 %370
        %372 = vrot.lane.b32.xlu0 %v350, 124
        %v373 = vpop.permute.xlu0 %372
        %374 = vrot.lane.b32.xlu0 %v351, 124
        %v375 = vpop.permute.xlu0 %374
        %v384 = vmax.f32 %v344, %v361
        %v385 = vmax.f32 %v345, %v363
        %v386 = vmax.f32 %v346, %v365
        %v387 = vmax.f32 %v347, %v367
        %v388 = vmax.f32 %v348, %v369
        %v389 = vmax.f32 %v349, %v371
        %v390 = vmax.f32 %v350, %v373
        %v391 = vmax.f32 %v351, %v375
        %400 = vrot.lane.b32.xlu0 %v384, 120
        %v401 = vpop.permute.xlu0 %400
        %402 = vrot.lane.b32.xlu0 %v385, 120
        %v403 = vpop.permute.xlu0 %402
        %404 = vrot.lane.b32.xlu0 %v386, 120
        %v405 = vpop.permute.xlu0 %404
        %406 = vrot.lane.b32.xlu0 %v387, 120
        %v407 = vpop.permute.xlu0 %406
        %408 = vrot.lane.b32.xlu0 %v388, 120
        %v409 = vpop.permute.xlu0 %408
        %410 = vrot.lane.b32.xlu0 %v389, 120
        %v411 = vpop.permute.xlu0 %410
        %412 = vrot.lane.b32.xlu0 %v390, 120
        %v413 = vpop.permute.xlu0 %412
        %414 = vrot.lane.b32.xlu0 %v391, 120
        %v415 = vpop.permute.xlu0 %414
        %v424 = vmax.f32 %v384, %v401
        %v425 = vmax.f32 %v385, %v403
        %v426 = vmax.f32 %v386, %v405
        %v427 = vmax.f32 %v387, %v407
        %v428 = vmax.f32 %v388, %v409
        %v429 = vmax.f32 %v389, %v411
        %v430 = vmax.f32 %v390, %v413
        %v431 = vmax.f32 %v391, %v415
        %vm432 = vcmask 31744
        %433 = vst.msk [vmem:[#allocation2] sm:$0xff] %vm432, %v424
        %434 = vst.msk [vmem:[#allocation2 + $0x8] sm:$0xff] %vm432, %v425
        %435 = vst.msk [vmem:[#allocation2 + $0x10] sm:$0xff] %vm432, %v426
        %436 = vst.msk [vmem:[#allocation2 + $0x18] sm:$0xff] %vm432, %v427
        %437 = vst.msk [vmem:[#allocation2 + $0x20] sm:$0xff] %vm432, %v428
        %438 = vst.msk [vmem:[#allocation2 + $0x28] sm:$0xff] %vm432, %v429
        %439 = vst.msk [vmem:[#allocation2 + $0x30] sm:$0xff] %vm432, %v430
        %440 = vst.msk [vmem:[#allocation2 + $0x38] sm:$0xff] %vm432, %v431
        %441 = vst.msk [vmem:[#allocation2 + $0x40] sm:$0xff] %vm432, 0.0
        %v442 = vld [vmem:[#allocation2] sm:$0xff]
        %v443 = vld [vmem:[#allocation2 + $0x8] sm:$0xff]
        %v444 = vld [vmem:[#allocation2 + $0x10] sm:$0xff]
        %v445 = vld [vmem:[#allocation2 + $0x18] sm:$0xff]
        %v446 = vld [vmem:[#allocation2 + $0x20] sm:$0xff]
        %v447 = vld [vmem:[#allocation2 + $0x28] sm:$0xff]
        %v448 = vld [vmem:[#allocation7] sm:$0xf]
        %v449 = vld [vmem:[#allocation2 + $0x1] sm:$0xff]
        %v450 = vld [vmem:[#allocation2 + $0x9] sm:$0xff]
        %v451 = vld [vmem:[#allocation2 + $0x11] sm:$0xff]
        %v452 = vld [vmem:[#allocation2 + $0x19] sm:$0xff]
        %v453 = vld [vmem:[#allocation2 + $0x21] sm:$0xff]
        %v454 = vld [vmem:[#allocation2 + $0x29] sm:$0xff]
        %s455 = scalar_lea.vmem [#allocation7], 4
        %v456 = vld [vmem:[%s455] sm:$0xf]
        %v458 = vsel %vm432, %v449, 0
        %v461 = vsel %vm432, %v450, 0
        %v464 = vsel %vm432, %v451, 0
        %v467 = vsel %vm432, %v452, 0
        %v470 = vsel %vm432, %v453, 0
        %v473 = vsel %vm432, %v454, 0
        %vm475 = vcmask 1043456
        %v477 = vsel %vm475, %v456, 0
        %479 = vmatprep.subr.mxu0 0.0
        %480 = vmatpush1.msra.mxu0 %v477
        %481 = vmatprep.subr.mxu0 0.0
        %482 = vmatpush1.msra.mxu0 0.0
        %483 = vmatprep.subr.mxu0 0.0
        %484 = vmatpush1.msra.mxu0 0.0
        %485 = vmatprep.subr.mxu0 0.0
        %486 = vmatpush1.msra.mxu0 0.0
        %487 = vmatprep.subr.mxu0 0.0
        %488 = vmatpush1.msra.mxu0 0.0
        %489 = vmatprep.subr.mxu0 0.0
        %490 = vmatpush1.msra.mxu0 0.0
        %491 = vmatprep.subr.mxu0 0.0
        %492 = vmatpush1.msra.mxu0 0.0
        %493 = vmatprep.subr.mxu0 0.0
        %494 = vmatpush1.msra.mxu0 0.0
        %495 = vmatprep.subr.mxu0 0.0
        %496 = vmatpush1.msra.mxu0 0.0
        %497 = vmatprep.subr.mxu0 0.0
        %498 = vmatpush1.msra.mxu0 0.0
        %499 = vmatprep.subr.mxu0 0.0
        %500 = vmatpush1.msra.mxu0 0.0
        %501 = vmatprep.subr.mxu0 0.0
        %502 = vmatpush1.msra.mxu0 0.0
        %503 = vmatprep.subr.mxu0 0.0
        %504 = vmatpush1.msra.mxu0 0.0
        %505 = vmatprep.subr.mxu0 0.0
        %506 = vmatpush1.msra.mxu0 0.0
        %507 = vmatprep.subr.mxu0 0.0
        %508 = vmatpush1.msra.mxu0 0.0
        %509 = vmatprep.subr.mxu0 0.0
        %510 = vmatpush1.msra.mxu0 0.0
        %511 = vmatprep.subr.mxu0 0.0
        %512 = vmatpush1.msra.mxu0 0.0
        %513 = vmatprep.subr.mxu0 0.0
        %514 = vmatpush1.msra.mxu0 0.0
        %515 = vmatprep.subr.mxu0 0.0
        %516 = vmatpush1.msra.mxu0 0.0
        %517 = vmatprep.subr.mxu0 0.0
        %518 = vmatpush1.msra.mxu0 0.0
        %519 = vmatprep.subr.mxu0 0.0
        %520 = vmatpush1.msra.mxu0 0.0
        %521 = vmatprep.subr.mxu0 0.0
        %522 = vmatpush1.msra.mxu0 0.0
        %523 = vmatprep.subr.mxu0 0.0
        %524 = vmatpush1.msra.mxu0 0.0
        %525 = vmatprep.subr.mxu0 0.0
        %526 = vmatpush1.msra.mxu0 0.0
        %527 = vmatprep.subr.mxu0 0.0
        %528 = vmatpush1.msra.mxu0 0.0
        %529 = vmatprep.subr.mxu0 0.0
        %530 = vmatpush1.msra.mxu0 0.0
        %531 = vmatprep.subr.mxu0 0.0
        %532 = vmatpush1.msra.mxu0 0.0
        %533 = vmatprep.subr.mxu0 0.0
        %534 = vmatpush1.msra.mxu0 0.0
        %535 = vmatprep.subr.mxu0 0.0
        %536 = vmatpush1.msra.mxu0 0.0
        %537 = vmatprep.subr.mxu0 0.0
        %538 = vmatpush1.msra.mxu0 0.0
        %539 = vmatprep.subr.mxu0 0.0
        %540 = vmatpush1.msra.mxu0 0.0
        %541 = vmatprep.subr.mxu0 0.0
        %542 = vmatpush1.msra.mxu0 0.0
        %543 = vmatprep.mubr.f32.mxu0 0.0
        %544 = vmatmul.mubr.f32.gmra.mrb[0].mxu0 %v458
        %v545 = vpop.f32.mrb[0].mxu0
        %v546 = vadd.f32 0.0, %v545
        %v547 = vpop.f32.mrb[0].mxu0
        %548 = vmatprep.mubr.f32.mxu0 0.0
        %549 = vmatmul.mubr.f32.gmra.mrb[0].mxu0 %v461
        %v550 = vpop.f32.mrb[0].mxu0
        %v551 = vadd.f32 0.0, %v550
        %v552 = vpop.f32.mrb[0].mxu0
        %553 = vmatprep.mubr.f32.mxu0 0.0
        %554 = vmatmul.mubr.f32.gmra.mrb[0].mxu0 %v464
        %v555 = vpop.f32.mrb[0].mxu0
        %v556 = vadd.f32 0.0, %v555
        %v557 = vpop.f32.mrb[0].mxu0
        %558 = vmatprep.mubr.f32.mxu0 0.0
        %559 = vmatmul.mubr.f32.gmra.mrb[0].mxu0 %v467
        %v560 = vpop.f32.mrb[0].mxu0
        %v561 = vadd.f32 0.0, %v560
        %v562 = vpop.f32.mrb[0].mxu0
        %563 = vmatprep.mubr.f32.mxu0 0.0
        %564 = vmatmul.mubr.f32.gmra.mrb[0].mxu0 %v470
        %v565 = vpop.f32.mrb[0].mxu0
        %v566 = vadd.f32 0.0, %v565
        %v567 = vpop.f32.mrb[0].mxu0
        %568 = vmatprep.mubr.f32.mxu0 0.0
        %569 = vmatmul.mubr.f32.gmra.mrb[0].mxu0 %v473
        %v570 = vpop.f32.mrb[0].mxu0
        %v571 = vadd.f32 0.0, %v570
        %v572 = vpop.f32.mrb[0].mxu0
        %573 = vdwg.mxu0
        %v575 = vsel %vm432, %v442, 0
        %v578 = vsel %vm432, %v443, 0
        %v581 = vsel %vm432, %v444, 0
        %v584 = vsel %vm432, %v445, 0
        %v587 = vsel %vm432, %v446, 0
        %v590 = vsel %vm432, %v447, 0
        %v593 = vsel %vm475, %v448, 0
        %595 = vmatprep.subr.mxu0 0.0
        %596 = vmatpush1.msra.mxu0 %v593
        %597 = vmatprep.subr.mxu0 0.0
        %598 = vmatpush1.msra.mxu0 0.0
        %599 = vmatprep.subr.mxu0 0.0
        %600 = vmatpush1.msra.mxu0 0.0
        %601 = vmatprep.subr.mxu0 0.0
        %602 = vmatpush1.msra.mxu0 0.0
        %603 = vmatprep.subr.mxu0 0.0
        %604 = vmatpush1.msra.mxu0 0.0
        %605 = vmatprep.subr.mxu0 0.0
        %606 = vmatpush1.msra.mxu0 0.0
        %607 = vmatprep.subr.mxu0 0.0
        %608 = vmatpush1.msra.mxu0 0.0
        %609 = vmatprep.subr.mxu0 0.0
        %610 = vmatpush1.msra.mxu0 0.0
        %611 = vmatprep.subr.mxu0 0.0
        %612 = vmatpush1.msra.mxu0 0.0
        %613 = vmatprep.subr.mxu0 0.0
        %614 = vmatpush1.msra.mxu0 0.0
        %615 = vmatprep.subr.mxu0 0.0
        %616 = vmatpush1.msra.mxu0 0.0
        %617 = vmatprep.subr.mxu0 0.0
        %618 = vmatpush1.msra.mxu0 0.0
        %619 = vmatprep.subr.mxu0 0.0
        %620 = vmatpush1.msra.mxu0 0.0
        %621 = vmatprep.subr.mxu0 0.0
        %622 = vmatpush1.msra.mxu0 0.0
        %623 = vmatprep.subr.mxu0 0.0
        %624 = vmatpush1.msra.mxu0 0.0
        %625 = vmatprep.subr.mxu0 0.0
        %626 = vmatpush1.msra.mxu0 0.0
        %627 = vmatprep.subr.mxu0 0.0
        %628 = vmatpush1.msra.mxu0 0.0
        %629 = vmatprep.subr.mxu0 0.0
        %630 = vmatpush1.msra.mxu0 0.0
        %631 = vmatprep.subr.mxu0 0.0
        %632 = vmatpush1.msra.mxu0 0.0
        %633 = vmatprep.subr.mxu0 0.0
        %634 = vmatpush1.msra.mxu0 0.0
        %635 = vmatprep.subr.mxu0 0.0
        %636 = vmatpush1.msra.mxu0 0.0
        %637 = vmatprep.subr.mxu0 0.0
        %638 = vmatpush1.msra.mxu0 0.0
        %639 = vmatprep.subr.mxu0 0.0
        %640 = vmatpush1.msra.mxu0 0.0
        %641 = vmatprep.subr.mxu0 0.0
        %642 = vmatpush1.msra.mxu0 0.0
        %643 = vmatprep.subr.mxu0 0.0
        %644 = vmatpush1.msra.mxu0 0.0
        %645 = vmatprep.subr.mxu0 0.0
        %646 = vmatpush1.msra.mxu0 0.0
        %647 = vmatprep.subr.mxu0 0.0
        %648 = vmatpush1.msra.mxu0 0.0
        %649 = vmatprep.subr.mxu0 0.0
        %650 = vmatpush1.msra.mxu0 0.0
        %651 = vmatprep.subr.mxu0 0.0
        %652 = vmatpush1.msra.mxu0 0.0
        %653 = vmatprep.subr.mxu0 0.0
        %654 = vmatpush1.msra.mxu0 0.0
        %655 = vmatprep.subr.mxu0 0.0
        %656 = vmatpush1.msra.mxu0 0.0
        %657 = vmatprep.subr.mxu0 0.0
        %658 = vmatpush1.msra.mxu0 0.0
        %659 = vmatprep.mubr.f32.mxu0 0.0
        %660 = vmatmul.mubr.f32.gmra.mrb[0].mxu0 %v575
        %v661 = vpop.f32.mrb[0].mxu0
        %v662 = vadd.f32 %v546, %v661
        %v663 = vpop.f32.mrb[0].mxu0
        %664 = vmatprep.mubr.f32.mxu0 0.0
        %665 = vmatmul.mubr.f32.gmra.mrb[0].mxu0 %v578
        %v666 = vpop.f32.mrb[0].mxu0
        %v667 = vadd.f32 %v551, %v666
        %v668 = vpop.f32.mrb[0].mxu0
        %669 = vmatprep.mubr.f32.mxu0 0.0
        %670 = vmatmul.mubr.f32.gmra.mrb[0].mxu0 %v581
        %v671 = vpop.f32.mrb[0].mxu0
        %v672 = vadd.f32 %v556, %v671
        %v673 = vpop.f32.mrb[0].mxu0
        %674 = vmatprep.mubr.f32.mxu0 0.0
        %675 = vmatmul.mubr.f32.gmra.mrb[0].mxu0 %v584
        %v676 = vpop.f32.mrb[0].mxu0
        %v677 = vadd.f32 %v561, %v676
        %v678 = vpop.f32.mrb[0].mxu0
        %679 = vmatprep.mubr.f32.mxu0 0.0
        %680 = vmatmul.mubr.f32.gmra.mrb[0].mxu0 %v587
        %v681 = vpop.f32.mrb[0].mxu0
        %v682 = vadd.f32 %v566, %v681
        %v683 = vpop.f32.mrb[0].mxu0
        %684 = vmatprep.mubr.f32.mxu0 0.0
        %685 = vmatmul.mubr.f32.gmra.mrb[0].mxu0 %v590
        %v686 = vpop.f32.mrb[0].mxu0
        %v687 = vadd.f32 %v571, %v686
        %v688 = vpop.f32.mrb[0].mxu0
        %689 = vdwg.mxu0
        %v690 = vld [vmem:[#allocation2 + $0x2] sm:$0xff]
        %v691 = vld [vmem:[#allocation2 + $0xa] sm:$0xff]
        %v692 = vld [vmem:[#allocation2 + $0x12] sm:$0xff]
        %v693 = vld [vmem:[#allocation2 + $0x1a] sm:$0xff]
        %v694 = vld [vmem:[#allocation2 + $0x22] sm:$0xff]
        %v695 = vld [vmem:[#allocation2 + $0x2a] sm:$0xff]
        %s696 = scalar_lea.vmem [#allocation7], 8
        %v697 = vld [vmem:[%s696] sm:$0xf]
        %v699 = vsel %vm432, %v690, 0
        %v702 = vsel %vm432, %v691, 0
        %v705 = vsel %vm432, %v692, 0
        %v708 = vsel %vm432, %v693, 0
        %v711 = vsel %vm432, %v694, 0
        %v714 = vsel %vm432, %v695, 0
        %v717 = vsel %vm475, %v697, 0
        %719 = vmatprep.subr.mxu0 0.0
        %720 = vmatpush1.msra.mxu0 %v717
        %721 = vmatprep.subr.mxu0 0.0
        %722 = vmatpush1.msra.mxu0 0.0
        %723 = vmatprep.subr.mxu0 0.0
        %724 = vmatpush1.msra.mxu0 0.0
        %725 = vmatprep.subr.mxu0 0.0
        %726 = vmatpush1.msra.mxu0 0.0
        %727 = vmatprep.subr.mxu0 0.0
        %728 = vmatpush1.msra.mxu0 0.0
        %729 = vmatprep.subr.mxu0 0.0
        %730 = vmatpush1.msra.mxu0 0.0
        %731 = vmatprep.subr.mxu0 0.0
        %732 = vmatpush1.msra.mxu0 0.0
        %733 = vmatprep.subr.mxu0 0.0
        %734 = vmatpush1.msra.mxu0 0.0
        %735 = vmatprep.subr.mxu0 0.0
        %736 = vmatpush1.msra.mxu0 0.0
        %737 = vmatprep.subr.mxu0 0.0
        %738 = vmatpush1.msra.mxu0 0.0
        %739 = vmatprep.subr.mxu0 0.0
        %740 = vmatpush1.msra.mxu0 0.0
        %741 = vmatprep.subr.mxu0 0.0
        %742 = vmatpush1.msra.mxu0 0.0
        %743 = vmatprep.subr.mxu0 0.0
        %744 = vmatpush1.msra.mxu0 0.0
        %745 = vmatprep.subr.mxu0 0.0
        %746 = vmatpush1.msra.mxu0 0.0
        %747 = vmatprep.subr.mxu0 0.0
        %748 = vmatpush1.msra.mxu0 0.0
        %749 = vmatprep.subr.mxu0 0.0
        %750 = vmatpush1.msra.mxu0 0.0
        %751 = vmatprep.subr.mxu0 0.0
        %752 = vmatpush1.msra.mxu0 0.0
        %753 = vmatprep.subr.mxu0 0.0
        %754 = vmatpush1.msra.mxu0 0.0
        %755 = vmatprep.subr.mxu0 0.0
        %756 = vmatpush1.msra.mxu0 0.0
        %757 = vmatprep.subr.mxu0 0.0
        %758 = vmatpush1.msra.mxu0 0.0
        %759 = vmatprep.subr.mxu0 0.0
        %760 = vmatpush1.msra.mxu0 0.0
        %761 = vmatprep.subr.mxu0 0.0
        %762 = vmatpush1.msra.mxu0 0.0
        %763 = vmatprep.subr.mxu0 0.0
        %764 = vmatpush1.msra.mxu0 0.0
        %765 = vmatprep.subr.mxu0 0.0
        %766 = vmatpush1.msra.mxu0 0.0
        %767 = vmatprep.subr.mxu0 0.0
        %768 = vmatpush1.msra.mxu0 0.0
        %769 = vmatprep.subr.mxu0 0.0
        %770 = vmatpush1.msra.mxu0 0.0
        %771 = vmatprep.subr.mxu0 0.0
        %772 = vmatpush1.msra.mxu0 0.0
        %773 = vmatprep.subr.mxu0 0.0
        %774 = vmatpush1.msra.mxu0 0.0
        %775 = vmatprep.subr.mxu0 0.0
        %776 = vmatpush1.msra.mxu0 0.0
        %777 = vmatprep.subr.mxu0 0.0
        %778 = vmatpush1.msra.mxu0 0.0
        %779 = vmatprep.subr.mxu0 0.0
        %780 = vmatpush1.msra.mxu0 0.0
        %781 = vmatprep.subr.mxu0 0.0
        %782 = vmatpush1.msra.mxu0 0.0
        %783 = vmatprep.mubr.f32.mxu0 0.0
        %784 = vmatmul.mubr.f32.gmra.mrb[0].mxu0 %v699
        %v785 = vpop.f32.mrb[0].mxu0
        %v786 = vadd.f32 0.0, %v785
        %v787 = vpop.f32.mrb[0].mxu0
        %788 = vmatprep.mubr.f32.mxu0 0.0
        %789 = vmatmul.mubr.f32.gmra.mrb[0].mxu0 %v702
        %v790 = vpop.f32.mrb[0].mxu0
        %v791 = vadd.f32 0.0, %v790
        %v792 = vpop.f32.mrb[0].mxu0
        %793 = vmatprep.mubr.f32.mxu0 0.0
        %794 = vmatmul.mubr.f32.gmra.mrb[0].mxu0 %v705
        %v795 = vpop.f32.mrb[0].mxu0
        %v796 = vadd.f32 0.0, %v795
        %v797 = vpop.f32.mrb[0].mxu0
        %798 = vmatprep.mubr.f32.mxu0 0.0
        %799 = vmatmul.mubr.f32.gmra.mrb[0].mxu0 %v708
        %v800 = vpop.f32.mrb[0].mxu0
        %v801 = vadd.f32 0.0, %v800
        %v802 = vpop.f32.mrb[0].mxu0
        %803 = vmatprep.mubr.f32.mxu0 0.0
        %804 = vmatmul.mubr.f32.gmra.mrb[0].mxu0 %v711
        %v805 = vpop.f32.mrb[0].mxu0
        %v806 = vadd.f32 0.0, %v805
        %v807 = vpop.f32.mrb[0].mxu0
        %808 = vmatprep.mubr.f32.mxu0 0.0
        %809 = vmatmul.mubr.f32.gmra.mrb[0].mxu0 %v714
        %v810 = vpop.f32.mrb[0].mxu0
        %v811 = vadd.f32 0.0, %v810
        %v812 = vpop.f32.mrb[0].mxu0
        %813 = vdwg.mxu0
        %v814 = vadd.f32 %v662, %v786
        %v815 = vadd.f32 %v667, %v791
        %v816 = vadd.f32 %v672, %v796
        %v817 = vadd.f32 %v677, %v801
        %v818 = vadd.f32 %v682, %v806
        %v819 = vadd.f32 %v687, %v811
        %v820 = vld [vmem:[#allocation2 + $0x8] sm:$0xff]
        %v821 = vld [vmem:[#allocation2 + $0x10] sm:$0xff]
        %v822 = vld [vmem:[#allocation2 + $0x18] sm:$0xff]
        %v823 = vld [vmem:[#allocation2 + $0x20] sm:$0xff]
        %v824 = vld [vmem:[#allocation2 + $0x28] sm:$0xff]
        %v825 = vld [vmem:[#allocation2 + $0x30] sm:$0xff]
        %s826 = scalar_lea.vmem [#allocation7], 12
        %v827 = vld [vmem:[%s826] sm:$0xf]
        %v829 = vsel %vm432, %v820, 0
        %v832 = vsel %vm432, %v821, 0
        %v835 = vsel %vm432, %v822, 0
        %v838 = vsel %vm432, %v823, 0
        %v841 = vsel %vm432, %v824, 0
        %v844 = vsel %vm432, %v825, 0
        %v847 = vsel %vm475, %v827, 0
        %849 = vmatprep.subr.mxu0 0.0
        %850 = vmatpush1.msra.mxu0 %v847
        %851 = vmatprep.subr.mxu0 0.0
        %852 = vmatpush1.msra.mxu0 0.0
        %853 = vmatprep.subr.mxu0 0.0
        %854 = vmatpush1.msra.mxu0 0.0
        %855 = vmatprep.subr.mxu0 0.0
        %856 = vmatpush1.msra.mxu0 0.0
        %857 = vmatprep.subr.mxu0 0.0
        %858 = vmatpush1.msra.mxu0 0.0
        %859 = vmatprep.subr.mxu0 0.0
        %860 = vmatpush1.msra.mxu0 0.0
        %861 = vmatprep.subr.mxu0 0.0
        %862 = vmatpush1.msra.mxu0 0.0
        %863 = vmatprep.subr.mxu0 0.0
        %864 = vmatpush1.msra.mxu0 0.0
        %865 = vmatprep.subr.mxu0 0.0
        %866 = vmatpush1.msra.mxu0 0.0
        %867 = vmatprep.subr.mxu0 0.0
        %868 = vmatpush1.msra.mxu0 0.0
        %869 = vmatprep.subr.mxu0 0.0
        %870 = vmatpush1.msra.mxu0 0.0
        %871 = vmatprep.subr.mxu0 0.0
        %872 = vmatpush1.msra.mxu0 0.0
        %873 = vmatprep.subr.mxu0 0.0
        %874 = vmatpush1.msra.mxu0 0.0
        %875 = vmatprep.subr.mxu0 0.0
        %876 = vmatpush1.msra.mxu0 0.0
        %877 = vmatprep.subr.mxu0 0.0
        %878 = vmatpush1.msra.mxu0 0.0
        %879 = vmatprep.subr.mxu0 0.0
        %880 = vmatpush1.msra.mxu0 0.0
        %881 = vmatprep.subr.mxu0 0.0
        %882 = vmatpush1.msra.mxu0 0.0
        %883 = vmatprep.subr.mxu0 0.0
        %884 = vmatpush1.msra.mxu0 0.0
        %885 = vmatprep.subr.mxu0 0.0
        %886 = vmatpush1.msra.mxu0 0.0
        %887 = vmatprep.subr.mxu0 0.0
        %888 = vmatpush1.msra.mxu0 0.0
        %889 = vmatprep.subr.mxu0 0.0
        %890 = vmatpush1.msra.mxu0 0.0
        %891 = vmatprep.subr.mxu0 0.0
        %892 = vmatpush1.msra.mxu0 0.0
        %893 = vmatprep.subr.mxu0 0.0
        %894 = vmatpush1.msra.mxu0 0.0
        %895 = vmatprep.subr.mxu0 0.0
        %896 = vmatpush1.msra.mxu0 0.0
        %897 = vmatprep.subr.mxu0 0.0
        %898 = vmatpush1.msra.mxu0 0.0
        %899 = vmatprep.subr.mxu0 0.0
        %900 = vmatpush1.msra.mxu0 0.0
        %901 = vmatprep.subr.mxu0 0.0
        %902 = vmatpush1.msra.mxu0 0.0
        %903 = vmatprep.subr.mxu0 0.0
        %904 = vmatpush1.msra.mxu0 0.0
        %905 = vmatprep.subr.mxu0 0.0
        %906 = vmatpush1.msra.mxu0 0.0
        %907 = vmatprep.subr.mxu0 0.0
        %908 = vmatpush1.msra.mxu0 0.0
        %909 = vmatprep.subr.mxu0 0.0
        %910 = vmatpush1.msra.mxu0 0.0
        %911 = vmatprep.subr.mxu0 0.0
        %912 = vmatpush1.msra.mxu0 0.0
        %913 = vmatprep.mubr.f32.mxu0 0.0
        %914 = vmatmul.mubr.f32.gmra.mrb[0].mxu0 %v829
        %v915 = vpop.f32.mrb[0].mxu0
        %v916 = vadd.f32 0.0, %v915
        %v917 = vpop.f32.mrb[0].mxu0
        %918 = vmatprep.mubr.f32.mxu0 0.0
        %919 = vmatmul.mubr.f32.gmra.mrb[0].mxu0 %v832
        %v920 = vpop.f32.mrb[0].mxu0
        %v921 = vadd.f32 0.0, %v920
        %v922 = vpop.f32.mrb[0].mxu0
        %923 = vmatprep.mubr.f32.mxu0 0.0
        %924 = vmatmul.mubr.f32.gmra.mrb[0].mxu0 %v835
        %v925 = vpop.f32.mrb[0].mxu0
        %v926 = vadd.f32 0.0, %v925
        %v927 = vpop.f32.mrb[0].mxu0
        %928 = vmatprep.mubr.f32.mxu0 0.0
        %929 = vmatmul.mubr.f32.gmra.mrb[0].mxu0 %v838
        %v930 = vpop.f32.mrb[0].mxu0
        %v931 = vadd.f32 0.0, %v930
        %v932 = vpop.f32.mrb[0].mxu0
        %933 = vmatprep.mubr.f32.mxu0 0.0
        %934 = vmatmul.mubr.f32.gmra.mrb[0].mxu0 %v841
        %v935 = vpop.f32.mrb[0].mxu0
        %v936 = vadd.f32 0.0, %v935
        %v937 = vpop.f32.mrb[0].mxu0
        %938 = vmatprep.mubr.f32.mxu0 0.0
        %939 = vmatmul.mubr.f32.gmra.mrb[0].mxu0 %v844
        %v940 = vpop.f32.mrb[0].mxu0
        %v941 = vadd.f32 0.0, %v940
        %v942 = vpop.f32.mrb[0].mxu0
        %943 = vdwg.mxu0
        %v944 = vadd.f32 %v814, %v916
        %v945 = vadd.f32 %v815, %v921
        %v946 = vadd.f32 %v816, %v926
        %v947 = vadd.f32 %v817, %v931
        %v948 = vadd.f32 %v818, %v936
        %v949 = vadd.f32 %v819, %v941
        %v950 = vld [vmem:[#allocation2 + $0x9] sm:$0xff]
        %v951 = vld [vmem:[#allocation2 + $0x11] sm:$0xff]
        %v952 = vld [vmem:[#allocation2 + $0x19] sm:$0xff]
        %v953 = vld [vmem:[#allocation2 + $0x21] sm:$0xff]
        %v954 = vld [vmem:[#allocation2 + $0x29] sm:$0xff]
        %v955 = vld [vmem:[#allocation2 + $0x31] sm:$0xff]
        %s956 = scalar_lea.vmem [#allocation7], 16
        %v957 = vld [vmem:[%s956] sm:$0xf]
        %v959 = vsel %vm432, %v950, 0
        %v962 = vsel %vm432, %v951, 0
        %v965 = vsel %vm432, %v952, 0
        %v968 = vsel %vm432, %v953, 0
        %v971 = vsel %vm432, %v954, 0
        %v974 = vsel %vm432, %v955, 0
        %v977 = vsel %vm475, %v957, 0
        %979 = vmatprep.subr.mxu0 0.0
        %980 = vmatpush1.msra.mxu0 %v977
        %981 = vmatprep.subr.mxu0 0.0
        %982 = vmatpush1.msra.mxu0 0.0
        %983 = vmatprep.subr.mxu0 0.0
        %984 = vmatpush1.msra.mxu0 0.0
        %985 = vmatprep.subr.mxu0 0.0
        %986 = vmatpush1.msra.mxu0 0.0
        %987 = vmatprep.subr.mxu0 0.0
        %988 = vmatpush1.msra.mxu0 0.0
        %989 = vmatprep.subr.mxu0 0.0
        %990 = vmatpush1.msra.mxu0 0.0
        %991 = vmatprep.subr.mxu0 0.0
        %992 = vmatpush1.msra.mxu0 0.0
        %993 = vmatprep.subr.mxu0 0.0
        %994 = vmatpush1.msra.mxu0 0.0
        %995 = vmatprep.subr.mxu0 0.0
        %996 = vmatpush1.msra.mxu0 0.0
        %997 = vmatprep.subr.mxu0 0.0
        %998 = vmatpush1.msra.mxu0 0.0
        %999 = vmatprep.subr.mxu0 0.0
        %1000 = vmatpush1.msra.mxu0 0.0
        %1001 = vmatprep.subr.mxu0 0.0
        %1002 = vmatpush1.msra.mxu0 0.0
        %1003 = vmatprep.subr.mxu0 0.0
        %1004 = vmatpush1.msra.mxu0 0.0
        %1005 = vmatprep.subr.mxu0 0.0
        %1006 = vmatpush1.msra.mxu0 0.0
        %1007 = vmatprep.subr.mxu0 0.0
        %1008 = vmatpush1.msra.mxu0 0.0
        %1009 = vmatprep.subr.mxu0 0.0
        %1010 = vmatpush1.msra.mxu0 0.0
        %1011 = vmatprep.subr.mxu0 0.0
        %1012 = vmatpush1.msra.mxu0 0.0
        %1013 = vmatprep.subr.mxu0 0.0
        %1014 = vmatpush1.msra.mxu0 0.0
        %1015 = vmatprep.subr.mxu0 0.0
        %1016 = vmatpush1.msra.mxu0 0.0
        %1017 = vmatprep.subr.mxu0 0.0
        %1018 = vmatpush1.msra.mxu0 0.0
        %1019 = vmatprep.subr.mxu0 0.0
        %1020 = vmatpush1.msra.mxu0 0.0
        %1021 = vmatprep.subr.mxu0 0.0
        %1022 = vmatpush1.msra.mxu0 0.0
        %1023 = vmatprep.subr.mxu0 0.0
        %1024 = vmatpush1.msra.mxu0 0.0
        %1025 = vmatprep.subr.mxu0 0.0
        %1026 = vmatpush1.msra.mxu0 0.0
        %1027 = vmatprep.subr.mxu0 0.0
        %1028 = vmatpush1.msra.mxu0 0.0
        %1029 = vmatprep.subr.mxu0 0.0
        %1030 = vmatpush1.msra.mxu0 0.0
        %1031 = vmatprep.subr.mxu0 0.0
        %1032 = vmatpush1.msra.mxu0 0.0
        %1033 = vmatprep.subr.mxu0 0.0
        %1034 = vmatpush1.msra.mxu0 0.0
        %1035 = vmatprep.subr.mxu0 0.0
        %1036 = vmatpush1.msra.mxu0 0.0
        %1037 = vmatprep.subr.mxu0 0.0
        %1038 = vmatpush1.msra.mxu0 0.0
        %1039 = vmatprep.subr.mxu0 0.0
        %1040 = vmatpush1.msra.mxu0 0.0
        %1041 = vmatprep.subr.mxu0 0.0
        %1042 = vmatpush1.msra.mxu0 0.0
        %1043 = vmatprep.mubr.f32.mxu0 0.0
        %1044 = vmatmul.mubr.f32.gmra.mrb[0].mxu0 %v959
        %v1045 = vpop.f32.mrb[0].mxu0
        %v1046 = vadd.f32 0.0, %v1045
        %v1047 = vpop.f32.mrb[0].mxu0
        %1048 = vmatprep.mubr.f32.mxu0 0.0
        %1049 = vmatmul.mubr.f32.gmra.mrb[0].mxu0 %v962
        %v1050 = vpop.f32.mrb[0].mxu0
        %v1051 = vadd.f32 0.0, %v1050
        %v1052 = vpop.f32.mrb[0].mxu0
        %1053 = vmatprep.mubr.f32.mxu0 0.0
        %1054 = vmatmul.mubr.f32.gmra.mrb[0].mxu0 %v965
        %v1055 = vpop.f32.mrb[0].mxu0
        %v1056 = vadd.f32 0.0, %v1055
        %v1057 = vpop.f32.mrb[0].mxu0
        %1058 = vmatprep.mubr.f32.mxu0 0.0
        %1059 = vmatmul.mubr.f32.gmra.mrb[0].mxu0 %v968
        %v1060 = vpop.f32.mrb[0].mxu0
        %v1061 = vadd.f32 0.0, %v1060
        %v1062 = vpop.f32.mrb[0].mxu0
        %1063 = vmatprep.mubr.f32.mxu0 0.0
        %1064 = vmatmul.mubr.f32.gmra.mrb[0].mxu0 %v971
        %v1065 = vpop.f32.mrb[0].mxu0
        %v1066 = vadd.f32 0.0, %v1065
        %v1067 = vpop.f32.mrb[0].mxu0
        %1068 = vmatprep.mubr.f32.mxu0 0.0
        %1069 = vmatmul.mubr.f32.gmra.mrb[0].mxu0 %v974
        %v1070 = vpop.f32.mrb[0].mxu0
        %v1071 = vadd.f32 0.0, %v1070
        %v1072 = vpop.f32.mrb[0].mxu0
        %1073 = vdwg.mxu0
        %v1074 = vadd.f32 %v944, %v1046
        %v1075 = vadd.f32 %v945, %v1051
        %v1076 = vadd.f32 %v946, %v1056
        %v1077 = vadd.f32 %v947, %v1061
        %v1078 = vadd.f32 %v948, %v1066
        %v1079 = vadd.f32 %v949, %v1071
        %v1080 = vld [vmem:[#allocation2 + $0xa] sm:$0xff]
        %v1081 = vld [vmem:[#allocation2 + $0x12] sm:$0xff]
        %v1082 = vld [vmem:[#allocation2 + $0x1a] sm:$0xff]
        %v1083 = vld [vmem:[#allocation2 + $0x22] sm:$0xff]
        %v1084 = vld [vmem:[#allocation2 + $0x2a] sm:$0xff]
        %v1085 = vld [vmem:[#allocation2 + $0x32] sm:$0xff]
        %s1086 = scalar_lea.vmem [#allocation7], 20
        %v1087 = vld [vmem:[%s1086] sm:$0xf]
        %v1089 = vsel %vm432, %v1080, 0
        %v1092 = vsel %vm432, %v1081, 0
        %v1095 = vsel %vm432, %v1082, 0
        %v1098 = vsel %vm432, %v1083, 0
        %v1101 = vsel %vm432, %v1084, 0
        %v1104 = vsel %vm432, %v1085, 0
        %v1107 = vsel %vm475, %v1087, 0
        %1109 = vmatprep.subr.mxu0 0.0
        %1110 = vmatpush1.msra.mxu0 %v1107
        %1111 = vmatprep.subr.mxu0 0.0
        %1112 = vmatpush1.msra.mxu0 0.0
        %1113 = vmatprep.subr.mxu0 0.0
        %1114 = vmatpush1.msra.mxu0 0.0
        %1115 = vmatprep.subr.mxu0 0.0
        %1116 = vmatpush1.msra.mxu0 0.0
        %1117 = vmatprep.subr.mxu0 0.0
        %1118 = vmatpush1.msra.mxu0 0.0
        %1119 = vmatprep.subr.mxu0 0.0
        %1120 = vmatpush1.msra.mxu0 0.0
        %1121 = vmatprep.subr.mxu0 0.0
        %1122 = vmatpush1.msra.mxu0 0.0
        %1123 = vmatprep.subr.mxu0 0.0
        %1124 = vmatpush1.msra.mxu0 0.0
        %1125 = vmatprep.subr.mxu0 0.0
        %1126 = vmatpush1.msra.mxu0 0.0
        %1127 = vmatprep.subr.mxu0 0.0
        %1128 = vmatpush1.msra.mxu0 0.0
        %1129 = vmatprep.subr.mxu0 0.0
        %1130 = vmatpush1.msra.mxu0 0.0
        %1131 = vmatprep.subr.mxu0 0.0
        %1132 = vmatpush1.msra.mxu0 0.0
        %1133 = vmatprep.subr.mxu0 0.0
        %1134 = vmatpush1.msra.mxu0 0.0
        %1135 = vmatprep.subr.mxu0 0.0
        %1136 = vmatpush1.msra.mxu0 0.0
        %1137 = vmatprep.subr.mxu0 0.0
        %1138 = vmatpush1.msra.mxu0 0.0
        %1139 = vmatprep.subr.mxu0 0.0
        %1140 = vmatpush1.msra.mxu0 0.0
        %1141 = vmatprep.subr.mxu0 0.0
        %1142 = vmatpush1.msra.mxu0 0.0
        %1143 = vmatprep.subr.mxu0 0.0
        %1144 = vmatpush1.msra.mxu0 0.0
        %1145 = vmatprep.subr.mxu0 0.0
        %1146 = vmatpush1.msra.mxu0 0.0
        %1147 = vmatprep.subr.mxu0 0.0
        %1148 = vmatpush1.msra.mxu0 0.0
        %1149 = vmatprep.subr.mxu0 0.0
        %1150 = vmatpush1.msra.mxu0 0.0
        %1151 = vmatprep.subr.mxu0 0.0
        %1152 = vmatpush1.msra.mxu0 0.0
        %1153 = vmatprep.subr.mxu0 0.0
        %1154 = vmatpush1.msra.mxu0 0.0
        %1155 = vmatprep.subr.mxu0 0.0
        %1156 = vmatpush1.msra.mxu0 0.0
        %1157 = vmatprep.subr.mxu0 0.0
        %1158 = vmatpush1.msra.mxu0 0.0
        %1159 = vmatprep.subr.mxu0 0.0
        %1160 = vmatpush1.msra.mxu0 0.0
        %1161 = vmatprep.subr.mxu0 0.0
        %1162 = vmatpush1.msra.mxu0 0.0
        %1163 = vmatprep.subr.mxu0 0.0
        %1164 = vmatpush1.msra.mxu0 0.0
        %1165 = vmatprep.subr.mxu0 0.0
        %1166 = vmatpush1.msra.mxu0 0.0
        %1167 = vmatprep.subr.mxu0 0.0
        %1168 = vmatpush1.msra.mxu0 0.0
        %1169 = vmatprep.subr.mxu0 0.0
        %1170 = vmatpush1.msra.mxu0 0.0
        %1171 = vmatprep.subr.mxu0 0.0
        %1172 = vmatpush1.msra.mxu0 0.0
        %1173 = vmatprep.mubr.f32.mxu0 0.0
        %1174 = vmatmul.mubr.f32.gmra.mrb[0].mxu0 %v1089
        %v1175 = vpop.f32.mrb[0].mxu0
        %v1176 = vadd.f32 0.0, %v1175
        %v1177 = vpop.f32.mrb[0].mxu0
        %1178 = vmatprep.mubr.f32.mxu0 0.0
        %1179 = vmatmul.mubr.f32.gmra.mrb[0].mxu0 %v1092
        %v1180 = vpop.f32.mrb[0].mxu0
        %v1181 = vadd.f32 0.0, %v1180
        %v1182 = vpop.f32.mrb[0].mxu0
        %1183 = vmatprep.mubr.f32.mxu0 0.0
        %1184 = vmatmul.mubr.f32.gmra.mrb[0].mxu0 %v1095
        %v1185 = vpop.f32.mrb[0].mxu0
        %v1186 = vadd.f32 0.0, %v1185
        %v1187 = vpop.f32.mrb[0].mxu0
        %1188 = vmatprep.mubr.f32.mxu0 0.0
        %1189 = vmatmul.mubr.f32.gmra.mrb[0].mxu0 %v1098
        %v1190 = vpop.f32.mrb[0].mxu0
        %v1191 = vadd.f32 0.0, %v1190
        %v1192 = vpop.f32.mrb[0].mxu0
        %1193 = vmatprep.mubr.f32.mxu0 0.0
        %1194 = vmatmul.mubr.f32.gmra.mrb[0].mxu0 %v1101
        %v1195 = vpop.f32.mrb[0].mxu0
        %v1196 = vadd.f32 0.0, %v1195
        %v1197 = vpop.f32.mrb[0].mxu0
        %1198 = vmatprep.mubr.f32.mxu0 0.0
        %1199 = vmatmul.mubr.f32.gmra.mrb[0].mxu0 %v1104
        %v1200 = vpop.f32.mrb[0].mxu0
        %v1201 = vadd.f32 0.0, %v1200
        %v1202 = vpop.f32.mrb[0].mxu0
        %1203 = vdwg.mxu0
        %v1204 = vadd.f32 %v1074, %v1176
        %v1205 = vadd.f32 %v1075, %v1181
        %v1206 = vadd.f32 %v1076, %v1186
        %v1207 = vadd.f32 %v1077, %v1191
        %v1208 = vadd.f32 %v1078, %v1196
        %v1209 = vadd.f32 %v1079, %v1201
        %v1210 = vld [vmem:[#allocation2 + $0x10] sm:$0xff]
        %v1211 = vld [vmem:[#allocation2 + $0x18] sm:$0xff]
        %v1212 = vld [vmem:[#allocation2 + $0x20] sm:$0xff]
        %v1213 = vld [vmem:[#allocation2 + $0x28] sm:$0xff]
        %v1214 = vld [vmem:[#allocation2 + $0x30] sm:$0xff]
        %v1215 = vld [vmem:[#allocation2 + $0x38] sm:$0xff]
        %s1216 = scalar_lea.vmem [#allocation7], 24
        %v1217 = vld [vmem:[%s1216] sm:$0xf]
        %v1219 = vsel %vm432, %v1210, 0
        %v1222 = vsel %vm432, %v1211, 0
        %v1225 = vsel %vm432, %v1212, 0
        %v1228 = vsel %vm432, %v1213, 0
        %v1231 = vsel %vm432, %v1214, 0
        %v1234 = vsel %vm432, %v1215, 0
        %v1237 = vsel %vm475, %v1217, 0
        %1239 = vmatprep.subr.mxu0 0.0
        %1240 = vmatpush1.msra.mxu0 %v1237
        %1241 = vmatprep.subr.mxu0 0.0
        %1242 = vmatpush1.msra.mxu0 0.0
        %1243 = vmatprep.subr.mxu0 0.0
        %1244 = vmatpush1.msra.mxu0 0.0
        %1245 = vmatprep.subr.mxu0 0.0
        %1246 = vmatpush1.msra.mxu0 0.0
        %1247 = vmatprep.subr.mxu0 0.0
        %1248 = vmatpush1.msra.mxu0 0.0
        %1249 = vmatprep.subr.mxu0 0.0
        %1250 = vmatpush1.msra.mxu0 0.0
        %1251 = vmatprep.subr.mxu0 0.0
        %1252 = vmatpush1.msra.mxu0 0.0
        %1253 = vmatprep.subr.mxu0 0.0
        %1254 = vmatpush1.msra.mxu0 0.0
        %1255 = vmatprep.subr.mxu0 0.0
        %1256 = vmatpush1.msra.mxu0 0.0
        %1257 = vmatprep.subr.mxu0 0.0
        %1258 = vmatpush1.msra.mxu0 0.0
        %1259 = vmatprep.subr.mxu0 0.0
        %1260 = vmatpush1.msra.mxu0 0.0
        %1261 = vmatprep.subr.mxu0 0.0
        %1262 = vmatpush1.msra.mxu0 0.0
        %1263 = vmatprep.subr.mxu0 0.0
        %1264 = vmatpush1.msra.mxu0 0.0
        %1265 = vmatprep.subr.mxu0 0.0
        %1266 = vmatpush1.msra.mxu0 0.0
        %1267 = vmatprep.subr.mxu0 0.0
        %1268 = vmatpush1.msra.mxu0 0.0
        %1269 = vmatprep.subr.mxu0 0.0
        %1270 = vmatpush1.msra.mxu0 0.0
        %1271 = vmatprep.subr.mxu0 0.0
        %1272 = vmatpush1.msra.mxu0 0.0
        %1273 = vmatprep.subr.mxu0 0.0
        %1274 = vmatpush1.msra.mxu0 0.0
        %1275 = vmatprep.subr.mxu0 0.0
        %1276 = vmatpush1.msra.mxu0 0.0
        %1277 = vmatprep.subr.mxu0 0.0
        %1278 = vmatpush1.msra.mxu0 0.0
        %1279 = vmatprep.subr.mxu0 0.0
        %1280 = vmatpush1.msra.mxu0 0.0
        %1281 = vmatprep.subr.mxu0 0.0
        %1282 = vmatpush1.msra.mxu0 0.0
        %1283 = vmatprep.subr.mxu0 0.0
        %1284 = vmatpush1.msra.mxu0 0.0
        %1285 = vmatprep.subr.mxu0 0.0
        %1286 = vmatpush1.msra.mxu0 0.0
        %1287 = vmatprep.subr.mxu0 0.0
        %1288 = vmatpush1.msra.mxu0 0.0
        %1289 = vmatprep.subr.mxu0 0.0
        %1290 = vmatpush1.msra.mxu0 0.0
        %1291 = vmatprep.subr.mxu0 0.0
        %1292 = vmatpush1.msra.mxu0 0.0
        %1293 = vmatprep.subr.mxu0 0.0
        %1294 = vmatpush1.msra.mxu0 0.0
        %1295 = vmatprep.subr.mxu0 0.0
        %1296 = vmatpush1.msra.mxu0 0.0
        %1297 = vmatprep.subr.mxu0 0.0
        %1298 = vmatpush1.msra.mxu0 0.0
        %1299 = vmatprep.subr.mxu0 0.0
        %1300 = vmatpush1.msra.mxu0 0.0
        %1301 = vmatprep.subr.mxu0 0.0
        %1302 = vmatpush1.msra.mxu0 0.0
        %1303 = vmatprep.mubr.f32.mxu0 0.0
        %1304 = vmatmul.mubr.f32.gmra.mrb[0].mxu0 %v1219
        %v1305 = vpop.f32.mrb[0].mxu0
        %v1306 = vadd.f32 0.0, %v1305
        %v1307 = vpop.f32.mrb[0].mxu0
        %1308 = vmatprep.mubr.f32.mxu0 0.0
        %1309 = vmatmul.mubr.f32.gmra.mrb[0].mxu0 %v1222
        %v1310 = vpop.f32.mrb[0].mxu0
        %v1311 = vadd.f32 0.0, %v1310
        %v1312 = vpop.f32.mrb[0].mxu0
        %1313 = vmatprep.mubr.f32.mxu0 0.0
        %1314 = vmatmul.mubr.f32.gmra.mrb[0].mxu0 %v1225
        %v1315 = vpop.f32.mrb[0].mxu0
        %v1316 = vadd.f32 0.0, %v1315
        %v1317 = vpop.f32.mrb[0].mxu0
        %1318 = vmatprep.mubr.f32.mxu0 0.0
        %1319 = vmatmul.mubr.f32.gmra.mrb[0].mxu0 %v1228
        %v1320 = vpop.f32.mrb[0].mxu0
        %v1321 = vadd.f32 0.0, %v1320
        %v1322 = vpop.f32.mrb[0].mxu0
        %1323 = vmatprep.mubr.f32.mxu0 0.0
        %1324 = vmatmul.mubr.f32.gmra.mrb[0].mxu0 %v1231
        %v1325 = vpop.f32.mrb[0].mxu0
        %v1326 = vadd.f32 0.0, %v1325
        %v1327 = vpop.f32.mrb[0].mxu0
        %1328 = vmatprep.mubr.f32.mxu0 0.0
        %1329 = vmatmul.mubr.f32.gmra.mrb[0].mxu0 %v1234
        %v1330 = vpop.f32.mrb[0].mxu0
        %v1331 = vadd.f32 0.0, %v1330
        %v1332 = vpop.f32.mrb[0].mxu0
        %1333 = vdwg.mxu0
        %v1334 = vadd.f32 %v1204, %v1306
        %v1335 = vadd.f32 %v1205, %v1311
        %v1336 = vadd.f32 %v1206, %v1316
        %v1337 = vadd.f32 %v1207, %v1321
        %v1338 = vadd.f32 %v1208, %v1326
        %v1339 = vadd.f32 %v1209, %v1331
        %v1340 = vld [vmem:[#allocation2 + $0x11] sm:$0xff]
        %v1341 = vld [vmem:[#allocation2 + $0x19] sm:$0xff]
        %v1342 = vld [vmem:[#allocation2 + $0x21] sm:$0xff]
        %v1343 = vld [vmem:[#allocation2 + $0x29] sm:$0xff]
        %v1344 = vld [vmem:[#allocation2 + $0x31] sm:$0xff]
        %v1345 = vld [vmem:[#allocation2 + $0x39] sm:$0xff]
        %s1346 = scalar_lea.vmem [#allocation7], 28
        %v1347 = vld [vmem:[%s1346] sm:$0xf]
        %v1349 = vsel %vm432, %v1340, 0
        %v1352 = vsel %vm432, %v1341, 0
        %v1355 = vsel %vm432, %v1342, 0
        %v1358 = vsel %vm432, %v1343, 0
        %v1361 = vsel %vm432, %v1344, 0
        %v1364 = vsel %vm432, %v1345, 0
        %v1367 = vsel %vm475, %v1347, 0
        %1369 = vmatprep.subr.mxu0 0.0
        %1370 = vmatpush1.msra.mxu0 %v1367
        %1371 = vmatprep.subr.mxu0 0.0
        %1372 = vmatpush1.msra.mxu0 0.0
        %1373 = vmatprep.subr.mxu0 0.0
        %1374 = vmatpush1.msra.mxu0 0.0
        %1375 = vmatprep.subr.mxu0 0.0
        %1376 = vmatpush1.msra.mxu0 0.0
        %1377 = vmatprep.subr.mxu0 0.0
        %1378 = vmatpush1.msra.mxu0 0.0
        %1379 = vmatprep.subr.mxu0 0.0
        %1380 = vmatpush1.msra.mxu0 0.0
        %1381 = vmatprep.subr.mxu0 0.0
        %1382 = vmatpush1.msra.mxu0 0.0
        %1383 = vmatprep.subr.mxu0 0.0
        %1384 = vmatpush1.msra.mxu0 0.0
        %1385 = vmatprep.subr.mxu0 0.0
        %1386 = vmatpush1.msra.mxu0 0.0
        %1387 = vmatprep.subr.mxu0 0.0
        %1388 = vmatpush1.msra.mxu0 0.0
        %1389 = vmatprep.subr.mxu0 0.0
        %1390 = vmatpush1.msra.mxu0 0.0
        %1391 = vmatprep.subr.mxu0 0.0
        %1392 = vmatpush1.msra.mxu0 0.0
        %1393 = vmatprep.subr.mxu0 0.0
        %1394 = vmatpush1.msra.mxu0 0.0
        %1395 = vmatprep.subr.mxu0 0.0
        %1396 = vmatpush1.msra.mxu0 0.0
        %1397 = vmatprep.subr.mxu0 0.0
        %1398 = vmatpush1.msra.mxu0 0.0
        %1399 = vmatprep.subr.mxu0 0.0
        %1400 = vmatpush1.msra.mxu0 0.0
        %1401 = vmatprep.subr.mxu0 0.0
        %1402 = vmatpush1.msra.mxu0 0.0
        %1403 = vmatprep.subr.mxu0 0.0
        %1404 = vmatpush1.msra.mxu0 0.0
        %1405 = vmatprep.subr.mxu0 0.0
        %1406 = vmatpush1.msra.mxu0 0.0
        %1407 = vmatprep.subr.mxu0 0.0
        %1408 = vmatpush1.msra.mxu0 0.0
        %1409 = vmatprep.subr.mxu0 0.0
        %1410 = vmatpush1.msra.mxu0 0.0
        %1411 = vmatprep.subr.mxu0 0.0
        %1412 = vmatpush1.msra.mxu0 0.0
        %1413 = vmatprep.subr.mxu0 0.0
        %1414 = vmatpush1.msra.mxu0 0.0
        %1415 = vmatprep.subr.mxu0 0.0
        %1416 = vmatpush1.msra.mxu0 0.0
        %1417 = vmatprep.subr.mxu0 0.0
        %1418 = vmatpush1.msra.mxu0 0.0
        %1419 = vmatprep.subr.mxu0 0.0
        %1420 = vmatpush1.msra.mxu0 0.0
        %1421 = vmatprep.subr.mxu0 0.0
        %1422 = vmatpush1.msra.mxu0 0.0
        %1423 = vmatprep.subr.mxu0 0.0
        %1424 = vmatpush1.msra.mxu0 0.0
        %1425 = vmatprep.subr.mxu0 0.0
        %1426 = vmatpush1.msra.mxu0 0.0
        %1427 = vmatprep.subr.mxu0 0.0
        %1428 = vmatpush1.msra.mxu0 0.0
        %1429 = vmatprep.subr.mxu0 0.0
        %1430 = vmatpush1.msra.mxu0 0.0
        %1431 = vmatprep.subr.mxu0 0.0
        %1432 = vmatpush1.msra.mxu0 0.0
        %1433 = vmatprep.mubr.f32.mxu0 0.0
        %1434 = vmatmul.mubr.f32.gmra.mrb[0].mxu0 %v1349
        %v1435 = vpop.f32.mrb[0].mxu0
        %v1436 = vadd.f32 0.0, %v1435
        %v1437 = vpop.f32.mrb[0].mxu0
        %1438 = vmatprep.mubr.f32.mxu0 0.0
        %1439 = vmatmul.mubr.f32.gmra.mrb[0].mxu0 %v1352
        %v1440 = vpop.f32.mrb[0].mxu0
        %v1441 = vadd.f32 0.0, %v1440
        %v1442 = vpop.f32.mrb[0].mxu0
        %1443 = vmatprep.mubr.f32.mxu0 0.0
        %1444 = vmatmul.mubr.f32.gmra.mrb[0].mxu0 %v1355
        %v1445 = vpop.f32.mrb[0].mxu0
        %v1446 = vadd.f32 0.0, %v1445
        %v1447 = vpop.f32.mrb[0].mxu0
        %1448 = vmatprep.mubr.f32.mxu0 0.0
        %1449 = vmatmul.mubr.f32.gmra.mrb[0].mxu0 %v1358
        %v1450 = vpop.f32.mrb[0].mxu0
        %v1451 = vadd.f32 0.0, %v1450
        %v1452 = vpop.f32.mrb[0].mxu0
        %1453 = vmatprep.mubr.f32.mxu0 0.0
        %1454 = vmatmul.mubr.f32.gmra.mrb[0].mxu0 %v1361
        %v1455 = vpop.f32.mrb[0].mxu0
        %v1456 = vadd.f32 0.0, %v1455
        %v1457 = vpop.f32.mrb[0].mxu0
        %1458 = vmatprep.mubr.f32.mxu0 0.0
        %1459 = vmatmul.mubr.f32.gmra.mrb[0].mxu0 %v1364
        %v1460 = vpop.f32.mrb[0].mxu0
        %v1461 = vadd.f32 0.0, %v1460
        %v1462 = vpop.f32.mrb[0].mxu0
        %1463 = vdwg.mxu0
        %v1464 = vadd.f32 %v1334, %v1436
        %v1465 = vadd.f32 %v1335, %v1441
        %v1466 = vadd.f32 %v1336, %v1446
        %v1467 = vadd.f32 %v1337, %v1451
        %v1468 = vadd.f32 %v1338, %v1456
        %v1469 = vadd.f32 %v1339, %v1461
        %v1470 = vld [vmem:[#allocation2 + $0x12] sm:$0xff]
        %v1471 = vld [vmem:[#allocation2 + $0x1a] sm:$0xff]
        %v1472 = vld [vmem:[#allocation2 + $0x22] sm:$0xff]
        %v1473 = vld [vmem:[#allocation2 + $0x2a] sm:$0xff]
        %v1474 = vld [vmem:[#allocation2 + $0x32] sm:$0xff]
        %v1475 = vld [vmem:[#allocation2 + $0x3a] sm:$0xff]
        %s1476 = scalar_lea.vmem [#allocation7], 32
        %v1477 = vld [vmem:[%s1476] sm:$0xf]
        %v1479 = vsel %vm432, %v1470, 0
        %v1482 = vsel %vm432, %v1471, 0
        %v1485 = vsel %vm432, %v1472, 0
        %v1488 = vsel %vm432, %v1473, 0
        %v1491 = vsel %vm432, %v1474, 0
        %v1494 = vsel %vm432, %v1475, 0
        %v1497 = vsel %vm475, %v1477, 0
        %1499 = vmatprep.subr.mxu0 0.0
        %1500 = vmatpush1.msra.mxu0 %v1497
        %1501 = vmatprep.subr.mxu0 0.0
        %1502 = vmatpush1.msra.mxu0 0.0
        %1503 = vmatprep.subr.mxu0 0.0
        %1504 = vmatpush1.msra.mxu0 0.0
        %1505 = vmatprep.subr.mxu0 0.0
        %1506 = vmatpush1.msra.mxu0 0.0
        %1507 = vmatprep.subr.mxu0 0.0
        %1508 = vmatpush1.msra.mxu0 0.0
        %1509 = vmatprep.subr.mxu0 0.0
        %1510 = vmatpush1.msra.mxu0 0.0
        %1511 = vmatprep.subr.mxu0 0.0
        %1512 = vmatpush1.msra.mxu0 0.0
        %1513 = vmatprep.subr.mxu0 0.0
        %1514 = vmatpush1.msra.mxu0 0.0
        %1515 = vmatprep.subr.mxu0 0.0
        %1516 = vmatpush1.msra.mxu0 0.0
        %1517 = vmatprep.subr.mxu0 0.0
        %1518 = vmatpush1.msra.mxu0 0.0
        %1519 = vmatprep.subr.mxu0 0.0
        %1520 = vmatpush1.msra.mxu0 0.0
        %1521 = vmatprep.subr.mxu0 0.0
        %1522 = vmatpush1.msra.mxu0 0.0
        %1523 = vmatprep.subr.mxu0 0.0
        %1524 = vmatpush1.msra.mxu0 0.0
        %1525 = vmatprep.subr.mxu0 0.0
        %1526 = vmatpush1.msra.mxu0 0.0
        %1527 = vmatprep.subr.mxu0 0.0
        %1528 = vmatpush1.msra.mxu0 0.0
        %1529 = vmatprep.subr.mxu0 0.0
        %1530 = vmatpush1.msra.mxu0 0.0
        %1531 = vmatprep.subr.mxu0 0.0
        %1532 = vmatpush1.msra.mxu0 0.0
        %1533 = vmatprep.subr.mxu0 0.0
        %1534 = vmatpush1.msra.mxu0 0.0
        %1535 = vmatprep.subr.mxu0 0.0
        %1536 = vmatpush1.msra.mxu0 0.0
        %1537 = vmatprep.subr.mxu0 0.0
        %1538 = vmatpush1.msra.mxu0 0.0
        %1539 = vmatprep.subr.mxu0 0.0
        %1540 = vmatpush1.msra.mxu0 0.0
        %1541 = vmatprep.subr.mxu0 0.0
        %1542 = vmatpush1.msra.mxu0 0.0
        %1543 = vmatprep.subr.mxu0 0.0
        %1544 = vmatpush1.msra.mxu0 0.0
        %1545 = vmatprep.subr.mxu0 0.0
        %1546 = vmatpush1.msra.mxu0 0.0
        %1547 = vmatprep.subr.mxu0 0.0
        %1548 = vmatpush1.msra.mxu0 0.0
        %1549 = vmatprep.subr.mxu0 0.0
        %1550 = vmatpush1.msra.mxu0 0.0
        %1551 = vmatprep.subr.mxu0 0.0
        %1552 = vmatpush1.msra.mxu0 0.0
        %1553 = vmatprep.subr.mxu0 0.0
        %1554 = vmatpush1.msra.mxu0 0.0
        %1555 = vmatprep.subr.mxu0 0.0
        %1556 = vmatpush1.msra.mxu0 0.0
        %1557 = vmatprep.subr.mxu0 0.0
        %1558 = vmatpush1.msra.mxu0 0.0
        %1559 = vmatprep.subr.mxu0 0.0
        %1560 = vmatpush1.msra.mxu0 0.0
        %1561 = vmatprep.subr.mxu0 0.0
        %1562 = vmatpush1.msra.mxu0 0.0
        %1563 = vmatprep.mubr.f32.mxu0 0.0
        %1564 = vmatmul.mubr.f32.gmra.mrb[0].mxu0 %v1479
        %v1565 = vpop.f32.mrb[0].mxu0
        %v1566 = vadd.f32 0.0, %v1565
        %v1567 = vpop.f32.mrb[0].mxu0
        %1568 = vmatprep.mubr.f32.mxu0 0.0
        %1569 = vmatmul.mubr.f32.gmra.mrb[0].mxu0 %v1482
        %v1570 = vpop.f32.mrb[0].mxu0
        %v1571 = vadd.f32 0.0, %v1570
        %v1572 = vpop.f32.mrb[0].mxu0
        %1573 = vmatprep.mubr.f32.mxu0 0.0
        %1574 = vmatmul.mubr.f32.gmra.mrb[0].mxu0 %v1485
        %v1575 = vpop.f32.mrb[0].mxu0
        %v1576 = vadd.f32 0.0, %v1575
        %v1577 = vpop.f32.mrb[0].mxu0
        %1578 = vmatprep.mubr.f32.mxu0 0.0
        %1579 = vmatmul.mubr.f32.gmra.mrb[0].mxu0 %v1488
        %v1580 = vpop.f32.mrb[0].mxu0
        %v1581 = vadd.f32 0.0, %v1580
        %v1582 = vpop.f32.mrb[0].mxu0
        %1583 = vmatprep.mubr.f32.mxu0 0.0
        %1584 = vmatmul.mubr.f32.gmra.mrb[0].mxu0 %v1491
        %v1585 = vpop.f32.mrb[0].mxu0
        %v1586 = vadd.f32 0.0, %v1585
        %v1587 = vpop.f32.mrb[0].mxu0
        %1588 = vmatprep.mubr.f32.mxu0 0.0
        %1589 = vmatmul.mubr.f32.gmra.mrb[0].mxu0 %v1494
        %v1590 = vpop.f32.mrb[0].mxu0
        %v1591 = vadd.f32 0.0, %v1590
        %v1592 = vpop.f32.mrb[0].mxu0
        %1593 = vdwg.mxu0
        %v1594 = vadd.f32 %v1464, %v1566
        %v1595 = vadd.f32 %v1465, %v1571
        %v1596 = vadd.f32 %v1466, %v1576
        %v1597 = vadd.f32 %v1467, %v1581
        %v1598 = vadd.f32 %v1468, %v1586
        %v1599 = vadd.f32 %v1469, %v1591
        %v1600 = vld [vmem:[%s2] sm:$0x1]
        %v1602 = vlaneseq
        %v1603 = vshrl.u32 %v1602, 7
        %v1604 = vsub.s32 0, %v1603
        %v1605 = vrot.slane %v1600, %v1604
        %v1607 = vmul.f32 %v1594, %v1605
        %v1608 = vmul.f32 %v1595, %v1605
        %v1609 = vmul.f32 %v1596, %v1605
        %v1610 = vmul.f32 %v1597, %v1605
        %v1611 = vmul.f32 %v1598, %v1605
        %v1612 = vmul.f32 %v1599, %v1605
        %v1613 = vld [vmem:[%s3] sm:$0x1]
        %v1615 = vlaneseq
        %v1616 = vshrl.u32 %v1615, 7
        %v1617 = vsub.s32 0, %v1616
        %v1618 = vrot.slane %v1613, %v1617
        %v1620 = vadd.f32 %v1607, %v1618
        %v1621 = vadd.f32 %v1608, %v1618
        %v1622 = vadd.f32 %v1609, %v1618
        %v1623 = vadd.f32 %v1610, %v1618
        %v1624 = vadd.f32 %v1611, %v1618
        %v1625 = vadd.f32 %v1612, %v1618
        %v1626 = vmax.f32 %v1620, 0.0
        %v1627 = vmax.f32 %v1621, 0.0
        %v1628 = vmax.f32 %v1622, 0.0
        %v1629 = vmax.f32 %v1623, 0.0
        %v1630 = vmax.f32 %v1624, 0.0
        %v1631 = vmax.f32 %v1625, 0.0
        %1632 = vst [vmem:[#allocation3] sm:$0xff] %v1626
        %1633 = vst [vmem:[#allocation3 + $0x8] sm:$0xff] %v1627
        %1634 = vst [vmem:[#allocation3 + $0x10] sm:$0xff] %v1628
        %1635 = vst [vmem:[#allocation3 + $0x18] sm:$0xff] %v1629
        %1636 = vst [vmem:[#allocation3 + $0x20] sm:$0xff] %v1630
        %1637 = vst [vmem:[#allocation3 + $0x28] sm:$0xff] %v1631
        %1638 = vst [vmem:[#allocation3 + $0x30] sm:$0xff] 0.0
        %v1639 = vld [vmem:[#allocation3] sm:$0xff]
        %v1640 = vld [vmem:[#allocation3 + $0x8] sm:$0xff]
        %v1641 = vld [vmem:[#allocation3 + $0x10] sm:$0xff]
        %v1642 = vld [vmem:[#allocation3 + $0x18] sm:$0xff]
        %v1643 = vld [vmem:[#allocation9] sm:$0xff]
        %v1644 = vld [vmem:[#allocation9 + $0x8] sm:$0xff]
        %v1645 = vld [vmem:[#allocation9 + $0x10] sm:$0xff]
        %v1646 = vld [vmem:[#allocation9 + $0x18] sm:$0xff]
        %v1647 = vld [vmem:[#allocation9 + $0x20] sm:$0xff]
        %v1648 = vld [vmem:[#allocation9 + $0x28] sm:$0xff]
        %v1649 = vld [vmem:[#allocation9 + $0x30] sm:$0xff]
        %v1650 = vld [vmem:[#allocation9 + $0x38] sm:$0xff]
        %v1651 = vld [vmem:[#allocation9 + $0x40] sm:$0xff]
        %v1652 = vld [vmem:[#allocation9 + $0x48] sm:$0xff]
        %v1653 = vld [vmem:[#allocation9 + $0x50] sm:$0xff]
        %v1654 = vld [vmem:[#allocation9 + $0x58] sm:$0xff]
        %v1655 = vld [vmem:[#allocation9 + $0x60] sm:$0xff]
        %v1656 = vld [vmem:[#allocation9 + $0x68] sm:$0xff]
        %v1657 = vld [vmem:[#allocation9 + $0x70] sm:$0xff]
        %v1658 = vld [vmem:[#allocation9 + $0x78] sm:$0xff]
        %v1659 = vld [vmem:[#allocation3 + $0x1] sm:$0xff]
        %v1660 = vld [vmem:[#allocation3 + $0x9] sm:$0xff]
        %v1661 = vld [vmem:[#allocation3 + $0x11] sm:$0xff]
        %v1662 = vld [vmem:[#allocation3 + $0x19] sm:$0xff]
        %s1663 = scalar_lea.vmem [#allocation9], 128
        %v1664 = vld [vmem:[%s1663] sm:$0xff]
        %v1665 = vld [vmem:[%s1663 + $0x8] sm:$0xff]
        %v1666 = vld [vmem:[%s1663 + $0x10] sm:$0xff]
        %v1667 = vld [vmem:[%s1663 + $0x18] sm:$0xff]
        %v1668 = vld [vmem:[%s1663 + $0x20] sm:$0xff]
        %v1669 = vld [vmem:[%s1663 + $0x28] sm:$0xff]
        %v1670 = vld [vmem:[%s1663 + $0x30] sm:$0xff]
        %v1671 = vld [vmem:[%s1663 + $0x38] sm:$0xff]
        %v1672 = vld [vmem:[%s1663 + $0x40] sm:$0xff]
        %v1673 = vld [vmem:[%s1663 + $0x48] sm:$0xff]
        %v1674 = vld [vmem:[%s1663 + $0x50] sm:$0xff]
        %v1675 = vld [vmem:[%s1663 + $0x58] sm:$0xff]
        %v1676 = vld [vmem:[%s1663 + $0x60] sm:$0xff]
        %v1677 = vld [vmem:[%s1663 + $0x68] sm:$0xff]
        %v1678 = vld [vmem:[%s1663 + $0x70] sm:$0xff]
        %v1679 = vld [vmem:[%s1663 + $0x78] sm:$0xff]
        %1680 = vmatprep.subr.mxu0 0.0
        %1681 = vmatpush1.msra.mxu0 %v1664
        %1682 = vmatprep.subr.mxu0 0.0
        %1683 = vmatpush1.msra.mxu0 %v1665
        %1684 = vmatprep.subr.mxu0 0.0
        %1685 = vmatpush1.msra.mxu0 %v1666
        %1686 = vmatprep.subr.mxu0 0.0
        %1687 = vmatpush1.msra.mxu0 %v1667
        %1688 = vmatprep.subr.mxu0 0.0
        %1689 = vmatpush1.msra.mxu0 %v1668
        %1690 = vmatprep.subr.mxu0 0.0
        %1691 = vmatpush1.msra.mxu0 %v1669
        %1692 = vmatprep.subr.mxu0 0.0
        %1693 = vmatpush1.msra.mxu0 %v1670
        %1694 = vmatprep.subr.mxu0 0.0
        %1695 = vmatpush1.msra.mxu0 %v1671
        %1696 = vmatprep.subr.mxu0 0.0
        %1697 = vmatpush1.msra.mxu0 %v1672
        %1698 = vmatprep.subr.mxu0 0.0
        %1699 = vmatpush1.msra.mxu0 %v1673
        %1700 = vmatprep.subr.mxu0 0.0
        %1701 = vmatpush1.msra.mxu0 %v1674
        %1702 = vmatprep.subr.mxu0 0.0
        %1703 = vmatpush1.msra.mxu0 %v1675
        %1704 = vmatprep.subr.mxu0 0.0
        %1705 = vmatpush1.msra.mxu0 %v1676
        %1706 = vmatprep.subr.mxu0 0.0
        %1707 = vmatpush1.msra.mxu0 %v1677
        %1708 = vmatprep.subr.mxu0 0.0
        %1709 = vmatpush1.msra.mxu0 %v1678
        %1710 = vmatprep.subr.mxu0 0.0
        %1711 = vmatpush1.msra.mxu0 %v1679
        %1712 = vmatprep.subr.mxu0 0.0
        %1713 = vmatpush1.msra.mxu0 0.0
        %1714 = vmatprep.subr.mxu0 0.0
        %1715 = vmatpush1.msra.mxu0 0.0
        %1716 = vmatprep.subr.mxu0 0.0
        %1717 = vmatpush1.msra.mxu0 0.0
        %1718 = vmatprep.subr.mxu0 0.0
        %1719 = vmatpush1.msra.mxu0 0.0
        %1720 = vmatprep.subr.mxu0 0.0
        %1721 = vmatpush1.msra.mxu0 0.0
        %1722 = vmatprep.subr.mxu0 0.0
        %1723 = vmatpush1.msra.mxu0 0.0
        %1724 = vmatprep.subr.mxu0 0.0
        %1725 = vmatpush1.msra.mxu0 0.0
        %1726 = vmatprep.subr.mxu0 0.0
        %1727 = vmatpush1.msra.mxu0 0.0
        %1728 = vmatprep.subr.mxu0 0.0
        %1729 = vmatpush1.msra.mxu0 0.0
        %1730 = vmatprep.subr.mxu0 0.0
        %1731 = vmatpush1.msra.mxu0 0.0
        %1732 = vmatprep.subr.mxu0 0.0
        %1733 = vmatpush1.msra.mxu0 0.0
        %1734 = vmatprep.subr.mxu0 0.0
        %1735 = vmatpush1.msra.mxu0 0.0
        %1736 = vmatprep.subr.mxu0 0.0
        %1737 = vmatpush1.msra.mxu0 0.0
        %1738 = vmatprep.subr.mxu0 0.0
        %1739 = vmatpush1.msra.mxu0 0.0
        %1740 = vmatprep.subr.mxu0 0.0
        %1741 = vmatpush1.msra.mxu0 0.0
        %1742 = vmatprep.subr.mxu0 0.0
        %1743 = vmatpush1.msra.mxu0 0.0
        %1744 = vmatprep.mubr.f32.mxu0 0.0
        %1745 = vmatmul.mubr.f32.gmra.mrb[0].mxu0 %v1659
        %v1746 = vpop.f32.mrb[0].mxu0
        %v1747 = vadd.f32 0.0, %v1746
        %v1748 = vpop.f32.mrb[0].mxu0
        %1749 = vmatprep.mubr.f32.mxu0 0.0
        %1750 = vmatmul.mubr.f32.gmra.mrb[0].mxu0 %v1660
        %v1751 = vpop.f32.mrb[0].mxu0
        %v1752 = vadd.f32 0.0, %v1751
        %v1753 = vpop.f32.mrb[0].mxu0
        %1754 = vmatprep.mubr.f32.mxu0 0.0
        %1755 = vmatmul.mubr.f32.gmra.mrb[0].mxu0 %v1661
        %v1756 = vpop.f32.mrb[0].mxu0
        %v1757 = vadd.f32 0.0, %v1756
        %v1758 = vpop.f32.mrb[0].mxu0
        %1759 = vmatprep.mubr.f32.mxu0 0.0
        %1760 = vmatmul.mubr.f32.gmra.mrb[0].mxu0 %v1662
        %v1761 = vpop.f32.mrb[0].mxu0
        %v1762 = vadd.f32 0.0, %v1761
        %v1763 = vpop.f32.mrb[0].mxu0
        %1764 = vdwg.mxu0
        %1765 = vmatprep.subr.mxu0 0.0
        %1766 = vmatpush1.msra.mxu0 %v1643
        %1767 = vmatprep.subr.mxu0 0.0
        %1768 = vmatpush1.msra.mxu0 %v1644
        %1769 = vmatprep.subr.mxu0 0.0
        %1770 = vmatpush1.msra.mxu0 %v1645
        %1771 = vmatprep.subr.mxu0 0.0
        %1772 = vmatpush1.msra.mxu0 %v1646
        %1773 = vmatprep.subr.mxu0 0.0
        %1774 = vmatpush1.msra.mxu0 %v1647
        %1775 = vmatprep.subr.mxu0 0.0
        %1776 = vmatpush1.msra.mxu0 %v1648
        %1777 = vmatprep.subr.mxu0 0.0
        %1778 = vmatpush1.msra.mxu0 %v1649
        %1779 = vmatprep.subr.mxu0 0.0
        %1780 = vmatpush1.msra.mxu0 %v1650
        %1781 = vmatprep.subr.mxu0 0.0
        %1782 = vmatpush1.msra.mxu0 %v1651
        %1783 = vmatprep.subr.mxu0 0.0
        %1784 = vmatpush1.msra.mxu0 %v1652
        %1785 = vmatprep.subr.mxu0 0.0
        %1786 = vmatpush1.msra.mxu0 %v1653
        %1787 = vmatprep.subr.mxu0 0.0
        %1788 = vmatpush1.msra.mxu0 %v1654
        %1789 = vmatprep.subr.mxu0 0.0
        %1790 = vmatpush1.msra.mxu0 %v1655
        %1791 = vmatprep.subr.mxu0 0.0
        %1792 = vmatpush1.msra.mxu0 %v1656
        %1793 = vmatprep.subr.mxu0 0.0
        %1794 = vmatpush1.msra.mxu0 %v1657
        %1795 = vmatprep.subr.mxu0 0.0
        %1796 = vmatpush1.msra.mxu0 %v1658
        %1797 = vmatprep.subr.mxu0 0.0
        %1798 = vmatpush1.msra.mxu0 0.0
        %1799 = vmatprep.subr.mxu0 0.0
        %1800 = vmatpush1.msra.mxu0 0.0
        %1801 = vmatprep.subr.mxu0 0.0
        %1802 = vmatpush1.msra.mxu0 0.0
        %1803 = vmatprep.subr.mxu0 0.0
        %1804 = vmatpush1.msra.mxu0 0.0
        %1805 = vmatprep.subr.mxu0 0.0
        %1806 = vmatpush1.msra.mxu0 0.0
        %1807 = vmatprep.subr.mxu0 0.0
        %1808 = vmatpush1.msra.mxu0 0.0
        %1809 = vmatprep.subr.mxu0 0.0
        %1810 = vmatpush1.msra.mxu0 0.0
        %1811 = vmatprep.subr.mxu0 0.0
        %1812 = vmatpush1.msra.mxu0 0.0
        %1813 = vmatprep.subr.mxu0 0.0
        %1814 = vmatpush1.msra.mxu0 0.0
        %1815 = vmatprep.subr.mxu0 0.0
        %1816 = vmatpush1.msra.mxu0 0.0
        %1817 = vmatprep.subr.mxu0 0.0
        %1818 = vmatpush1.msra.mxu0 0.0
        %1819 = vmatprep.subr.mxu0 0.0
        %1820 = vmatpush1.msra.mxu0 0.0
        %1821 = vmatprep.subr.mxu0 0.0
        %1822 = vmatpush1.msra.mxu0 0.0
        %1823 = vmatprep.subr.mxu0 0.0
        %1824 = vmatpush1.msra.mxu0 0.0
        %1825 = vmatprep.subr.mxu0 0.0
        %1826 = vmatpush1.msra.mxu0 0.0
        %1827 = vmatprep.subr.mxu0 0.0
        %1828 = vmatpush1.msra.mxu0 0.0
        %1829 = vmatprep.mubr.f32.mxu0 0.0
        %1830 = vmatmul.mubr.f32.gmra.mrb[0].mxu0 %v1639
        %v1831 = vpop.f32.mrb[0].mxu0
        %v1832 = vadd.f32 %v1747, %v1831
        %v1833 = vpop.f32.mrb[0].mxu0
        %1834 = vmatprep.mubr.f32.mxu0 0.0
        %1835 = vmatmul.mubr.f32.gmra.mrb[0].mxu0 %v1640
        %v1836 = vpop.f32.mrb[0].mxu0
        %v1837 = vadd.f32 %v1752, %v1836
        %v1838 = vpop.f32.mrb[0].mxu0
        %1839 = vmatprep.mubr.f32.mxu0 0.0
        %1840 = vmatmul.mubr.f32.gmra.mrb[0].mxu0 %v1641
        %v1841 = vpop.f32.mrb[0].mxu0
        %v1842 = vadd.f32 %v1757, %v1841
        %v1843 = vpop.f32.mrb[0].mxu0
        %1844 = vmatprep.mubr.f32.mxu0 0.0
        %1845 = vmatmul.mubr.f32.gmra.mrb[0].mxu0 %v1642
        %v1846 = vpop.f32.mrb[0].mxu0
        %v1847 = vadd.f32 %v1762, %v1846
        %v1848 = vpop.f32.mrb[0].mxu0
        %1849 = vdwg.mxu0
        %v1850 = vld [vmem:[#allocation3 + $0x2] sm:$0xff]
        %v1851 = vld [vmem:[#allocation3 + $0xa] sm:$0xff]
        %v1852 = vld [vmem:[#allocation3 + $0x12] sm:$0xff]
        %v1853 = vld [vmem:[#allocation3 + $0x1a] sm:$0xff]
        %s1854 = scalar_lea.vmem [#allocation9], 256
        %v1855 = vld [vmem:[%s1854] sm:$0xff]
        %v1856 = vld [vmem:[%s1854 + $0x8] sm:$0xff]
        %v1857 = vld [vmem:[%s1854 + $0x10] sm:$0xff]
        %v1858 = vld [vmem:[%s1854 + $0x18] sm:$0xff]
        %v1859 = vld [vmem:[%s1854 + $0x20] sm:$0xff]
        %v1860 = vld [vmem:[%s1854 + $0x28] sm:$0xff]
        %v1861 = vld [vmem:[%s1854 + $0x30] sm:$0xff]
        %v1862 = vld [vmem:[%s1854 + $0x38] sm:$0xff]
        %v1863 = vld [vmem:[%s1854 + $0x40] sm:$0xff]
        %v1864 = vld [vmem:[%s1854 + $0x48] sm:$0xff]
        %v1865 = vld [vmem:[%s1854 + $0x50] sm:$0xff]
        %v1866 = vld [vmem:[%s1854 + $0x58] sm:$0xff]
        %v1867 = vld [vmem:[%s1854 + $0x60] sm:$0xff]
        %v1868 = vld [vmem:[%s1854 + $0x68] sm:$0xff]
        %v1869 = vld [vmem:[%s1854 + $0x70] sm:$0xff]
        %v1870 = vld [vmem:[%s1854 + $0x78] sm:$0xff]
        %1871 = vmatprep.subr.mxu0 0.0
        %1872 = vmatpush1.msra.mxu0 %v1855
        %1873 = vmatprep.subr.mxu0 0.0
        %1874 = vmatpush1.msra.mxu0 %v1856
        %1875 = vmatprep.subr.mxu0 0.0
        %1876 = vmatpush1.msra.mxu0 %v1857
        %1877 = vmatprep.subr.mxu0 0.0
        %1878 = vmatpush1.msra.mxu0 %v1858
        %1879 = vmatprep.subr.mxu0 0.0
        %1880 = vmatpush1.msra.mxu0 %v1859
        %1881 = vmatprep.subr.mxu0 0.0
        %1882 = vmatpush1.msra.mxu0 %v1860
        %1883 = vmatprep.subr.mxu0 0.0
        %1884 = vmatpush1.msra.mxu0 %v1861
        %1885 = vmatprep.subr.mxu0 0.0
        %1886 = vmatpush1.msra.mxu0 %v1862
        %1887 = vmatprep.subr.mxu0 0.0
        %1888 = vmatpush1.msra.mxu0 %v1863
        %1889 = vmatprep.subr.mxu0 0.0
        %1890 = vmatpush1.msra.mxu0 %v1864
        %1891 = vmatprep.subr.mxu0 0.0
        %1892 = vmatpush1.msra.mxu0 %v1865
        %1893 = vmatprep.subr.mxu0 0.0
        %1894 = vmatpush1.msra.mxu0 %v1866
        %1895 = vmatprep.subr.mxu0 0.0
        %1896 = vmatpush1.msra.mxu0 %v1867
        %1897 = vmatprep.subr.mxu0 0.0
        %1898 = vmatpush1.msra.mxu0 %v1868
        %1899 = vmatprep.subr.mxu0 0.0
        %1900 = vmatpush1.msra.mxu0 %v1869
        %1901 = vmatprep.subr.mxu0 0.0
        %1902 = vmatpush1.msra.mxu0 %v1870
        %1903 = vmatprep.subr.mxu0 0.0
        %1904 = vmatpush1.msra.mxu0 0.0
        %1905 = vmatprep.subr.mxu0 0.0
        %1906 = vmatpush1.msra.mxu0 0.0
        %1907 = vmatprep.subr.mxu0 0.0
        %1908 = vmatpush1.msra.mxu0 0.0
        %1909 = vmatprep.subr.mxu0 0.0
        %1910 = vmatpush1.msra.mxu0 0.0
        %1911 = vmatprep.subr.mxu0 0.0
        %1912 = vmatpush1.msra.mxu0 0.0
        %1913 = vmatprep.subr.mxu0 0.0
        %1914 = vmatpush1.msra.mxu0 0.0
        %1915 = vmatprep.subr.mxu0 0.0
        %1916 = vmatpush1.msra.mxu0 0.0
        %1917 = vmatprep.subr.mxu0 0.0
        %1918 = vmatpush1.msra.mxu0 0.0
        %1919 = vmatprep.subr.mxu0 0.0
        %1920 = vmatpush1.msra.mxu0 0.0
        %1921 = vmatprep.subr.mxu0 0.0
        %1922 = vmatpush1.msra.mxu0 0.0
        %1923 = vmatprep.subr.mxu0 0.0
        %1924 = vmatpush1.msra.mxu0 0.0
        %1925 = vmatprep.subr.mxu0 0.0
        %1926 = vmatpush1.msra.mxu0 0.0
        %1927 = vmatprep.subr.mxu0 0.0
        %1928 = vmatpush1.msra.mxu0 0.0
        %1929 = vmatprep.subr.mxu0 0.0
        %1930 = vmatpush1.msra.mxu0 0.0
        %1931 = vmatprep.subr.mxu0 0.0
        %1932 = vmatpush1.msra.mxu0 0.0
        %1933 = vmatprep.subr.mxu0 0.0
        %1934 = vmatpush1.msra.mxu0 0.0
        %1935 = vmatprep.mubr.f32.mxu0 0.0
        %1936 = vmatmul.mubr.f32.gmra.mrb[0].mxu0 %v1850
        %v1937 = vpop.f32.mrb[0].mxu0
        %v1938 = vadd.f32 0.0, %v1937
        %v1939 = vpop.f32.mrb[0].mxu0
        %1940 = vmatprep.mubr.f32.mxu0 0.0
        %1941 = vmatmul.mubr.f32.gmra.mrb[0].mxu0 %v1851
        %v1942 = vpop.f32.mrb[0].mxu0
        %v1943 = vadd.f32 0.0, %v1942
        %v1944 = vpop.f32.mrb[0].mxu0
        %1945 = vmatprep.mubr.f32.mxu0 0.0
        %1946 = vmatmul.mubr.f32.gmra.mrb[0].mxu0 %v1852
        %v1947 = vpop.f32.mrb[0].mxu0
        %v1948 = vadd.f32 0.0, %v1947
        %v1949 = vpop.f32.mrb[0].mxu0
        %1950 = vmatprep.mubr.f32.mxu0 0.0
        %1951 = vmatmul.mubr.f32.gmra.mrb[0].mxu0 %v1853
        %v1952 = vpop.f32.mrb[0].mxu0
        %v1953 = vadd.f32 0.0, %v1952
        %v1954 = vpop.f32.mrb[0].mxu0
        %1955 = vdwg.mxu0
        %v1956 = vadd.f32 %v1832, %v1938
        %v1957 = vadd.f32 %v1837, %v1943
        %v1958 = vadd.f32 %v1842, %v1948
        %v1959 = vadd.f32 %v1847, %v1953
        %v1960 = vld [vmem:[#allocation3 + $0x8] sm:$0xff]
        %v1961 = vld [vmem:[#allocation3 + $0x10] sm:$0xff]
        %v1962 = vld [vmem:[#allocation3 + $0x18] sm:$0xff]
        %v1963 = vld [vmem:[#allocation3 + $0x20] sm:$0xff]
        %s1964 = scalar_lea.vmem [#allocation9], 384
        %v1965 = vld [vmem:[%s1964] sm:$0xff]
        %v1966 = vld [vmem:[%s1964 + $0x8] sm:$0xff]
        %v1967 = vld [vmem:[%s1964 + $0x10] sm:$0xff]
        %v1968 = vld [vmem:[%s1964 + $0x18] sm:$0xff]
        %v1969 = vld [vmem:[%s1964 + $0x20] sm:$0xff]
        %v1970 = vld [vmem:[%s1964 + $0x28] sm:$0xff]
        %v1971 = vld [vmem:[%s1964 + $0x30] sm:$0xff]
        %v1972 = vld [vmem:[%s1964 + $0x38] sm:$0xff]
        %v1973 = vld [vmem:[%s1964 + $0x40] sm:$0xff]
        %v1974 = vld [vmem:[%s1964 + $0x48] sm:$0xff]
        %v1975 = vld [vmem:[%s1964 + $0x50] sm:$0xff]
        %v1976 = vld [vmem:[%s1964 + $0x58] sm:$0xff]
        %v1977 = vld [vmem:[%s1964 + $0x60] sm:$0xff]
        %v1978 = vld [vmem:[%s1964 + $0x68] sm:$0xff]
        %v1979 = vld [vmem:[%s1964 + $0x70] sm:$0xff]
        %v1980 = vld [vmem:[%s1964 + $0x78] sm:$0xff]
        %1981 = vmatprep.subr.mxu0 0.0
        %1982 = vmatpush1.msra.mxu0 %v1965
        %1983 = vmatprep.subr.mxu0 0.0
        %1984 = vmatpush1.msra.mxu0 %v1966
        %1985 = vmatprep.subr.mxu0 0.0
        %1986 = vmatpush1.msra.mxu0 %v1967
        %1987 = vmatprep.subr.mxu0 0.0
        %1988 = vmatpush1.msra.mxu0 %v1968
        %1989 = vmatprep.subr.mxu0 0.0
        %1990 = vmatpush1.msra.mxu0 %v1969
        %1991 = vmatprep.subr.mxu0 0.0
        %1992 = vmatpush1.msra.mxu0 %v1970
        %1993 = vmatprep.subr.mxu0 0.0
        %1994 = vmatpush1.msra.mxu0 %v1971
        %1995 = vmatprep.subr.mxu0 0.0
        %1996 = vmatpush1.msra.mxu0 %v1972
        %1997 = vmatprep.subr.mxu0 0.0
        %1998 = vmatpush1.msra.mxu0 %v1973
        %1999 = vmatprep.subr.mxu0 0.0
        %2000 = vmatpush1.msra.mxu0 %v1974
        %2001 = vmatprep.subr.mxu0 0.0
        %2002 = vmatpush1.msra.mxu0 %v1975
        %2003 = vmatprep.subr.mxu0 0.0
        %2004 = vmatpush1.msra.mxu0 %v1976
        %2005 = vmatprep.subr.mxu0 0.0
        %2006 = vmatpush1.msra.mxu0 %v1977
        %2007 = vmatprep.subr.mxu0 0.0
        %2008 = vmatpush1.msra.mxu0 %v1978
        %2009 = vmatprep.subr.mxu0 0.0
        %2010 = vmatpush1.msra.mxu0 %v1979
        %2011 = vmatprep.subr.mxu0 0.0
        %2012 = vmatpush1.msra.mxu0 %v1980
        %2013 = vmatprep.subr.mxu0 0.0
        %2014 = vmatpush1.msra.mxu0 0.0
        %2015 = vmatprep.subr.mxu0 0.0
        %2016 = vmatpush1.msra.mxu0 0.0
        %2017 = vmatprep.subr.mxu0 0.0
        %2018 = vmatpush1.msra.mxu0 0.0
        %2019 = vmatprep.subr.mxu0 0.0
        %2020 = vmatpush1.msra.mxu0 0.0
        %2021 = vmatprep.subr.mxu0 0.0
        %2022 = vmatpush1.msra.mxu0 0.0
        %2023 = vmatprep.subr.mxu0 0.0
        %2024 = vmatpush1.msra.mxu0 0.0
        %2025 = vmatprep.subr.mxu0 0.0
        %2026 = vmatpush1.msra.mxu0 0.0
        %2027 = vmatprep.subr.mxu0 0.0
        %2028 = vmatpush1.msra.mxu0 0.0
        %2029 = vmatprep.subr.mxu0 0.0
        %2030 = vmatpush1.msra.mxu0 0.0
        %2031 = vmatprep.subr.mxu0 0.0
        %2032 = vmatpush1.msra.mxu0 0.0
        %2033 = vmatprep.subr.mxu0 0.0
        %2034 = vmatpush1.msra.mxu0 0.0
        %2035 = vmatprep.subr.mxu0 0.0
        %2036 = vmatpush1.msra.mxu0 0.0
        %2037 = vmatprep.subr.mxu0 0.0
        %2038 = vmatpush1.msra.mxu0 0.0
        %2039 = vmatprep.subr.mxu0 0.0
        %2040 = vmatpush1.msra.mxu0 0.0
        %2041 = vmatprep.subr.mxu0 0.0
        %2042 = vmatpush1.msra.mxu0 0.0
        %2043 = vmatprep.subr.mxu0 0.0
        %2044 = vmatpush1.msra.mxu0 0.0
        %2045 = vmatprep.mubr.f32.mxu0 0.0
        %2046 = vmatmul.mubr.f32.gmra.mrb[0].mxu0 %v1960
        %v2047 = vpop.f32.mrb[0].mxu0
        %v2048 = vadd.f32 0.0, %v2047
        %v2049 = vpop.f32.mrb[0].mxu0
        %2050 = vmatprep.mubr.f32.mxu0 0.0
        %2051 = vmatmul.mubr.f32.gmra.mrb[0].mxu0 %v1961
        %v2052 = vpop.f32.mrb[0].mxu0
        %v2053 = vadd.f32 0.0, %v2052
        %v2054 = vpop.f32.mrb[0].mxu0
        %2055 = vmatprep.mubr.f32.mxu0 0.0
        %2056 = vmatmul.mubr.f32.gmra.mrb[0].mxu0 %v1962
        %v2057 = vpop.f32.mrb[0].mxu0
        %v2058 = vadd.f32 0.0, %v2057
        %v2059 = vpop.f32.mrb[0].mxu0
        %2060 = vmatprep.mubr.f32.mxu0 0.0
        %2061 = vmatmul.mubr.f32.gmra.mrb[0].mxu0 %v1963
        %v2062 = vpop.f32.mrb[0].mxu0
        %v2063 = vadd.f32 0.0, %v2062
        %v2064 = vpop.f32.mrb[0].mxu0
        %2065 = vdwg.mxu0
        %v2066 = vadd.f32 %v1956, %v2048
        %v2067 = vadd.f32 %v1957, %v2053
        %v2068 = vadd.f32 %v1958, %v2058
        %v2069 = vadd.f32 %v1959, %v2063
        %v2070 = vld [vmem:[#allocation3 + $0x9] sm:$0xff]
        %v2071 = vld [vmem:[#allocation3 + $0x11] sm:$0xff]
        %v2072 = vld [vmem:[#allocation3 + $0x19] sm:$0xff]
        %v2073 = vld [vmem:[#allocation3 + $0x21] sm:$0xff]
        %s2074 = scalar_lea.vmem [#allocation9], 512
        %v2075 = vld [vmem:[%s2074] sm:$0xff]
        %v2076 = vld [vmem:[%s2074 + $0x8] sm:$0xff]
        %v2077 = vld [vmem:[%s2074 + $0x10] sm:$0xff]
        %v2078 = vld [vmem:[%s2074 + $0x18] sm:$0xff]
        %v2079 = vld [vmem:[%s2074 + $0x20] sm:$0xff]
        %v2080 = vld [vmem:[%s2074 + $0x28] sm:$0xff]
        %v2081 = vld [vmem:[%s2074 + $0x30] sm:$0xff]
        %v2082 = vld [vmem:[%s2074 + $0x38] sm:$0xff]
        %v2083 = vld [vmem:[%s2074 + $0x40] sm:$0xff]
        %v2084 = vld [vmem:[%s2074 + $0x48] sm:$0xff]
        %v2085 = vld [vmem:[%s2074 + $0x50] sm:$0xff]
        %v2086 = vld [vmem:[%s2074 + $0x58] sm:$0xff]
        %v2087 = vld [vmem:[%s2074 + $0x60] sm:$0xff]
        %v2088 = vld [vmem:[%s2074 + $0x68] sm:$0xff]
        %v2089 = vld [vmem:[%s2074 + $0x70] sm:$0xff]
        %v2090 = vld [vmem:[%s2074 + $0x78] sm:$0xff]
        %2091 = vmatprep.subr.mxu0 0.0
        %2092 = vmatpush1.msra.mxu0 %v2075
        %2093 = vmatprep.subr.mxu0 0.0
        %2094 = vmatpush1.msra.mxu0 %v2076
        %2095 = vmatprep.subr.mxu0 0.0
        %2096 = vmatpush1.msra.mxu0 %v2077
        %2097 = vmatprep.subr.mxu0 0.0
        %2098 = vmatpush1.msra.mxu0 %v2078
        %2099 = vmatprep.subr.mxu0 0.0
        %2100 = vmatpush1.msra.mxu0 %v2079
        %2101 = vmatprep.subr.mxu0 0.0
        %2102 = vmatpush1.msra.mxu0 %v2080
        %2103 = vmatprep.subr.mxu0 0.0
        %2104 = vmatpush1.msra.mxu0 %v2081
        %2105 = vmatprep.subr.mxu0 0.0
        %2106 = vmatpush1.msra.mxu0 %v2082
        %2107 = vmatprep.subr.mxu0 0.0
        %2108 = vmatpush1.msra.mxu0 %v2083
        %2109 = vmatprep.subr.mxu0 0.0
        %2110 = vmatpush1.msra.mxu0 %v2084
        %2111 = vmatprep.subr.mxu0 0.0
        %2112 = vmatpush1.msra.mxu0 %v2085
        %2113 = vmatprep.subr.mxu0 0.0
        %2114 = vmatpush1.msra.mxu0 %v2086
        %2115 = vmatprep.subr.mxu0 0.0
        %2116 = vmatpush1.msra.mxu0 %v2087
        %2117 = vmatprep.subr.mxu0 0.0
        %2118 = vmatpush1.msra.mxu0 %v2088
        %2119 = vmatprep.subr.mxu0 0.0
        %2120 = vmatpush1.msra.mxu0 %v2089
        %2121 = vmatprep.subr.mxu0 0.0
        %2122 = vmatpush1.msra.mxu0 %v2090
        %2123 = vmatprep.subr.mxu0 0.0
        %2124 = vmatpush1.msra.mxu0 0.0
        %2125 = vmatprep.subr.mxu0 0.0
        %2126 = vmatpush1.msra.mxu0 0.0
        %2127 = vmatprep.subr.mxu0 0.0
        %2128 = vmatpush1.msra.mxu0 0.0
        %2129 = vmatprep.subr.mxu0 0.0
        %2130 = vmatpush1.msra.mxu0 0.0
        %2131 = vmatprep.subr.mxu0 0.0
        %2132 = vmatpush1.msra.mxu0 0.0
        %2133 = vmatprep.subr.mxu0 0.0
        %2134 = vmatpush1.msra.mxu0 0.0
        %2135 = vmatprep.subr.mxu0 0.0
        %2136 = vmatpush1.msra.mxu0 0.0
        %2137 = vmatprep.subr.mxu0 0.0
        %2138 = vmatpush1.msra.mxu0 0.0
        %2139 = vmatprep.subr.mxu0 0.0
        %2140 = vmatpush1.msra.mxu0 0.0
        %2141 = vmatprep.subr.mxu0 0.0
        %2142 = vmatpush1.msra.mxu0 0.0
        %2143 = vmatprep.subr.mxu0 0.0
        %2144 = vmatpush1.msra.mxu0 0.0
        %2145 = vmatprep.subr.mxu0 0.0
        %2146 = vmatpush1.msra.mxu0 0.0
        %2147 = vmatprep.subr.mxu0 0.0
        %2148 = vmatpush1.msra.mxu0 0.0
        %2149 = vmatprep.subr.mxu0 0.0
        %2150 = vmatpush1.msra.mxu0 0.0
        %2151 = vmatprep.subr.mxu0 0.0
        %2152 = vmatpush1.msra.mxu0 0.0
        %2153 = vmatprep.subr.mxu0 0.0
        %2154 = vmatpush1.msra.mxu0 0.0
        %2155 = vmatprep.mubr.f32.mxu0 0.0
        %2156 = vmatmul.mubr.f32.gmra.mrb[0].mxu0 %v2070
        %v2157 = vpop.f32.mrb[0].mxu0
        %v2158 = vadd.f32 0.0, %v2157
        %v2159 = vpop.f32.mrb[0].mxu0
        %2160 = vmatprep.mubr.f32.mxu0 0.0
        %2161 = vmatmul.mubr.f32.gmra.mrb[0].mxu0 %v2071
        %v2162 = vpop.f32.mrb[0].mxu0
        %v2163 = vadd.f32 0.0, %v2162
        %v2164 = vpop.f32.mrb[0].mxu0
        %2165 = vmatprep.mubr.f32.mxu0 0.0
        %2166 = vmatmul.mubr.f32.gmra.mrb[0].mxu0 %v2072
        %v2167 = vpop.f32.mrb[0].mxu0
        %v2168 = vadd.f32 0.0, %v2167
        %v2169 = vpop.f32.mrb[0].mxu0
        %2170 = vmatprep.mubr.f32.mxu0 0.0
        %2171 = vmatmul.mubr.f32.gmra.mrb[0].mxu0 %v2073
        %v2172 = vpop.f32.mrb[0].mxu0
        %v2173 = vadd.f32 0.0, %v2172
        %v2174 = vpop.f32.mrb[0].mxu0
        %2175 = vdwg.mxu0
        %v2176 = vadd.f32 %v2066, %v2158
        %v2177 = vadd.f32 %v2067, %v2163
        %v2178 = vadd.f32 %v2068, %v2168
        %v2179 = vadd.f32 %v2069, %v2173
        %v2180 = vld [vmem:[#allocation3 + $0xa] sm:$0xff]
        %v2181 = vld [vmem:[#allocation3 + $0x12] sm:$0xff]
        %v2182 = vld [vmem:[#allocation3 + $0x1a] sm:$0xff]
        %v2183 = vld [vmem:[#allocation3 + $0x22] sm:$0xff]
        %s2184 = scalar_lea.vmem [#allocation9], 640
        %v2185 = vld [vmem:[%s2184] sm:$0xff]
        %v2186 = vld [vmem:[%s2184 + $0x8] sm:$0xff]
        %v2187 = vld [vmem:[%s2184 + $0x10] sm:$0xff]
        %v2188 = vld [vmem:[%s2184 + $0x18] sm:$0xff]
        %v2189 = vld [vmem:[%s2184 + $0x20] sm:$0xff]
        %v2190 = vld [vmem:[%s2184 + $0x28] sm:$0xff]
        %v2191 = vld [vmem:[%s2184 + $0x30] sm:$0xff]
        %v2192 = vld [vmem:[%s2184 + $0x38] sm:$0xff]
        %v2193 = vld [vmem:[%s2184 + $0x40] sm:$0xff]
        %v2194 = vld [vmem:[%s2184 + $0x48] sm:$0xff]
        %v2195 = vld [vmem:[%s2184 + $0x50] sm:$0xff]
        %v2196 = vld [vmem:[%s2184 + $0x58] sm:$0xff]
        %v2197 = vld [vmem:[%s2184 + $0x60] sm:$0xff]
        %v2198 = vld [vmem:[%s2184 + $0x68] sm:$0xff]
        %v2199 = vld [vmem:[%s2184 + $0x70] sm:$0xff]
        %v2200 = vld [vmem:[%s2184 + $0x78] sm:$0xff]
        %2201 = vmatprep.subr.mxu0 0.0
        %2202 = vmatpush1.msra.mxu0 %v2185
        %2203 = vmatprep.subr.mxu0 0.0
        %2204 = vmatpush1.msra.mxu0 %v2186
        %2205 = vmatprep.subr.mxu0 0.0
        %2206 = vmatpush1.msra.mxu0 %v2187
        %2207 = vmatprep.subr.mxu0 0.0
        %2208 = vmatpush1.msra.mxu0 %v2188
        %2209 = vmatprep.subr.mxu0 0.0
        %2210 = vmatpush1.msra.mxu0 %v2189
        %2211 = vmatprep.subr.mxu0 0.0
        %2212 = vmatpush1.msra.mxu0 %v2190
        %2213 = vmatprep.subr.mxu0 0.0
        %2214 = vmatpush1.msra.mxu0 %v2191
        %2215 = vmatprep.subr.mxu0 0.0
        %2216 = vmatpush1.msra.mxu0 %v2192
        %2217 = vmatprep.subr.mxu0 0.0
        %2218 = vmatpush1.msra.mxu0 %v2193
        %2219 = vmatprep.subr.mxu0 0.0
        %2220 = vmatpush1.msra.mxu0 %v2194
        %2221 = vmatprep.subr.mxu0 0.0
        %2222 = vmatpush1.msra.mxu0 %v2195
        %2223 = vmatprep.subr.mxu0 0.0
        %2224 = vmatpush1.msra.mxu0 %v2196
        %2225 = vmatprep.subr.mxu0 0.0
        %2226 = vmatpush1.msra.mxu0 %v2197
        %2227 = vmatprep.subr.mxu0 0.0
        %2228 = vmatpush1.msra.mxu0 %v2198
        %2229 = vmatprep.subr.mxu0 0.0
        %2230 = vmatpush1.msra.mxu0 %v2199
        %2231 = vmatprep.subr.mxu0 0.0
        %2232 = vmatpush1.msra.mxu0 %v2200
        %2233 = vmatprep.subr.mxu0 0.0
        %2234 = vmatpush1.msra.mxu0 0.0
        %2235 = vmatprep.subr.mxu0 0.0
        %2236 = vmatpush1.msra.mxu0 0.0
        %2237 = vmatprep.subr.mxu0 0.0
        %2238 = vmatpush1.msra.mxu0 0.0
        %2239 = vmatprep.subr.mxu0 0.0
        %2240 = vmatpush1.msra.mxu0 0.0
        %2241 = vmatprep.subr.mxu0 0.0
        %2242 = vmatpush1.msra.mxu0 0.0
        %2243 = vmatprep.subr.mxu0 0.0
        %2244 = vmatpush1.msra.mxu0 0.0
        %2245 = vmatprep.subr.mxu0 0.0
        %2246 = vmatpush1.msra.mxu0 0.0
        %2247 = vmatprep.subr.mxu0 0.0
        %2248 = vmatpush1.msra.mxu0 0.0
        %2249 = vmatprep.subr.mxu0 0.0
        %2250 = vmatpush1.msra.mxu0 0.0
        %2251 = vmatprep.subr.mxu0 0.0
        %2252 = vmatpush1.msra.mxu0 0.0
        %2253 = vmatprep.subr.mxu0 0.0
        %2254 = vmatpush1.msra.mxu0 0.0
        %2255 = vmatprep.subr.mxu0 0.0
        %2256 = vmatpush1.msra.mxu0 0.0
        %2257 = vmatprep.subr.mxu0 0.0
        %2258 = vmatpush1.msra.mxu0 0.0
        %2259 = vmatprep.subr.mxu0 0.0
        %2260 = vmatpush1.msra.mxu0 0.0
        %2261 = vmatprep.subr.mxu0 0.0
        %2262 = vmatpush1.msra.mxu0 0.0
        %2263 = vmatprep.subr.mxu0 0.0
        %2264 = vmatpush1.msra.mxu0 0.0
        %2265 = vmatprep.mubr.f32.mxu0 0.0
        %2266 = vmatmul.mubr.f32.gmra.mrb[0].mxu0 %v2180
        %v2267 = vpop.f32.mrb[0].mxu0
        %v2268 = vadd.f32 0.0, %v2267
        %v2269 = vpop.f32.mrb[0].mxu0
        %2270 = vmatprep.mubr.f32.mxu0 0.0
        %2271 = vmatmul.mubr.f32.gmra.mrb[0].mxu0 %v2181
        %v2272 = vpop.f32.mrb[0].mxu0
        %v2273 = vadd.f32 0.0, %v2272
        %v2274 = vpop.f32.mrb[0].mxu0
        %2275 = vmatprep.mubr.f32.mxu0 0.0
        %2276 = vmatmul.mubr.f32.gmra.mrb[0].mxu0 %v2182
        %v2277 = vpop.f32.mrb[0].mxu0
        %v2278 = vadd.f32 0.0, %v2277
        %v2279 = vpop.f32.mrb[0].mxu0
        %2280 = vmatprep.mubr.f32.mxu0 0.0
        %2281 = vmatmul.mubr.f32.gmra.mrb[0].mxu0 %v2183
        %v2282 = vpop.f32.mrb[0].mxu0
        %v2283 = vadd.f32 0.0, %v2282
        %v2284 = vpop.f32.mrb[0].mxu0
        %2285 = vdwg.mxu0
        %v2286 = vadd.f32 %v2176, %v2268
        %v2287 = vadd.f32 %v2177, %v2273
        %v2288 = vadd.f32 %v2178, %v2278
        %v2289 = vadd.f32 %v2179, %v2283
        %v2290 = vld [vmem:[#allocation3 + $0x10] sm:$0xff]
        %v2291 = vld [vmem:[#allocation3 + $0x18] sm:$0xff]
        %v2292 = vld [vmem:[#allocation3 + $0x20] sm:$0xff]
        %v2293 = vld [vmem:[#allocation3 + $0x28] sm:$0xff]
        %s2294 = scalar_lea.vmem [#allocation9], 768
        %v2295 = vld [vmem:[%s2294] sm:$0xff]
        %v2296 = vld [vmem:[%s2294 + $0x8] sm:$0xff]
        %v2297 = vld [vmem:[%s2294 + $0x10] sm:$0xff]
        %v2298 = vld [vmem:[%s2294 + $0x18] sm:$0xff]
        %v2299 = vld [vmem:[%s2294 + $0x20] sm:$0xff]
        %v2300 = vld [vmem:[%s2294 + $0x28] sm:$0xff]
        %v2301 = vld [vmem:[%s2294 + $0x30] sm:$0xff]
        %v2302 = vld [vmem:[%s2294 + $0x38] sm:$0xff]
        %v2303 = vld [vmem:[%s2294 + $0x40] sm:$0xff]
        %v2304 = vld [vmem:[%s2294 + $0x48] sm:$0xff]
        %v2305 = vld [vmem:[%s2294 + $0x50] sm:$0xff]
        %v2306 = vld [vmem:[%s2294 + $0x58] sm:$0xff]
        %v2307 = vld [vmem:[%s2294 + $0x60] sm:$0xff]
        %v2308 = vld [vmem:[%s2294 + $0x68] sm:$0xff]
        %v2309 = vld [vmem:[%s2294 + $0x70] sm:$0xff]
        %v2310 = vld [vmem:[%s2294 + $0x78] sm:$0xff]
        %2311 = vmatprep.subr.mxu0 0.0
        %2312 = vmatpush1.msra.mxu0 %v2295
        %2313 = vmatprep.subr.mxu0 0.0
        %2314 = vmatpush1.msra.mxu0 %v2296
        %2315 = vmatprep.subr.mxu0 0.0
        %2316 = vmatpush1.msra.mxu0 %v2297
        %2317 = vmatprep.subr.mxu0 0.0
        %2318 = vmatpush1.msra.mxu0 %v2298
        %2319 = vmatprep.subr.mxu0 0.0
        %2320 = vmatpush1.msra.mxu0 %v2299
        %2321 = vmatprep.subr.mxu0 0.0
        %2322 = vmatpush1.msra.mxu0 %v2300
        %2323 = vmatprep.subr.mxu0 0.0
        %2324 = vmatpush1.msra.mxu0 %v2301
        %2325 = vmatprep.subr.mxu0 0.0
        %2326 = vmatpush1.msra.mxu0 %v2302
        %2327 = vmatprep.subr.mxu0 0.0
        %2328 = vmatpush1.msra.mxu0 %v2303
        %2329 = vmatprep.subr.mxu0 0.0
        %2330 = vmatpush1.msra.mxu0 %v2304
        %2331 = vmatprep.subr.mxu0 0.0
        %2332 = vmatpush1.msra.mxu0 %v2305
        %2333 = vmatprep.subr.mxu0 0.0
        %2334 = vmatpush1.msra.mxu0 %v2306
        %2335 = vmatprep.subr.mxu0 0.0
        %2336 = vmatpush1.msra.mxu0 %v2307
        %2337 = vmatprep.subr.mxu0 0.0
        %2338 = vmatpush1.msra.mxu0 %v2308
        %2339 = vmatprep.subr.mxu0 0.0
        %2340 = vmatpush1.msra.mxu0 %v2309
        %2341 = vmatprep.subr.mxu0 0.0
        %2342 = vmatpush1.msra.mxu0 %v2310
        %2343 = vmatprep.subr.mxu0 0.0
        %2344 = vmatpush1.msra.mxu0 0.0
        %2345 = vmatprep.subr.mxu0 0.0
        %2346 = vmatpush1.msra.mxu0 0.0
        %2347 = vmatprep.subr.mxu0 0.0
        %2348 = vmatpush1.msra.mxu0 0.0
        %2349 = vmatprep.subr.mxu0 0.0
        %2350 = vmatpush1.msra.mxu0 0.0
        %2351 = vmatprep.subr.mxu0 0.0
        %2352 = vmatpush1.msra.mxu0 0.0
        %2353 = vmatprep.subr.mxu0 0.0
        %2354 = vmatpush1.msra.mxu0 0.0
        %2355 = vmatprep.subr.mxu0 0.0
        %2356 = vmatpush1.msra.mxu0 0.0
        %2357 = vmatprep.subr.mxu0 0.0
        %2358 = vmatpush1.msra.mxu0 0.0
        %2359 = vmatprep.subr.mxu0 0.0
        %2360 = vmatpush1.msra.mxu0 0.0
        %2361 = vmatprep.subr.mxu0 0.0
        %2362 = vmatpush1.msra.mxu0 0.0
        %2363 = vmatprep.subr.mxu0 0.0
        %2364 = vmatpush1.msra.mxu0 0.0
        %2365 = vmatprep.subr.mxu0 0.0
        %2366 = vmatpush1.msra.mxu0 0.0
        %2367 = vmatprep.subr.mxu0 0.0
        %2368 = vmatpush1.msra.mxu0 0.0
        %2369 = vmatprep.subr.mxu0 0.0
        %2370 = vmatpush1.msra.mxu0 0.0
        %2371 = vmatprep.subr.mxu0 0.0
        %2372 = vmatpush1.msra.mxu0 0.0
        %2373 = vmatprep.subr.mxu0 0.0
        %2374 = vmatpush1.msra.mxu0 0.0
        %2375 = vmatprep.mubr.f32.mxu0 0.0
        %2376 = vmatmul.mubr.f32.gmra.mrb[0].mxu0 %v2290
        %v2377 = vpop.f32.mrb[0].mxu0
        %v2378 = vadd.f32 0.0, %v2377
        %v2379 = vpop.f32.mrb[0].mxu0
        %2380 = vmatprep.mubr.f32.mxu0 0.0
        %2381 = vmatmul.mubr.f32.gmra.mrb[0].mxu0 %v2291
        %v2382 = vpop.f32.mrb[0].mxu0
        %v2383 = vadd.f32 0.0, %v2382
        %v2384 = vpop.f32.mrb[0].mxu0
        %2385 = vmatprep.mubr.f32.mxu0 0.0
        %2386 = vmatmul.mubr.f32.gmra.mrb[0].mxu0 %v2292
        %v2387 = vpop.f32.mrb[0].mxu0
        %v2388 = vadd.f32 0.0, %v2387
        %v2389 = vpop.f32.mrb[0].mxu0
        %2390 = vmatprep.mubr.f32.mxu0 0.0
        %2391 = vmatmul.mubr.f32.gmra.mrb[0].mxu0 %v2293
        %v2392 = vpop.f32.mrb[0].mxu0
        %v2393 = vadd.f32 0.0, %v2392
        %v2394 = vpop.f32.mrb[0].mxu0
        %2395 = vdwg.mxu0
        %v2396 = vadd.f32 %v2286, %v2378
        %v2397 = vadd.f32 %v2287, %v2383
        %v2398 = vadd.f32 %v2288, %v2388
        %v2399 = vadd.f32 %v2289, %v2393
        %v2400 = vld [vmem:[#allocation3 + $0x11] sm:$0xff]
        %v2401 = vld [vmem:[#allocation3 + $0x19] sm:$0xff]
        %v2402 = vld [vmem:[#allocation3 + $0x21] sm:$0xff]
        %v2403 = vld [vmem:[#allocation3 + $0x29] sm:$0xff]
        %s2404 = scalar_lea.vmem [#allocation9], 896
        %v2405 = vld [vmem:[%s2404] sm:$0xff]
        %v2406 = vld [vmem:[%s2404 + $0x8] sm:$0xff]
        %v2407 = vld [vmem:[%s2404 + $0x10] sm:$0xff]
        %v2408 = vld [vmem:[%s2404 + $0x18] sm:$0xff]
        %v2409 = vld [vmem:[%s2404 + $0x20] sm:$0xff]
        %v2410 = vld [vmem:[%s2404 + $0x28] sm:$0xff]
        %v2411 = vld [vmem:[%s2404 + $0x30] sm:$0xff]
        %v2412 = vld [vmem:[%s2404 + $0x38] sm:$0xff]
        %v2413 = vld [vmem:[%s2404 + $0x40] sm:$0xff]
        %v2414 = vld [vmem:[%s2404 + $0x48] sm:$0xff]
        %v2415 = vld [vmem:[%s2404 + $0x50] sm:$0xff]
        %v2416 = vld [vmem:[%s2404 + $0x58] sm:$0xff]
        %v2417 = vld [vmem:[%s2404 + $0x60] sm:$0xff]
        %v2418 = vld [vmem:[%s2404 + $0x68] sm:$0xff]
        %v2419 = vld [vmem:[%s2404 + $0x70] sm:$0xff]
        %v2420 = vld [vmem:[%s2404 + $0x78] sm:$0xff]
        %2421 = vmatprep.subr.mxu0 0.0
        %2422 = vmatpush1.msra.mxu0 %v2405
        %2423 = vmatprep.subr.mxu0 0.0
        %2424 = vmatpush1.msra.mxu0 %v2406
        %2425 = vmatprep.subr.mxu0 0.0
        %2426 = vmatpush1.msra.mxu0 %v2407
        %2427 = vmatprep.subr.mxu0 0.0
        %2428 = vmatpush1.msra.mxu0 %v2408
        %2429 = vmatprep.subr.mxu0 0.0
        %2430 = vmatpush1.msra.mxu0 %v2409
        %2431 = vmatprep.subr.mxu0 0.0
        %2432 = vmatpush1.msra.mxu0 %v2410
        %2433 = vmatprep.subr.mxu0 0.0
        %2434 = vmatpush1.msra.mxu0 %v2411
        %2435 = vmatprep.subr.mxu0 0.0
        %2436 = vmatpush1.msra.mxu0 %v2412
        %2437 = vmatprep.subr.mxu0 0.0
        %2438 = vmatpush1.msra.mxu0 %v2413
        %2439 = vmatprep.subr.mxu0 0.0
        %2440 = vmatpush1.msra.mxu0 %v2414
        %2441 = vmatprep.subr.mxu0 0.0
        %2442 = vmatpush1.msra.mxu0 %v2415
        %2443 = vmatprep.subr.mxu0 0.0
        %2444 = vmatpush1.msra.mxu0 %v2416
        %2445 = vmatprep.subr.mxu0 0.0
        %2446 = vmatpush1.msra.mxu0 %v2417
        %2447 = vmatprep.subr.mxu0 0.0
        %2448 = vmatpush1.msra.mxu0 %v2418
        %2449 = vmatprep.subr.mxu0 0.0
        %2450 = vmatpush1.msra.mxu0 %v2419
        %2451 = vmatprep.subr.mxu0 0.0
        %2452 = vmatpush1.msra.mxu0 %v2420
        %2453 = vmatprep.subr.mxu0 0.0
        %2454 = vmatpush1.msra.mxu0 0.0
        %2455 = vmatprep.subr.mxu0 0.0
        %2456 = vmatpush1.msra.mxu0 0.0
        %2457 = vmatprep.subr.mxu0 0.0
        %2458 = vmatpush1.msra.mxu0 0.0
        %2459 = vmatprep.subr.mxu0 0.0
        %2460 = vmatpush1.msra.mxu0 0.0
        %2461 = vmatprep.subr.mxu0 0.0
        %2462 = vmatpush1.msra.mxu0 0.0
        %2463 = vmatprep.subr.mxu0 0.0
        %2464 = vmatpush1.msra.mxu0 0.0
        %2465 = vmatprep.subr.mxu0 0.0
        %2466 = vmatpush1.msra.mxu0 0.0
        %2467 = vmatprep.subr.mxu0 0.0
        %2468 = vmatpush1.msra.mxu0 0.0
        %2469 = vmatprep.subr.mxu0 0.0
        %2470 = vmatpush1.msra.mxu0 0.0
        %2471 = vmatprep.subr.mxu0 0.0
        %2472 = vmatpush1.msra.mxu0 0.0
        %2473 = vmatprep.subr.mxu0 0.0
        %2474 = vmatpush1.msra.mxu0 0.0
        %2475 = vmatprep.subr.mxu0 0.0
        %2476 = vmatpush1.msra.mxu0 0.0
        %2477 = vmatprep.subr.mxu0 0.0
        %2478 = vmatpush1.msra.mxu0 0.0
        %2479 = vmatprep.subr.mxu0 0.0
        %2480 = vmatpush1.msra.mxu0 0.0
        %2481 = vmatprep.subr.mxu0 0.0
        %2482 = vmatpush1.msra.mxu0 0.0
        %2483 = vmatprep.subr.mxu0 0.0
        %2484 = vmatpush1.msra.mxu0 0.0
        %2485 = vmatprep.mubr.f32.mxu0 0.0
        %2486 = vmatmul.mubr.f32.gmra.mrb[0].mxu0 %v2400
        %v2487 = vpop.f32.mrb[0].mxu0
        %v2488 = vadd.f32 0.0, %v2487
        %v2489 = vpop.f32.mrb[0].mxu0
        %2490 = vmatprep.mubr.f32.mxu0 0.0
        %2491 = vmatmul.mubr.f32.gmra.mrb[0].mxu0 %v2401
        %v2492 = vpop.f32.mrb[0].mxu0
        %v2493 = vadd.f32 0.0, %v2492
        %v2494 = vpop.f32.mrb[0].mxu0
        %2495 = vmatprep.mubr.f32.mxu0 0.0
        %2496 = vmatmul.mubr.f32.gmra.mrb[0].mxu0 %v2402
        %v2497 = vpop.f32.mrb[0].mxu0
        %v2498 = vadd.f32 0.0, %v2497
        %v2499 = vpop.f32.mrb[0].mxu0
        %2500 = vmatprep.mubr.f32.mxu0 0.0
        %2501 = vmatmul.mubr.f32.gmra.mrb[0].mxu0 %v2403
        %v2502 = vpop.f32.mrb[0].mxu0
        %v2503 = vadd.f32 0.0, %v2502
        %v2504 = vpop.f32.mrb[0].mxu0
        %2505 = vdwg.mxu0
        %v2506 = vadd.f32 %v2396, %v2488
        %v2507 = vadd.f32 %v2397, %v2493
        %v2508 = vadd.f32 %v2398, %v2498
        %v2509 = vadd.f32 %v2399, %v2503
        %v2510 = vld [vmem:[#allocation3 + $0x12] sm:$0xff]
        %v2511 = vld [vmem:[#allocation3 + $0x1a] sm:$0xff]
        %v2512 = vld [vmem:[#allocation3 + $0x22] sm:$0xff]
        %v2513 = vld [vmem:[#allocation3 + $0x2a] sm:$0xff]
        %s2514 = scalar_lea.vmem [#allocation9], 1024
        %v2515 = vld [vmem:[%s2514] sm:$0xff]
        %v2516 = vld [vmem:[%s2514 + $0x8] sm:$0xff]
        %v2517 = vld [vmem:[%s2514 + $0x10] sm:$0xff]
        %v2518 = vld [vmem:[%s2514 + $0x18] sm:$0xff]
        %v2519 = vld [vmem:[%s2514 + $0x20] sm:$0xff]
        %v2520 = vld [vmem:[%s2514 + $0x28] sm:$0xff]
        %v2521 = vld [vmem:[%s2514 + $0x30] sm:$0xff]
        %v2522 = vld [vmem:[%s2514 + $0x38] sm:$0xff]
        %v2523 = vld [vmem:[%s2514 + $0x40] sm:$0xff]
        %v2524 = vld [vmem:[%s2514 + $0x48] sm:$0xff]
        %v2525 = vld [vmem:[%s2514 + $0x50] sm:$0xff]
        %v2526 = vld [vmem:[%s2514 + $0x58] sm:$0xff]
        %v2527 = vld [vmem:[%s2514 + $0x60] sm:$0xff]
        %v2528 = vld [vmem:[%s2514 + $0x68] sm:$0xff]
        %v2529 = vld [vmem:[%s2514 + $0x70] sm:$0xff]
        %v2530 = vld [vmem:[%s2514 + $0x78] sm:$0xff]
        %2531 = vmatprep.subr.mxu0 0.0
        %2532 = vmatpush1.msra.mxu0 %v2515
        %2533 = vmatprep.subr.mxu0 0.0
        %2534 = vmatpush1.msra.mxu0 %v2516
        %2535 = vmatprep.subr.mxu0 0.0
        %2536 = vmatpush1.msra.mxu0 %v2517
        %2537 = vmatprep.subr.mxu0 0.0
        %2538 = vmatpush1.msra.mxu0 %v2518
        %2539 = vmatprep.subr.mxu0 0.0
        %2540 = vmatpush1.msra.mxu0 %v2519
        %2541 = vmatprep.subr.mxu0 0.0
        %2542 = vmatpush1.msra.mxu0 %v2520
        %2543 = vmatprep.subr.mxu0 0.0
        %2544 = vmatpush1.msra.mxu0 %v2521
        %2545 = vmatprep.subr.mxu0 0.0
        %2546 = vmatpush1.msra.mxu0 %v2522
        %2547 = vmatprep.subr.mxu0 0.0
        %2548 = vmatpush1.msra.mxu0 %v2523
        %2549 = vmatprep.subr.mxu0 0.0
        %2550 = vmatpush1.msra.mxu0 %v2524
        %2551 = vmatprep.subr.mxu0 0.0
        %2552 = vmatpush1.msra.mxu0 %v2525
        %2553 = vmatprep.subr.mxu0 0.0
        %2554 = vmatpush1.msra.mxu0 %v2526
        %2555 = vmatprep.subr.mxu0 0.0
        %2556 = vmatpush1.msra.mxu0 %v2527
        %2557 = vmatprep.subr.mxu0 0.0
        %2558 = vmatpush1.msra.mxu0 %v2528
        %2559 = vmatprep.subr.mxu0 0.0
        %2560 = vmatpush1.msra.mxu0 %v2529
        %2561 = vmatprep.subr.mxu0 0.0
        %2562 = vmatpush1.msra.mxu0 %v2530
        %2563 = vmatprep.subr.mxu0 0.0
        %2564 = vmatpush1.msra.mxu0 0.0
        %2565 = vmatprep.subr.mxu0 0.0
        %2566 = vmatpush1.msra.mxu0 0.0
        %2567 = vmatprep.subr.mxu0 0.0
        %2568 = vmatpush1.msra.mxu0 0.0
        %2569 = vmatprep.subr.mxu0 0.0
        %2570 = vmatpush1.msra.mxu0 0.0
        %2571 = vmatprep.subr.mxu0 0.0
        %2572 = vmatpush1.msra.mxu0 0.0
        %2573 = vmatprep.subr.mxu0 0.0
        %2574 = vmatpush1.msra.mxu0 0.0
        %2575 = vmatprep.subr.mxu0 0.0
        %2576 = vmatpush1.msra.mxu0 0.0
        %2577 = vmatprep.subr.mxu0 0.0
        %2578 = vmatpush1.msra.mxu0 0.0
        %2579 = vmatprep.subr.mxu0 0.0
        %2580 = vmatpush1.msra.mxu0 0.0
        %2581 = vmatprep.subr.mxu0 0.0
        %2582 = vmatpush1.msra.mxu0 0.0
        %2583 = vmatprep.subr.mxu0 0.0
        %2584 = vmatpush1.msra.mxu0 0.0
        %2585 = vmatprep.subr.mxu0 0.0
        %2586 = vmatpush1.msra.mxu0 0.0
        %2587 = vmatprep.subr.mxu0 0.0
        %2588 = vmatpush1.msra.mxu0 0.0
        %2589 = vmatprep.subr.mxu0 0.0
        %2590 = vmatpush1.msra.mxu0 0.0
        %2591 = vmatprep.subr.mxu0 0.0
        %2592 = vmatpush1.msra.mxu0 0.0
        %2593 = vmatprep.subr.mxu0 0.0
        %2594 = vmatpush1.msra.mxu0 0.0
        %2595 = vmatprep.mubr.f32.mxu0 0.0
        %2596 = vmatmul.mubr.f32.gmra.mrb[0].mxu0 %v2510
        %v2597 = vpop.f32.mrb[0].mxu0
        %v2598 = vadd.f32 0.0, %v2597
        %v2599 = vpop.f32.mrb[0].mxu0
        %2600 = vmatprep.mubr.f32.mxu0 0.0
        %2601 = vmatmul.mubr.f32.gmra.mrb[0].mxu0 %v2511
        %v2602 = vpop.f32.mrb[0].mxu0
        %v2603 = vadd.f32 0.0, %v2602
        %v2604 = vpop.f32.mrb[0].mxu0
        %2605 = vmatprep.mubr.f32.mxu0 0.0
        %2606 = vmatmul.mubr.f32.gmra.mrb[0].mxu0 %v2512
        %v2607 = vpop.f32.mrb[0].mxu0
        %v2608 = vadd.f32 0.0, %v2607
        %v2609 = vpop.f32.mrb[0].mxu0
        %2610 = vmatprep.mubr.f32.mxu0 0.0
        %2611 = vmatmul.mubr.f32.gmra.mrb[0].mxu0 %v2513
        %v2612 = vpop.f32.mrb[0].mxu0
        %v2613 = vadd.f32 0.0, %v2612
        %v2614 = vpop.f32.mrb[0].mxu0
        %2615 = vdwg.mxu0
        %v2616 = vadd.f32 %v2506, %v2598
        %v2617 = vadd.f32 %v2507, %v2603
        %v2618 = vadd.f32 %v2508, %v2608
        %v2619 = vadd.f32 %v2509, %v2613
        %v2620 = vld [vmem:[%s5] sm:$0x1]
        %v2622 = vlaneseq
        %v2623 = vshrl.u32 %v2622, 7
        %v2624 = vsub.s32 0, %v2623
        %v2625 = vrot.slane %v2620, %v2624
        %v2627 = vmul.f32 %v2616, %v2625
        %v2628 = vmul.f32 %v2617, %v2625
        %v2629 = vmul.f32 %v2618, %v2625
        %v2630 = vmul.f32 %v2619, %v2625
        %v2631 = vld [vmem:[%s6] sm:$0x1]
        %v2633 = vlaneseq
        %v2634 = vshrl.u32 %v2633, 7
        %v2635 = vsub.s32 0, %v2634
        %v2636 = vrot.slane %v2631, %v2635
        %v2638 = vadd.f32 %v2627, %v2636
        %v2639 = vadd.f32 %v2628, %v2636
        %v2640 = vadd.f32 %v2629, %v2636
        %v2641 = vadd.f32 %v2630, %v2636
        %v2642 = vmax.f32 %v2638, 0.0
        %v2643 = vmax.f32 %v2639, 0.0
        %v2644 = vmax.f32 %v2640, 0.0
        %v2645 = vmax.f32 %v2641, 0.0
        %2646 = vst [vmem:[%s339] sm:$0xf] %v2642
        %2647 = vst [vmem:[%s339 + $0x4] sm:$0xf] %v2643
        %2648 = vst [vmem:[%s339 + $0x8] sm:$0xf] %v2644
        %2649 = vst [vmem:[%s339 + $0xc] sm:$0xf] %v2645
        %s2650 = sand.u32 %s199, 1
        %s2651 = scalar_lea.sflag [#allocation6], %s2650
        %s2652 = sand.u32 %s199, 1
        %s2653 = smul.addr %s2652, 16
        %s2654 = scalar_lea.vmem [#allocation10], %s2653
        // Predicated region
        $region61: #{tpu_custom_call.1} parent=47 // pred_check
          %p2655 = pneg %p209
        $region62: #{tpu_custom_call.1} parent=47 // pred_check_branch
          %2657 = sbr.rel (%p2655) target = $region64
        $region63: #{tpu_custom_call.1} parent=47 // pred_region
          %s2658 = smul.u32 4, %s30
          %s2660 = ssub.s32 256, 256
          %2661 = vsyncadd %s2651, %s2660
          %s2662 = smul.addr %s29, 4
          %s2663 = sadd.s32 %s2658, %s2662
          %s2664 = smul.addr %s2663, 64
          %s2665 = scalar_lea.hbm %s7, %s2664
          %s2666 = sshll.u32 %s2654, 4
          %s2667 = int_to_ptr.vmem [resolvable:$true] %s2666
          %2672 = dma.vmem_to_hbm [thread:$0]  %s2667, 256, %s2665, %s2651, 64, 64, 4
        $region64: #{tpu_custom_call.1} parent=47 // pred_fallthru
          _
      $region48: #{tpu_custom_call.1} parent=5 // pred_fallthru
        _
      %p2673 = scmp.le.s32.totalorder 2, %s20
      // Predicated region
      $region65: #{tpu_custom_call.1} parent=5 // pred_check
        %p2674 = pneg %p2673
      $region66: #{tpu_custom_call.1} parent=5 // pred_check_branch
        %2676 = sbr.rel (%p2674) target = $region68
      $region67: #{tpu_custom_call.1} parent=5 // pred_region
        %s2677 = ssub.s32 %s20, 2
        // Predicated region
        $region69: #{tpu_custom_call.1} parent=67 // pred_check
          %p2678 = pneg %p215
        $region70: #{tpu_custom_call.1} parent=67 // pred_check_branch
          %2680 = sbr.rel (%p2678) target = $region72
        $region71: #{tpu_custom_call.1} parent=67 // pred_region
          %s2681 = sand.u32 %s200, 1
          %s2682 = scalar_lea.sflag [#allocation6], %s2681
          %s2683 = sand.u32 %s200, 1
          %s2684 = smul.addr %s2683, 16
          %s2685 = scalar_lea.vmem [#allocation10], %s2684
          %2686 = dma.done %s2682, 256
        $region72: #{tpu_custom_call.1} parent=67 // pred_fallthru
          _
      $region68: #{tpu_custom_call.1} parent=5 // pred_fallthru
        _
    $region6: #{tpu_custom_call.1} parent=1 // loop_footer
      %s24 = sadd.s32 1, %s20
    $region7: #{tpu_custom_call.1} parent=1 // loop_footer_branch
      %19 = sbr.rel target = $region3
    $region8: #{tpu_custom_call.1} parent=1 // loop_exit
      _
    %2687 = vsyncpa [#allocation5], 1
    %s2688 = scalar_lea.sflag [#allocation5], 1
    %2689 = vsyncpa %s2688, 1
    %2690 = vsyncpa [#allocation8], 1
    %2691 = vsyncpa [#allocation6], 1
    %s2692 = scalar_lea.sflag [#allocation6], 1
    %2693 = vsyncpa %s2692, 1

</llo_original>
